<compile_context>
chip_gen: v7x
topology: tpu7x:2x2x1
jax: 0.10.0
libtpu: 0.0.40
codegen_flags: <defaults>
</compile_context>

<pallas_src>
import functools

import numpy as np

import jax
import jax.numpy as jnp
from jax.experimental import pallas as pl
from jax.experimental.pallas import tpu as pltpu


def _round_up(x, m):
    return ((x + m - 1) // m) * m


# ----------------------------------------------------------------------------
# Fused Pallas kernel: all conv branches + ReLU + max-over-time + LayerNorm + dense
# ----------------------------------------------------------------------------
def _fused_cnn_kernel(x_ref, w_ref, b_ref, mask_ref, g_ref, beta_ref, gmat_ref,
                      dw_ref, db_ref, logits_ref, feat_ref,
                      *, n_taps, shift_sign, use_layer_norm, eps):
    """One batch tile of the whole classifier.

    x_ref     : (Bt, Lx, Ein)      zero-padded embeddings (roll path: Ein = E,
                                    im2col fallback path: Ein = K_max * E, n_taps = 1)
    w_ref     : (n_taps, Ein, Ftot) conv weights, all branches stacked along Ftot
    b_ref     : (1, Ftot)           stacked conv bias
    mask_ref  : (Lx, Ftot)          1.0 where the conv window is valid for that branch
    g_ref     : (1, Ftot)           LayerNorm gamma (tiled per branch)
    beta_ref  : (1, Ftot)           LayerNorm beta  (tiled per branch)
    gmat_ref  : (Ftot, Ftot)        block-averaging matrix (per-branch mean via MXU)
    dw_ref    : (Ftot, C)           dense weight (torch weight, transposed)
    db_ref    : (1, C)              dense bias
    logits_ref: (Bt, C)
    feat_ref  : (Bt, Ftot)          text_feature (post-LayerNorm, pre-dropout)
    """
    Bt, Lx, Ein = x_ref.shape
    Ftot = w_ref.shape[-1]
    N = Bt * Lx

    # (Bt, Lx, Ein) -> (Bt*Lx, Ein): Lx % 8 == 0, so this is a free re-view.
    x2 = x_ref[...].reshape(N, Ein)

    # Conv1d as n_taps shifted (N, Ein) @ (Ein, Ftot) MXU matmuls.  The shift is a
    # sublane rotate (XLU slot); rows that pick up wrapped / cross-batch data all lie
    # at t >= Lx - K_max + 1 and are killed by `mask` below.
    acc = jnp.dot(x2, w_ref[0], preferred_element_type=jnp.float32)
    for j in range(1, n_taps):
        xj = pltpu.roll(x2, shift=(shift_sign * j) % N, axis=0)
        acc = acc + jnp.dot(xj, w_ref[j], preferred_element_type=jnp.float32)

    acc = jnp.maximum(acc + b_ref[...], 0.0)                      # conv bias + ReLU
    acc = acc.reshape(Bt, Lx, Ftot) * mask_ref[...][None]         # mask invalid windows
    pooled = jnp.max(acc, axis=1)                                 # (Bt, Ftot), topk(k=1)

    if use_layer_norm:
        # Per-branch LayerNorm on the stacked features: group mean / variance via the
        # block-averaging matrix G (MXU), so no lane-axis slicing is needed.
        mean = jnp.dot(pooled, gmat_ref[...], preferred_element_type=jnp.float32)
        cen = pooled - mean
        var = jnp.dot(cen * cen, gmat_ref[...], preferred_element_type=jnp.float32)
        pooled = cen * jax.lax.rsqrt(var + eps) * g_ref[...] + beta_ref[...]

    feat_ref[...] = pooled.astype(feat_ref.dtype)
    # Dropout is identity at inference; the final dense is fused here.
    logits_ref[...] = (jnp.dot(pooled, dw_ref[...], preferred_element_type=jnp.float32)
                       + db_ref[...]).astype(logits_ref.dtype)


# ----------------------------------------------------------------------------
# One-time probe: detect pltpu.roll's rotation direction (and availability).
# ----------------------------------------------------------------------------
_ROLL_SHIFT_SIGN = None  # +1 / -1: usable shift sign; 0: use the im2col fallback


def _roll_probe_kernel(x_ref, o_ref):
    o_ref[...] = pltpu.roll(x_ref[...], shift=1, axis=0)


def _get_roll_shift_sign():
    """Returns s such that pltpu.roll(x, (s*j) % n, axis=0)[t] == x[(t + j) % n],
    or 0 if pltpu.roll cannot be used (then the wrapper builds im2col patches)."""
    global _ROLL_SHIFT_SIGN
    if _ROLL_SHIFT_SIGN is not None:
        return _ROLL_SHIFT_SIGN
    try:
        x = jnp.broadcast_to(jnp.arange(8, dtype=jnp.float32)[:, None], (8, 128))
        out = pl.pallas_call(
            _roll_probe_kernel,
            out_shape=jax.ShapeDtypeStruct((8, 128), jnp.float32))(x)
        v = int(jax.device_get(out)[0, 0])
        if v == 7:        # jnp.roll semantics: out[t] = x[(t - shift) % n]
            _ROLL_SHIFT_SIGN = -1
        elif v == 1:      # opposite convention: out[t] = x[(t + shift) % n]
            _ROLL_SHIFT_SIGN = 1
        else:
            _ROLL_SHIFT_SIGN = 0
    except Exception:     # lowering unsupported -> wrapper-side im2col fallback
        _ROLL_SHIFT_SIGN = 0
    return _ROLL_SHIFT_SIGN


# ----------------------------------------------------------------------------
# Forward pass: embedding gather in JAX, everything else in one Pallas kernel.
# ----------------------------------------------------------------------------
def cnn_classifier_forward(ids, params, cfg):
    """ids: (B, L) int32 token ids.  Returns (logits, text_feature).
    Matches CNNClassifier.forward at inference time (dropout = identity)."""
    filter_sizes = tuple(int(k) for k in cfg["filter_sizes"])
    E = int(cfg["embedding_size"])
    F = int(cfg["num_filters"])
    C = int(cfg["num_classes"])
    n_branch = len(filter_sizes)
    Ftot = n_branch * F
    eps = 1e-5

    # Embedding lookup (gather).  Dropout is identity at inference.
    # TODO(synk): for large B*L, fuse this gather into the kernel with
    # PrefetchScalarGridSpec (ids in SMEM + per-row DMA) instead of materializing
    # the (B, L, E) activation in HBM.
    emb = jnp.take(params["embedding"], ids, axis=0).astype(jnp.float32)   # (B, L, E)
    B, L, _ = emb.shape

    # Common-frame geometry: one max-padded x shared by all branches; branch i's torch
    # output position t' lives at common position t = t' + off_i.  Handles even kernel
    # sizes (torch L_out = L + 1) exactly like torch Conv1d(padding=k//2).
    pads = [k // 2 for k in filter_sizes]
    pad_max = max(pads)
    k_max = max(filter_sizes)
    offs = [pad_max - p for p in pads]
    louts = [L + 2 * p - k + 1 for k, p in zip(filter_sizes, pads)]
    l_need = max(o + lo for o, lo in zip(offs, louts))
    Lx = _round_up(l_need + k_max - 1, 8)

    # Single zero-padded copy of the embeddings (was one copy per branch before).
    x_pad = jnp.pad(emb, ((0, 0), (pad_max, Lx - pad_max - L), (0, 0)))

    # Stack all branches: taps zero-padded to k_max, filters concatenated -> (k_max, E, 3F).
    # torch Conv1d weight layout is (F, E, k).
    w_taps = []
    for j in range(k_max):
        cols = []
        for k, (w, _) in zip(filter_sizes, params["convs"]):
            cols.append(jnp.transpose(w[:, :, j]) if j < k
                        else jnp.zeros((E, F), jnp.float32))
        w_taps.append(jnp.concatenate(cols, axis=1))                       # (E, Ftot)
    w_stk = jnp.stack(w_taps, axis=0)                                      # (k_max, E, Ftot)
    b_stk = jnp.concatenate([b for _, b in params["convs"]]).reshape(1, Ftot)

    # Validity mask (host constant): branch i valid at common t in [off_i, off_i + Lout_i).
    mask_np = np.zeros((Lx, Ftot), np.float32)
    for i, (o, lo) in enumerate(zip(offs, louts)):
        mask_np[o:o + lo, i * F:(i + 1) * F] = 1.0
    mask = jnp.asarray(mask_np)

    # Shared LayerNorm params tiled per branch + block-averaging matrix for group stats.
    # (When use_layer_norm=False these tiny arrays ride along unused.)
    g_stk = jnp.tile(params["ln_gamma"].reshape(-1), n_branch).reshape(1, Ftot)
    beta_stk = jnp.tile(params["ln_beta"].reshape(-1), n_branch).reshape(1, Ftot)
    gmat = jnp.asarray(np.kron(np.eye(n_branch, dtype=np.float32),
                               np.full((F, F), 1.0 / F, np.float32)))

    dw = jnp.transpose(params["dense_w"])                                  # (Ftot, C)
    db = params["dense_b"].reshape(1, C)

    # Shift strategy: in-kernel pltpu.roll (preferred, 1x HBM traffic), or wrapper-side
    # im2col patches (K_max*E contraction) if roll is unavailable on this jax/TPU combo.
    sign = _get_roll_shift_sign()
    if sign != 0:
        x_arr, w_arr, n_taps = x_pad, w_stk, k_max
    else:
        x_arr = jnp.concatenate(
            [jnp.pad(x_pad[:, j:, :], ((0, 0), (0, j), (0, 0))) for j in range(k_max)],
            axis=-1)                                                       # (B, Lx, k_max*E)
        w_arr = w_stk.reshape(1, k_max * E, Ftot)
        n_taps = 1

    # Batch grid (weights resident via constant index_maps).  At these sizes the
    # per-step VMEM footprint is ~2-3 MiB, comfortably inside v7x's 64 MiB VMEM.
    B_tile = max(1, min(B, int(cfg.get("batch_tile", 8))))
    B_pad = _round_up(B, B_tile)
    if B_pad != B:
        x_arr = jnp.pad(x_arr, ((0, B_pad - B), (0, 0), (0, 0)))

    kernel = functools.partial(
        _fused_cnn_kernel, n_taps=n_taps, shift_sign=sign,
        use_layer_norm=bool(cfg["use_layer_norm"]), eps=eps)

    def _full(a):
        return pl.BlockSpec(a.shape, lambda b, _nd=a.ndim: (0,) * _nd)

    logits, feat = pl.pallas_call(
        kernel,
        out_shape=(jax.ShapeDtypeStruct((B_pad, C), jnp.float32),
                   jax.ShapeDtypeStruct((B_pad, Ftot), jnp.float32)),
        grid=(B_pad // B_tile,),
        in_specs=[pl.BlockSpec((B_tile,) + tuple(x_arr.shape[1:]), lambda b: (b, 0, 0)),
                  _full(w_arr), _full(b_stk), _full(mask),
                  _full(g_stk), _full(beta_stk), _full(gmat),
                  _full(dw), _full(db)],
        out_specs=(pl.BlockSpec((B_tile, C), lambda b: (b, 0)),
                   pl.BlockSpec((B_tile, Ftot), lambda b: (b, 0))),
        compiler_params=pltpu.CompilerParams(
            dimension_semantics=("parallel",),     # v7x: both TensorCores split the batch
            vmem_limit_bytes=32 * 1024 * 1024),
    )(x_arr, w_arr, b_stk, mask, g_stk, beta_stk, gmat, dw, db)

    return logits[:B], feat[:B]


# ----------------------------------------------------------------------------
# Pure-JAX (XLA) reference of the torch forward, for numerical verification.
# ----------------------------------------------------------------------------
def reference_forward(ids, params, cfg):
    hi = jax.lax.Precision.HIGHEST
    emb = jnp.take(params["embedding"], ids, axis=0)               # (B, L, E)
    x = jnp.transpose(emb, (0, 2, 1))                              # (B, E, L)
    feats = []
    for k, (w, b) in zip(cfg["filter_sizes"], params["convs"]):
        y = jax.lax.conv_general_dilated(
            x, w, window_strides=(1,), padding=[(k // 2, k // 2)],
            dimension_numbers=("NCH", "OIH", "NCH"), precision=hi)
        y = jnp.maximum(y + b[None, :, None], 0.0)
        pooled = jnp.max(y, axis=-1)                               # (B, F) == topk(k=1)
        if cfg["use_layer_norm"]:
            mean = jnp.mean(pooled, axis=-1, keepdims=True)
            var = jnp.mean((pooled - mean) ** 2, axis=-1, keepdims=True)
            pooled = (pooled - mean) / jnp.sqrt(var + 1e-5)
            pooled = pooled * params["ln_gamma"] + params["ln_beta"]
        feats.append(pooled)
    text_feature = jnp.concatenate(feats, axis=1)
    logits = jnp.dot(text_feature, params["dense_w"].T, precision=hi) + params["dense_b"]
    return logits, text_feature


# ----------------------------------------------------------------------------
# Deterministic parameters (torch layouts) + demo run
# ----------------------------------------------------------------------------
def make_params(key, *, vocab_size, embedding_size, num_filters, filter_sizes,
                num_classes, padding_index):
    n = len(filter_sizes)
    keys = jax.random.split(key, 3 + 2 * n)
    # Embedding: uniform_(-0.25, 0.25), padding row zeroed (as in EmbeddingLayer).
    emb = jax.random.uniform(keys[0], (vocab_size, embedding_size), jnp.float32,
                             minval=-0.25, maxval=0.25)
    emb = emb.at[padding_index].set(0.0)

    convs = []
    for i, k in enumerate(filter_sizes):
        w = 0.05 * jax.random.normal(keys[1 + 2 * i],
                                     (num_filters, embedding_size, k), jnp.float32)
        b = 0.05 * jax.random.normal(keys[2 + 2 * i], (num_filters,), jnp.float32)
        convs.append((w, b))

    dense_w = 0.05 * jax.random.normal(
        keys[2 * n + 1], (num_classes, num_filters * n), jnp.float32)
    dense_b = 0.05 * jax.random.normal(keys[2 * n + 2], (num_classes,), jnp.float32)

    return {
        "embedding": emb,
        "convs": convs,                         # list of (w: (F,E,k), b: (F,))
        "ln_gamma": jnp.ones((num_filters,), jnp.float32),
        "ln_beta": jnp.zeros((num_filters,), jnp.float32),
        "dense_w": dense_w,                     # torch layout (C, 3F)
        "dense_b": dense_b,
    }


if __name__ == "__main__":
    cfg = {
        "embedding_size": 128,
        "num_filters": 128,
        "filter_sizes": [2, 3, 4],
        "num_classes": 8,
        "use_layer_norm": True,
        "batch_tile": 8,
    }
    vocab_size, padding_index = 64, 0
    B, L = 16, 16

    key = jax.random.PRNGKey(0)
    pkey, ikey = jax.random.split(key)
    params = make_params(pkey,
                         vocab_size=vocab_size,
                         embedding_size=cfg["embedding_size"],
                         num_filters=cfg["num_filters"],
                         filter_sizes=cfg["filter_sizes"],
                         num_classes=cfg["num_classes"],
                         padding_index=padding_index)
    ids = jax.random.randint(ikey, (B, L), 0, vocab_size, dtype=jnp.int32)

    logits, text_feature = cnn_classifier_forward(ids, params, cfg)
    jax.block_until_ready((logits, text_feature))

    assert logits.shape == (B, cfg["num_classes"])
    assert text_feature.shape == (B, cfg["num_filters"] * len(cfg["filter_sizes"]))

    # Numerical check against the pure-JAX reference of the torch forward.
    # (Tolerance is loose enough for MXU/XLA precision-mode differences, but far
    #  tighter than any structural / tap-alignment / masking error would produce.)
    ref_logits, ref_feat = reference_forward(ids, params, cfg)
    np.testing.assert_allclose(np.asarray(text_feature), np.asarray(ref_feat),
                               rtol=2e-2, atol=2e-2)
    np.testing.assert_allclose(np.asarray(logits), np.asarray(ref_logits),
                               rtol=2e-2, atol=2e-2)

    print("KERNEL_OK")
</pallas_src>

<mosaic_0001>
module attributes {stable_mosaic.version = 11 : i64} {
  func.func @_roll_probe_kernel(%arg0: memref<8x128xf32, #tpu.memory_space<vmem>>, %arg1: memref<8x128xf32, #tpu.memory_space<vmem>>) attributes {dimension_semantics = [], scalar_prefetch = 0 : i64, scratch_operands = 0 : i64, tpu.core_type = #tpu.core_type<tc>} {
    %c0 = arith.constant 0 : index
    %c0_0 = arith.constant 0 : index
    %0 = vector.load %arg0[%c0, %c0_0] : memref<8x128xf32, #tpu.memory_space<vmem>>, vector<8x128xf32>
    %c1_i32 = arith.constant 1 : i32
    %1 = tpu.dynamic_rotate %0 by %c1_i32 dim 0 : vector<8x128xf32>, i32 -> vector<8x128xf32>
    %c0_1 = arith.constant 0 : index
    %c0_2 = arith.constant 0 : index
    %2 = vector.load %arg1[%c0_1, %c0_2] : memref<8x128xf32, #tpu.memory_space<vmem>>, vector<8x128xf32>
    tpu.vector_store %arg1[%c0_1, %c0_2], %1 {strides = array<i32>} : memref<8x128xf32, #tpu.memory_space<vmem>>, vector<8x128xf32>,
    return
  }
}

module attributes {stable_mosaic.version = 11 : i64} {
  func.func @_fused_cnn_kernel(%arg0: i32, %arg1: memref<8x24x512xf32, #tpu.memory_space<vmem>>, %arg2: memref<1x512x384xf32, #tpu.memory_space<vmem>>, %arg3: memref<1x384xf32, #tpu.memory_space<vmem>>, %arg4: memref<24x384xf32, #tpu.memory_space<vmem>>, %arg5: memref<1x384xf32, #tpu.memory_space<vmem>>, %arg6: memref<1x384xf32, #tpu.memory_space<vmem>>, %arg7: memref<384x384xf32, #tpu.memory_space<vmem>>, %arg8: memref<384x8xf32, #tpu.memory_space<vmem>>, %arg9: memref<1x8xf32, #tpu.memory_space<vmem>>, %arg10: memref<8x8xf32, #tpu.memory_space<vmem>>, %arg11: memref<8x384xf32, #tpu.memory_space<vmem>>) attributes {dimension_semantics = [#tpu.dimension_semantics<parallel>], iteration_bounds = array<i64: 2>, scalar_prefetch = 0 : i64, scratch_operands = 0 : i64, tpu.core_type = #tpu.core_type<tc>, window_params = [{transform_indices = @transform_0, window_bounds = array<i64: 8, 24, 512>}, {pipeline_mode = #tpu.pipeline_mode<synchronous>, transform_indices = @transform_1, window_bounds = array<i64: 1, 512, 384>}, {pipeline_mode = #tpu.pipeline_mode<synchronous>, transform_indices = @transform_2, window_bounds = array<i64: 1, 384>}, {pipeline_mode = #tpu.pipeline_mode<synchronous>, transform_indices = @transform_3, window_bounds = array<i64: 24, 384>}, {pipeline_mode = #tpu.pipeline_mode<synchronous>, transform_indices = @transform_4, window_bounds = array<i64: 1, 384>}, {pipeline_mode = #tpu.pipeline_mode<synchronous>, transform_indices = @transform_5, window_bounds = array<i64: 1, 384>}, {pipeline_mode = #tpu.pipeline_mode<synchronous>, transform_indices = @transform_6, window_bounds = array<i64: 384, 384>}, {pipeline_mode = #tpu.pipeline_mode<synchronous>, transform_indices = @transform_7, window_bounds = array<i64: 384, 8>}, {pipeline_mode = #tpu.pipeline_mode<synchronous>, transform_indices = @transform_8, window_bounds = array<i64: 1, 8>}, {transform_indices = @transform_9, window_bounds = array<i64: 8, 8>}, {transform_indices = @transform_10, window_bounds = array<i64: 8, 384>}]} {
    %c0 = arith.constant 0 : index
    %c0_0 = arith.constant 0 : index
    %c0_1 = arith.constant 0 : index
    %0 = vector.load %arg1[%c0, %c0_0, %c0_1] : memref<8x24x512xf32, #tpu.memory_space<vmem>>, vector<8x24x512xf32>
    %1 = vector.shape_cast %0 : vector<8x24x512xf32> to vector<192x512xf32>
    %c0_2 = arith.constant 0 : index
    %c0_3 = arith.constant 0 : index
    %c0_4 = arith.constant 0 : index
    %2 = vector.load %arg2[%c0_2, %c0_3, %c0_4] : memref<1x512x384xf32, #tpu.memory_space<vmem>>, vector<1x512x384xf32>
    %3 = vector.shape_cast %2 : vector<1x512x384xf32> to vector<512x384xf32>
    %cst = arith.constant dense<0.000000e+00> : vector<192x384xf32>
    %4 = tpu.matmul %1, %3, %cst {dimension_numbers = #tpu.dot_dimension_numbers<[1], [0], [0], [1], [0, 0, 1, 1], [], []>} : vector<192x512xf32>, vector<512x384xf32>, vector<192x384xf32> -> vector<192x384xf32>
    %c0_5 = arith.constant 0 : index
    %c0_6 = arith.constant 0 : index
    %5 = vector.load %arg3[%c0_5, %c0_6] : memref<1x384xf32, #tpu.memory_space<vmem>>, vector<1x384xf32>
    %6 = vector.broadcast %5 : vector<1x384xf32> to vector<192x384xf32>
    %7 = arith.addf %4, %6 : vector<192x384xf32>
    %cst_7 = arith.constant 0.000000e+00 : f32
    %8 = vector.broadcast %cst_7 : f32 to vector<192x384xf32>
    %9 = arith.maximumf %7, %8 : vector<192x384xf32>
    %10 = vector.shape_cast %9 : vector<192x384xf32> to vector<8x24x384xf32>
    %c0_8 = arith.constant 0 : index
    %c0_9 = arith.constant 0 : index
    %11 = vector.load %arg4[%c0_8, %c0_9] : memref<24x384xf32, #tpu.memory_space<vmem>>, vector<24x384xf32>
    %12 = vector.shape_cast %11 : vector<24x384xf32> to vector<1x24x384xf32>
    %13 = vector.broadcast %12 : vector<1x24x384xf32> to vector<8x24x384xf32>
    %14 = arith.mulf %10, %13 : vector<8x24x384xf32>
    %cst_10 = arith.constant dense<0xFF800000> : vector<8x384xf32>
    %15 = vector.multi_reduction <maximumf>, %14, %cst_10 [1] : vector<8x24x384xf32> to vector<8x384xf32>
    %c0_11 = arith.constant 0 : index
    %c0_12 = arith.constant 0 : index
    %16 = vector.load %arg7[%c0_11, %c0_12] : memref<384x384xf32, #tpu.memory_space<vmem>>, vector<384x384xf32>
    %cst_13 = arith.constant dense<0.000000e+00> : vector<8x384xf32>
    %17 = tpu.matmul %15, %16, %cst_13 {dimension_numbers = #tpu.dot_dimension_numbers<[1], [0], [0], [1], [0, 0, 1, 1], [], []>} : vector<8x384xf32>, vector<384x384xf32>, vector<8x384xf32> -> vector<8x384xf32>
    %18 = arith.subf %15, %17 : vector<8x384xf32>
    %19 = arith.mulf %18, %18 : vector<8x384xf32>
    %c0_14 = arith.constant 0 : index
    %c0_15 = arith.constant 0 : index
    %20 = vector.load %arg7[%c0_14, %c0_15] : memref<384x384xf32, #tpu.memory_space<vmem>>, vector<384x384xf32>
    %cst_16 = arith.constant dense<0.000000e+00> : vector<8x384xf32>
    %21 = tpu.matmul %19, %20, %cst_16 {dimension_numbers = #tpu.dot_dimension_numbers<[1], [0], [0], [1], [0, 0, 1, 1], [], []>} : vector<8x384xf32>, vector<384x384xf32>, vector<8x384xf32> -> vector<8x384xf32>
    %cst_17 = arith.constant 9.99999974E-6 : f32
    %22 = vector.broadcast %cst_17 : f32 to vector<8x384xf32>
    %23 = arith.addf %21, %22 : vector<8x384xf32>
    %24 = math.rsqrt %23 : vector<8x384xf32>
    %25 = arith.mulf %18, %24 : vector<8x384xf32>
    %c0_18 = arith.constant 0 : index
    %c0_19 = arith.constant 0 : index
    %26 = vector.load %arg5[%c0_18, %c0_19] : memref<1x384xf32, #tpu.memory_space<vmem>>, vector<1x384xf32>
    %27 = vector.broadcast %26 : vector<1x384xf32> to vector<8x384xf32>
    %28 = arith.mulf %25, %27 : vector<8x384xf32>
    %c0_20 = arith.constant 0 : index
    %c0_21 = arith.constant 0 : index
    %29 = vector.load %arg6[%c0_20, %c0_21] : memref<1x384xf32, #tpu.memory_space<vmem>>, vector<1x384xf32>
    %30 = vector.broadcast %29 : vector<1x384xf32> to vector<8x384xf32>
    %31 = arith.addf %28, %30 : vector<8x384xf32>
    %c0_22 = arith.constant 0 : index
    %c0_23 = arith.constant 0 : index
    %32 = vector.load %arg11[%c0_22, %c0_23] : memref<8x384xf32, #tpu.memory_space<vmem>>, vector<8x384xf32>
    tpu.vector_store %arg11[%c0_22, %c0_23], %31 {strides = array<i32>} : memref<8x384xf32, #tpu.memory_space<vmem>>, vector<8x384xf32>,
    %c0_24 = arith.constant 0 : index
    %c0_25 = arith.constant 0 : index
    %33 = vector.load %arg8[%c0_24, %c0_25] : memref<384x8xf32, #tpu.memory_space<vmem>>, vector<384x8xf32>
    %cst_26 = arith.constant dense<0.000000e+00> : vector<8x8xf32>
    %34 = tpu.matmul %31, %33, %cst_26 {dimension_numbers = #tpu.dot_dimension_numbers<[1], [0], [0], [1], [0, 0, 1, 1], [], []>} : vector<8x384xf32>, vector<384x8xf32>, vector<8x8xf32> -> vector<8x8xf32>
    %c0_27 = arith.constant 0 : index
    %c0_28 = arith.constant 0 : index
    %35 = vector.load %arg9[%c0_27, %c0_28] : memref<1x8xf32, #tpu.memory_space<vmem>>, vector<1x8xf32>
    %36 = vector.broadcast %35 : vector<1x8xf32> to vector<8x8xf32>
    %37 = arith.addf %34, %36 : vector<8x8xf32>
    %c0_29 = arith.constant 0 : index
    %c0_30 = arith.constant 0 : index
    %38 = vector.load %arg10[%c0_29, %c0_30] : memref<8x8xf32, #tpu.memory_space<vmem>>, vector<8x8xf32>
    tpu.vector_store %arg10[%c0_29, %c0_30], %37 {strides = array<i32>} : memref<8x8xf32, #tpu.memory_space<vmem>>, vector<8x8xf32>,
    return
  }
  func.func @transform_0(%arg0: i32) -> (i32, i32, i32) {
    %c0_i32 = arith.constant 0 : i32
    %c0_i32_0 = arith.constant 0 : i32
    %c0_i32_1 = arith.constant 0 : i32
    return %arg0, %c0_i32, %c0_i32_0 : i32, i32, i32
  }
  func.func @transform_1(%arg0: i32) -> (i32, i32, i32) {
    %c0_i32 = arith.constant 0 : i32
    %c0_i32_0 = arith.constant 0 : i32
    %c0_i32_1 = arith.constant 0 : i32
    %c0_i32_2 = arith.constant 0 : i32
    return %c0_i32, %c0_i32_0, %c0_i32_1 : i32, i32, i32
  }
  func.func @transform_2(%arg0: i32) -> (i32, i32) {
    %c0_i32 = arith.constant 0 : i32
    %c0_i32_0 = arith.constant 0 : i32
    %c0_i32_1 = arith.constant 0 : i32
    return %c0_i32, %c0_i32_0 : i32, i32
  }
  func.func @transform_3(%arg0: i32) -> (i32, i32) {
    %c0_i32 = arith.constant 0 : i32
    %c0_i32_0 = arith.constant 0 : i32
    %c0_i32_1 = arith.constant 0 : i32
    return %c0_i32, %c0_i32_0 : i32, i32
  }
  func.func @transform_4(%arg0: i32) -> (i32, i32) {
    %c0_i32 = arith.constant 0 : i32
    %c0_i32_0 = arith.constant 0 : i32
    %c0_i32_1 = arith.constant 0 : i32
    return %c0_i32, %c0_i32_0 : i32, i32
  }
  func.func @transform_5(%arg0: i32) -> (i32, i32) {
    %c0_i32 = arith.constant 0 : i32
    %c0_i32_0 = arith.constant 0 : i32
    %c0_i32_1 = arith.constant 0 : i32
    return %c0_i32, %c0_i32_0 : i32, i32
  }
  func.func @transform_6(%arg0: i32) -> (i32, i32) {
    %c0_i32 = arith.constant 0 : i32
    %c0_i32_0 = arith.constant 0 : i32
    %c0_i32_1 = arith.constant 0 : i32
    return %c0_i32, %c0_i32_0 : i32, i32
  }
  func.func @transform_7(%arg0: i32) -> (i32, i32) {
    %c0_i32 = arith.constant 0 : i32
    %c0_i32_0 = arith.constant 0 : i32
    %c0_i32_1 = arith.constant 0 : i32
    return %c0_i32, %c0_i32_0 : i32, i32
  }
  func.func @transform_8(%arg0: i32) -> (i32, i32) {
    %c0_i32 = arith.constant 0 : i32
    %c0_i32_0 = arith.constant 0 : i32
    %c0_i32_1 = arith.constant 0 : i32
    return %c0_i32, %c0_i32_0 : i32, i32
  }
  func.func @transform_9(%arg0: i32) -> (i32, i32) {
    %c0_i32 = arith.constant 0 : i32
    %c0_i32_0 = arith.constant 0 : i32
    return %arg0, %c0_i32 : i32, i32
  }
  func.func @transform_10(%arg0: i32) -> (i32, i32) {
    %c0_i32 = arith.constant 0 : i32
    %c0_i32_0 = arith.constant 0 : i32
    return %arg0, %c0_i32 : i32, i32
  }
}

</mosaic_0001>

<llo_original>
// kernel: tpu_custom_call.1
$region0: #{tpu_custom_call.1}
  #allocation0 [shape = 'u32[]', space=smem, size = 0x4, offset = 0x4, fixed_abs, tag = 'smem constant byte address 0x4 - core index']
  #allocation1 [shape = 'u32[144,128]{1,0:T(1,128)}', space=vmem, size = 0x12000, scoped, tag = 'internal scratch']
  %s0 = inlined_call_operand.hbm [shape: f32[8,128], index: 0, kind: input, shape index: {}]
  %s1 = inlined_call_operand.hbm [shape: f32[8,128], index: 1, kind: output, shape index: {}]
  %s2 = sld [smem:[#allocation0]]
  $region18: #{tpu_custom_call.1} parent=0
    _
  %s4 = ssub.s32 1, %s2
  %s5 = scalar_select 0, %s4, %s2
  $region1: #{tpu_custom_call.1} parent=0
    #allocation2 [shape = 'u8[4096]{0}', space=vmem, size = 0x1000, scoped, tag = 'input window, operand 0, single buffered']
    #allocation3 [shape = 's32[1]{0}', space=sflag, size = 0x4, scoped, tag = 'scoped memory for tpu_custom_call.1']
    #allocation4 [shape = 's32[1]{0}', space=sflag, size = 0x4, scoped, tag = 'scoped memory for tpu_custom_call.1']
    #allocation5 [shape = 'u8[4096]{0}', space=vmem, size = 0x1000, scoped, tag = 'output window, operand 0, single buffered']
    %6 = vsyncpa [#allocation3], 0
    %7 = vsyncpa [#allocation4], 0
    // Predicated region
    $region2: #{tpu_custom_call.1} parent=1 // pred_check
      _
    $region3: #{tpu_custom_call.1} parent=1 // pred_check_branch
      %9 = sbr.rel (0) target = $region5
    $region4: #{tpu_custom_call.1} parent=1 // pred_region
      %s11 = ssub.s32 128, 128
      %12 = vsyncadd [#allocation3], %s11
      %s14 = sshll.u32 [#allocation2], 4
      %s15 = int_to_ptr.vmem [resolvable:$true] %s14
      %17 = dma.hbm_to_vmem [thread:$0]  %s0, 128, %s15, [#allocation3]
    $region5: #{tpu_custom_call.1} parent=1 // pred_fallthru
      _
    // Predicated region
    $region6: #{tpu_custom_call.1} parent=1 // pred_check
      _
    $region7: #{tpu_custom_call.1} parent=1 // pred_check_branch
      %19 = sbr.rel (0) target = $region9
    $region8: #{tpu_custom_call.1} parent=1 // pred_region
      %20 = dma.done [#allocation3], 128
    $region9: #{tpu_custom_call.1} parent=1 // pred_fallthru
      _
    %v21 = vld [vmem:[#allocation2] sm:$0xff]
    %v22 = vrot.slane %v21, 7
    %23 = vst [vmem:[#allocation5] sm:$0xff] %v22
    // Predicated region
    $region10: #{tpu_custom_call.1} parent=1 // pred_check
      _
    $region11: #{tpu_custom_call.1} parent=1 // pred_check_branch
      %25 = sbr.rel (0) target = $region13
    $region12: #{tpu_custom_call.1} parent=1 // pred_region
      %s27 = ssub.s32 128, 128
      %28 = vsyncadd [#allocation4], %s27
      %s30 = sshll.u32 [#allocation5], 4
      %s31 = int_to_ptr.vmem [resolvable:$true] %s30
      %33 = dma.vmem_to_hbm [thread:$0]  %s31, 128, %s1, [#allocation4]
    $region13: #{tpu_custom_call.1} parent=1 // pred_fallthru
      _
    // Predicated region
    $region14: #{tpu_custom_call.1} parent=1 // pred_check
      _
    $region15: #{tpu_custom_call.1} parent=1 // pred_check_branch
      %35 = sbr.rel (0) target = $region17
    $region16: #{tpu_custom_call.1} parent=1 // pred_region
      %36 = dma.done [#allocation4], 128
    $region17: #{tpu_custom_call.1} parent=1 // pred_fallthru
      _
    %37 = vsyncpa [#allocation3], 1
    %38 = vsyncpa [#allocation4], 1

// kernel: tpu_custom_call.1
$region0: #{tpu_custom_call.1}
  #allocation0 [shape = 'u32[]', space=smem, size = 0x4, offset = 0x4, fixed_abs, tag = 'smem constant byte address 0x4 - core index']
  #allocation1 [shape = 'u32[144,128]{1,0:T(1,128)}', space=vmem, size = 0x12000, scoped, tag = 'internal scratch']
  %s0 = inlined_call_operand.hbm [shape: f32[16,24,512], index: 0, kind: input, shape index: {}]
  %s1 = inlined_call_operand.hbm [shape: f32[1,512,384], index: 1, kind: input, shape index: {}]
  %s2 = inlined_call_operand.vmem [shape: f32[1,384], index: 2, kind: input, shape index: {}]
  %s3 = inlined_call_operand.vmem [shape: f32[24,384], index: 3, kind: input, shape index: {}]
  %s4 = inlined_call_operand.vmem [shape: f32[1,384], index: 4, kind: input, shape index: {}]
  %s5 = inlined_call_operand.vmem [shape: f32[1,384], index: 5, kind: input, shape index: {}]
  %s6 = inlined_call_operand.hbm [shape: f32[384,384], index: 6, kind: input, shape index: {}]
  %s7 = inlined_call_operand.vmem [shape: f32[384,8], index: 7, kind: input, shape index: {}]
  %s8 = inlined_call_operand.vmem [shape: f32[1,8], index: 8, kind: input, shape index: {}]
  %s9 = inlined_call_operand.vmem [shape: f32[16,8], index: 9, kind: output, shape index: {0}]
  %s10 = inlined_call_operand.hbm [shape: f32[16,384], index: 10, kind: output, shape index: {1}]
  %11 = xla_tuple %s9, %s10
  %s12 = sld [smem:[#allocation0]]
  $region89: #{tpu_custom_call.1} parent=0
    _
  %s14 = ssub.s32 1, %s12
  %s15 = scalar_select 0, %s14, %s12
  $region1: #{tpu_custom_call.1} parent=0
    #allocation2 [shape = 'u8[786432]{0}', space=vmem, size = 0xc0000, scoped, tag = 'input window, operand 0']
    #allocation3 [shape = 's32[2]{0}', space=sflag, size = 0x8, scoped, tag = 'scoped memory for tpu_custom_call.1']
    #allocation4 [shape = 's32[2]{0}', space=sflag, size = 0x8, scoped, tag = 'scoped memory for tpu_custom_call.1']
    #allocation5 [shape = 'u8[786432]{0}', space=vmem, size = 0xc0000, scoped, tag = 'input window, operand 1, single buffered']
    #allocation6 [shape = 's32[1]{0}', space=sflag, size = 0x4, scoped, tag = 'scoped memory for tpu_custom_call.1']
    #allocation7 [shape = 'u8[589824]{0}', space=vmem, size = 0x90000, scoped, tag = 'input window, operand 6, single buffered']
    #allocation8 [shape = 'u8[24576]{0}', space=vmem, size = 0x6000, scoped, tag = 'output window, operand 1']
    %16 = vsyncpa [#allocation3], 0
    %s17 = scalar_lea.sflag [#allocation3], 1
    %18 = vsyncpa %s17, 0
    %19 = vsyncpa [#allocation6], 0
    %20 = vsyncpa [#allocation4], 0
    %s21 = scalar_lea.sflag [#allocation4], 1
    %22 = vsyncpa %s21, 0
    loop: start=0, step=1, limit=4
    $region2: #{tpu_custom_call.1} parent=1 // loop_pre_header
      _
    $region3: #{tpu_custom_call.1} parent=1 // loop_header
      %s24 = sphi 0, %s28
      %p25 = scmp.ge.s32.totalorder %s24, 4
      %s34 = sphi 0, %s36
      %s37 = sphi 0, %s34
      %s38 = sphi 0, %s37
      %s54 = sphi 0, %s38
      %s58 = sphi 0, %s58
      %s60 = sphi 0, %s58
      %s61 = sphi 0, %s60
      %s75 = sphi 0, %s61
      %s79 = sphi 0, %s79
      %s81 = sphi 0, %s79
      %s82 = sphi 0, %s81
      %s96 = sphi 0, %s82
      %s100 = sphi 0, %s100
      %s102 = sphi 0, %s100
      %s103 = sphi 0, %s102
      %s117 = sphi 0, %s103
      %s121 = sphi 0, %s121
      %s123 = sphi 0, %s121
      %s124 = sphi 0, %s123
      %s138 = sphi 0, %s124
      %s142 = sphi 0, %s142
      %s144 = sphi 0, %s142
      %s145 = sphi 0, %s144
      %s159 = sphi 0, %s145
      %s163 = sphi 0, %s163
      %s165 = sphi 0, %s163
      %s166 = sphi 0, %s165
      %s180 = sphi 0, %s166
      %s184 = sphi 0, %s184
      %s186 = sphi 0, %s184
      %s187 = sphi 0, %s186
      %s201 = sphi 0, %s187
      %s205 = sphi 0, %s205
      %s207 = sphi 0, %s205
      %s208 = sphi 0, %s207
      %s222 = sphi 0, %s208
      %s228 = sphi 0, %s230
      %s231 = sphi 0, %s228
      %s232 = sphi 0, %s231
      %s248 = sphi 0, %s232
      %s254 = sphi 0, %s256
      %s257 = sphi 0, %s254
      %s258 = sphi 0, %s257
      %s274 = sphi 0, %s258
    $region4: #{tpu_custom_call.1} parent=1 // loop_header_branch
      %27 = sbr.rel (%p25) target = $region8
    $region5: #{tpu_custom_call.1} parent=1 // loop_body
      %s29 = ssub.s32 %s24, 1
      %s30 = ssub.s32 %s24, 2
      %s31 = sadd.s32 %s24, 1
      %s32 = ssub.s32 %s24, %s31
      %p33 = scmp.eq.s32.totalorder %s32, 0
      %s35 = sadd.s32 %s34, 1
      %s36 = scalar_select %p33, %s34, %s35
      %p39 = pneg %p33
      %p40 = scmp.eq.s32.totalorder %s24, 1
      %p41 = por %p39, %p40
      %p42 = scmp.ne.s32.totalorder %s34, %s37
      %p43 = scmp.eq.s32.totalorder %s24, 0
      %p44 = por %p42, %p43
      %p45 = scmp.ne.s32.totalorder %s34, %s37
      %p46 = scmp.eq.s32.totalorder %s29, 1
      %p47 = por %p45, %p46
      %p48 = scmp.ne.s32.totalorder %s37, %s38
      %p49 = scmp.eq.s32.totalorder %s29, 0
      %p50 = por %p48, %p49
      %p51 = scmp.ne.s32.totalorder %s37, %s38
      %p52 = scmp.eq.s32.totalorder %s30, 1
      %p53 = por %p51, %p52
      %p55 = scmp.ne.s32.totalorder %s38, %s54
      %p56 = scmp.eq.s32.totalorder %s30, 0
      %p57 = por %p55, %p56
      %s59 = sadd.s32 %s58, 1
      %p62 = scmp.eq.s32.totalorder %s24, 1
      %p63 = scmp.ne.s32.totalorder %s58, %s60
      %p64 = scmp.eq.s32.totalorder %s24, 0
      %p65 = por %p63, %p64
      %p66 = scmp.ne.s32.totalorder %s58, %s60
      %p67 = scmp.eq.s32.totalorder %s29, 1
      %p68 = por %p66, %p67
      %p69 = scmp.ne.s32.totalorder %s60, %s61
      %p70 = scmp.eq.s32.totalorder %s29, 0
      %p71 = por %p69, %p70
      %p72 = scmp.ne.s32.totalorder %s60, %s61
      %p73 = scmp.eq.s32.totalorder %s30, 1
      %p74 = por %p72, %p73
      %p76 = scmp.ne.s32.totalorder %s61, %s75
      %p77 = scmp.eq.s32.totalorder %s30, 0
      %p78 = por %p76, %p77
      %s80 = sadd.s32 %s79, 1
      %p83 = scmp.eq.s32.totalorder %s24, 1
      %p84 = scmp.ne.s32.totalorder %s79, %s81
      %p85 = scmp.eq.s32.totalorder %s24, 0
      %p86 = por %p84, %p85
      %p87 = scmp.ne.s32.totalorder %s79, %s81
      %p88 = scmp.eq.s32.totalorder %s29, 1
      %p89 = por %p87, %p88
      %p90 = scmp.ne.s32.totalorder %s81, %s82
      %p91 = scmp.eq.s32.totalorder %s29, 0
      %p92 = por %p90, %p91
      %p93 = scmp.ne.s32.totalorder %s81, %s82
      %p94 = scmp.eq.s32.totalorder %s30, 1
      %p95 = por %p93, %p94
      %p97 = scmp.ne.s32.totalorder %s82, %s96
      %p98 = scmp.eq.s32.totalorder %s30, 0
      %p99 = por %p97, %p98
      %s101 = sadd.s32 %s100, 1
      %p104 = scmp.eq.s32.totalorder %s24, 1
      %p105 = scmp.ne.s32.totalorder %s100, %s102
      %p106 = scmp.eq.s32.totalorder %s24, 0
      %p107 = por %p105, %p106
      %p108 = scmp.ne.s32.totalorder %s100, %s102
      %p109 = scmp.eq.s32.totalorder %s29, 1
      %p110 = por %p108, %p109
      %p111 = scmp.ne.s32.totalorder %s102, %s103
      %p112 = scmp.eq.s32.totalorder %s29, 0
      %p113 = por %p111, %p112
      %p114 = scmp.ne.s32.totalorder %s102, %s103
      %p115 = scmp.eq.s32.totalorder %s30, 1
      %p116 = por %p114, %p115
      %p118 = scmp.ne.s32.totalorder %s103, %s117
      %p119 = scmp.eq.s32.totalorder %s30, 0
      %p120 = por %p118, %p119
      %s122 = sadd.s32 %s121, 1
      %p125 = scmp.eq.s32.totalorder %s24, 1
      %p126 = scmp.ne.s32.totalorder %s121, %s123
      %p127 = scmp.eq.s32.totalorder %s24, 0
      %p128 = por %p126, %p127
      %p129 = scmp.ne.s32.totalorder %s121, %s123
      %p130 = scmp.eq.s32.totalorder %s29, 1
      %p131 = por %p129, %p130
      %p132 = scmp.ne.s32.totalorder %s123, %s124
      %p133 = scmp.eq.s32.totalorder %s29, 0
      %p134 = por %p132, %p133
      %p135 = scmp.ne.s32.totalorder %s123, %s124
      %p136 = scmp.eq.s32.totalorder %s30, 1
      %p137 = por %p135, %p136
      %p139 = scmp.ne.s32.totalorder %s124, %s138
      %p140 = scmp.eq.s32.totalorder %s30, 0
      %p141 = por %p139, %p140
      %s143 = sadd.s32 %s142, 1
      %p146 = scmp.eq.s32.totalorder %s24, 1
      %p147 = scmp.ne.s32.totalorder %s142, %s144
      %p148 = scmp.eq.s32.totalorder %s24, 0
      %p149 = por %p147, %p148
      %p150 = scmp.ne.s32.totalorder %s142, %s144
      %p151 = scmp.eq.s32.totalorder %s29, 1
      %p152 = por %p150, %p151
      %p153 = scmp.ne.s32.totalorder %s144, %s145
      %p154 = scmp.eq.s32.totalorder %s29, 0
      %p155 = por %p153, %p154
      %p156 = scmp.ne.s32.totalorder %s144, %s145
      %p157 = scmp.eq.s32.totalorder %s30, 1
      %p158 = por %p156, %p157
      %p160 = scmp.ne.s32.totalorder %s145, %s159
      %p161 = scmp.eq.s32.totalorder %s30, 0
      %p162 = por %p160, %p161
      %s164 = sadd.s32 %s163, 1
      %p167 = scmp.eq.s32.totalorder %s24, 1
      %p168 = scmp.ne.s32.totalorder %s163, %s165
      %p169 = scmp.eq.s32.totalorder %s24, 0
      %p170 = por %p168, %p169
      %p171 = scmp.ne.s32.totalorder %s163, %s165
      %p172 = scmp.eq.s32.totalorder %s29, 1
      %p173 = por %p171, %p172
      %p174 = scmp.ne.s32.totalorder %s165, %s166
      %p175 = scmp.eq.s32.totalorder %s29, 0
      %p176 = por %p174, %p175
      %p177 = scmp.ne.s32.totalorder %s165, %s166
      %p178 = scmp.eq.s32.totalorder %s30, 1
      %p179 = por %p177, %p178
      %p181 = scmp.ne.s32.totalorder %s166, %s180
      %p182 = scmp.eq.s32.totalorder %s30, 0
      %p183 = por %p181, %p182
      %s185 = sadd.s32 %s184, 1
      %p188 = scmp.eq.s32.totalorder %s24, 1
      %p189 = scmp.ne.s32.totalorder %s184, %s186
      %p190 = scmp.eq.s32.totalorder %s24, 0
      %p191 = por %p189, %p190
      %p192 = scmp.ne.s32.totalorder %s184, %s186
      %p193 = scmp.eq.s32.totalorder %s29, 1
      %p194 = por %p192, %p193
      %p195 = scmp.ne.s32.totalorder %s186, %s187
      %p196 = scmp.eq.s32.totalorder %s29, 0
      %p197 = por %p195, %p196
      %p198 = scmp.ne.s32.totalorder %s186, %s187
      %p199 = scmp.eq.s32.totalorder %s30, 1
      %p200 = por %p198, %p199
      %p202 = scmp.ne.s32.totalorder %s187, %s201
      %p203 = scmp.eq.s32.totalorder %s30, 0
      %p204 = por %p202, %p203
      %s206 = sadd.s32 %s205, 1
      %p209 = scmp.eq.s32.totalorder %s24, 1
      %p210 = scmp.ne.s32.totalorder %s205, %s207
      %p211 = scmp.eq.s32.totalorder %s24, 0
      %p212 = por %p210, %p211
      %p213 = scmp.ne.s32.totalorder %s205, %s207
      %p214 = scmp.eq.s32.totalorder %s29, 1
      %p215 = por %p213, %p214
      %p216 = scmp.ne.s32.totalorder %s207, %s208
      %p217 = scmp.eq.s32.totalorder %s29, 0
      %p218 = por %p216, %p217
      %p219 = scmp.ne.s32.totalorder %s207, %s208
      %p220 = scmp.eq.s32.totalorder %s30, 1
      %p221 = por %p219, %p220
      %p223 = scmp.ne.s32.totalorder %s208, %s222
      %p224 = scmp.eq.s32.totalorder %s30, 0
      %p225 = por %p223, %p224
      %s226 = ssub.s32 %s24, %s31
      %p227 = scmp.eq.s32.totalorder %s226, 0
      %s229 = sadd.s32 %s228, 1
      %s230 = scalar_select %p227, %s228, %s229
      %p233 = pneg %p227
      %p234 = scmp.eq.s32.totalorder %s24, 1
      %p235 = por %p233, %p234
      %p236 = scmp.ne.s32.totalorder %s228, %s231
      %p237 = scmp.eq.s32.totalorder %s24, 0
      %p238 = por %p236, %p237
      %p239 = scmp.ne.s32.totalorder %s228, %s231
      %p240 = scmp.eq.s32.totalorder %s29, 1
      %p241 = por %p239, %p240
      %p242 = scmp.ne.s32.totalorder %s231, %s232
      %p243 = scmp.eq.s32.totalorder %s29, 0
      %p244 = por %p242, %p243
      %p245 = scmp.ne.s32.totalorder %s231, %s232
      %p246 = scmp.eq.s32.totalorder %s30, 1
      %p247 = por %p245, %p246
      %p249 = scmp.ne.s32.totalorder %s232, %s248
      %p250 = scmp.eq.s32.totalorder %s30, 0
      %p251 = por %p249, %p250
      %s252 = ssub.s32 %s24, %s31
      %p253 = scmp.eq.s32.totalorder %s252, 0
      %s255 = sadd.s32 %s254, 1
      %s256 = scalar_select %p253, %s254, %s255
      %p259 = pneg %p253
      %p260 = scmp.eq.s32.totalorder %s24, 1
      %p261 = por %p259, %p260
      %p262 = scmp.ne.s32.totalorder %s254, %s257
      %p263 = scmp.eq.s32.totalorder %s24, 0
      %p264 = por %p262, %p263
      %p265 = scmp.ne.s32.totalorder %s254, %s257
      %p266 = scmp.eq.s32.totalorder %s29, 1
      %p267 = por %p265, %p266
      %p268 = scmp.ne.s32.totalorder %s257, %s258
      %p269 = scmp.eq.s32.totalorder %s29, 0
      %p270 = por %p268, %p269
      %p271 = scmp.ne.s32.totalorder %s257, %s258
      %p272 = scmp.eq.s32.totalorder %s30, 1
      %p273 = por %p271, %p272
      %p275 = scmp.ne.s32.totalorder %s258, %s274
      %p276 = scmp.eq.s32.totalorder %s30, 0
      %p277 = por %p275, %p276
      %p278 = scmp.le.s32.totalorder 1, %s24
      %p279 = scmp.lt.s32.totalorder %s24, 3
      %p280 = pnand %p278, %p279
      %p281 = pneg %p280
      // Predicated region
      $region9: #{tpu_custom_call.1} parent=5 // pred_check
        _
      $region10: #{tpu_custom_call.1} parent=5 // pred_check_branch
        %283 = sbr.rel (%p280) target = $region12
      $region11: #{tpu_custom_call.1} parent=5 // pred_region
        %s284 = ssub.s32 %s24, 1
        // Predicated region
        $region13: #{tpu_custom_call.1} parent=11 // pred_check
          %p285 = pneg %p71
        $region14: #{tpu_custom_call.1} parent=11 // pred_check_branch
          %287 = sbr.rel (%p285) target = $region16
        $region15: #{tpu_custom_call.1} parent=11 // pred_region
          %s289 = ssub.s32 24576, 24576
          %290 = vsyncadd [#allocation6], %s289
          %s291 = sshll.u32 [#allocation5], 4
          %s292 = int_to_ptr.vmem [resolvable:$true] %s291
          %297 = dma.hbm_to_vmem [thread:$0]  %s1, 24576, %s292, [#allocation6], 384, 384, 24
        $region16: #{tpu_custom_call.1} parent=11 // pred_fallthru
          _
        // Predicated region
        $region17: #{tpu_custom_call.1} parent=11 // pred_check
          %p298 = pneg %p92
        $region18: #{tpu_custom_call.1} parent=11 // pred_check_branch
          %300 = sbr.rel (%p298) target = $region20
        $region19: #{tpu_custom_call.1} parent=11 // pred_region
          _
        $region20: #{tpu_custom_call.1} parent=11 // pred_fallthru
          _
        // Predicated region
        $region21: #{tpu_custom_call.1} parent=11 // pred_check
          %p301 = pneg %p113
        $region22: #{tpu_custom_call.1} parent=11 // pred_check_branch
          %303 = sbr.rel (%p301) target = $region24
        $region23: #{tpu_custom_call.1} parent=11 // pred_region
          _
        $region24: #{tpu_custom_call.1} parent=11 // pred_fallthru
          _
        // Predicated region
        $region25: #{tpu_custom_call.1} parent=11 // pred_check
          %p304 = pneg %p134
        $region26: #{tpu_custom_call.1} parent=11 // pred_check_branch
          %306 = sbr.rel (%p304) target = $region28
        $region27: #{tpu_custom_call.1} parent=11 // pred_region
          _
        $region28: #{tpu_custom_call.1} parent=11 // pred_fallthru
          _
        // Predicated region
        $region29: #{tpu_custom_call.1} parent=11 // pred_check
          %p307 = pneg %p155
        $region30: #{tpu_custom_call.1} parent=11 // pred_check_branch
          %309 = sbr.rel (%p307) target = $region32
        $region31: #{tpu_custom_call.1} parent=11 // pred_region
          _
        $region32: #{tpu_custom_call.1} parent=11 // pred_fallthru
          _
        // Predicated region
        $region33: #{tpu_custom_call.1} parent=11 // pred_check
          %p310 = pneg %p176
        $region34: #{tpu_custom_call.1} parent=11 // pred_check_branch
          %312 = sbr.rel (%p310) target = $region36
        $region35: #{tpu_custom_call.1} parent=11 // pred_region
          %s314 = ssub.s32 18432, 18432
          %315 = vsyncadd [#allocation6], %s314
          %s316 = sshll.u32 [#allocation7], 4
          %s317 = int_to_ptr.vmem [resolvable:$true] %s316
          %322 = dma.hbm_to_vmem [thread:$0]  %s6, 18432, %s317, [#allocation6], 384, 384, 24
        $region36: #{tpu_custom_call.1} parent=11 // pred_fallthru
          _
        // Predicated region
        $region37: #{tpu_custom_call.1} parent=11 // pred_check
          %p323 = pneg %p197
        $region38: #{tpu_custom_call.1} parent=11 // pred_check_branch
          %325 = sbr.rel (%p323) target = $region40
        $region39: #{tpu_custom_call.1} parent=11 // pred_region
          _
        $region40: #{tpu_custom_call.1} parent=11 // pred_fallthru
          _
        // Predicated region
        $region41: #{tpu_custom_call.1} parent=11 // pred_check
          %p326 = pneg %p218
        $region42: #{tpu_custom_call.1} parent=11 // pred_check_branch
          %328 = sbr.rel (%p326) target = $region44
        $region43: #{tpu_custom_call.1} parent=11 // pred_region
          _
        $region44: #{tpu_custom_call.1} parent=11 // pred_fallthru
          _
      $region12: #{tpu_custom_call.1} parent=5 // pred_fallthru
        _
      %p329 = scmp.lt.s32.totalorder %s24, 2
      // Predicated region
      $region45: #{tpu_custom_call.1} parent=5 // pred_check
        %p330 = pneg %p329
      $region46: #{tpu_custom_call.1} parent=5 // pred_check_branch
        %332 = sbr.rel (%p330) target = $region48
      $region47: #{tpu_custom_call.1} parent=5 // pred_region
        // Predicated region
        $region49: #{tpu_custom_call.1} parent=47 // pred_check
          %p333 = pneg %p44
        $region50: #{tpu_custom_call.1} parent=47 // pred_check_branch
          %335 = sbr.rel (%p333) target = $region52
        $region51: #{tpu_custom_call.1} parent=47 // pred_region
          %s336 = sand.u32 %s34, 1
          %s337 = scalar_lea.sflag [#allocation3], %s336
          %s338 = sand.u32 %s34, 1
          %s339 = smul.addr %s338, 768
          %s340 = scalar_lea.vmem [#allocation2], %s339
          %s341 = smul.u32 8, %s24
          %s343 = ssub.s32 12288, 12288
          %344 = vsyncadd %s337, %s343
          %s345 = smul.addr %s341, 12
          %s346 = smul.addr %s345, 128
          %s347 = scalar_lea.hbm %s0, %s346
          %s348 = sshll.u32 %s340, 4
          %s349 = int_to_ptr.vmem [resolvable:$true] %s348
          %354 = dma.hbm_to_vmem [thread:$0]  %s347, 12288, %s349, %s337, 512, 512, 32
        $region52: #{tpu_custom_call.1} parent=47 // pred_fallthru
          _
      $region48: #{tpu_custom_call.1} parent=5 // pred_fallthru
        _
      %p355 = scmp.le.s32.totalorder 1, %s24
      %p356 = scmp.lt.s32.totalorder %s24, 3
      %p357 = pnand %p355, %p356
      %p358 = pneg %p357
      // Predicated region
      $region53: #{tpu_custom_call.1} parent=5 // pred_check
        _
      $region54: #{tpu_custom_call.1} parent=5 // pred_check_branch
        %360 = sbr.rel (%p357) target = $region56
      $region55: #{tpu_custom_call.1} parent=5 // pred_region
        %s361 = ssub.s32 %s24, 1
        %s362 = sand.u32 %s37, 1
        %s363 = scalar_lea.sflag [#allocation3], %s362
        %s364 = sand.u32 %s37, 1
        %s365 = smul.addr %s364, 768
        %s366 = scalar_lea.vmem [#allocation2], %s365
        // Predicated region
        $region57: #{tpu_custom_call.1} parent=55 // pred_check
          %p367 = pneg %p50
        $region58: #{tpu_custom_call.1} parent=55 // pred_check_branch
          %369 = sbr.rel (%p367) target = $region60
        $region59: #{tpu_custom_call.1} parent=55 // pred_region
          %370 = dma.done %s363, 12288
        $region60: #{tpu_custom_call.1} parent=55 // pred_fallthru
          _
        // Predicated region
        $region61: #{tpu_custom_call.1} parent=55 // pred_check
          %p371 = pneg %p71
        $region62: #{tpu_custom_call.1} parent=55 // pred_check_branch
          %373 = sbr.rel (%p371) target = $region64
        $region63: #{tpu_custom_call.1} parent=55 // pred_region
          %374 = dma.done [#allocation6], 24576
        $region64: #{tpu_custom_call.1} parent=55 // pred_fallthru
          _
        // Predicated region
        $region65: #{tpu_custom_call.1} parent=55 // pred_check
          %p375 = pneg %p176
        $region66: #{tpu_custom_call.1} parent=55 // pred_check_branch
          %377 = sbr.rel (%p375) target = $region68
        $region67: #{tpu_custom_call.1} parent=55 // pred_region
          %378 = dma.done [#allocation6], 18432
        $region68: #{tpu_custom_call.1} parent=55 // pred_fallthru
          _
        %s379 = sand.u32 %s37, 1
        %s380 = scalar_lea.sflag [#allocation3], %s379
        %s381 = sand.u32 %s37, 1
        %s382 = smul.addr %s381, 768
        %s383 = scalar_lea.vmem [#allocation2], %s382
        %p384 = pneg %p50
        %p385 = pneg %p47
        %p386 = pneg %p71
        %p387 = pneg %p68
        %p388 = pneg %p92
        %p389 = pneg %p89
        %p390 = pneg %p113
        %p391 = pneg %p110
        %p392 = pneg %p134
        %p393 = pneg %p131
        %p394 = pneg %p155
        %p395 = pneg %p152
        %p396 = pneg %p176
        %p397 = pneg %p173
        %p398 = pneg %p197
        %p399 = pneg %p194
        %p400 = pneg %p218
        %p401 = pneg %p215
        %p402 = pneg %p244
        %p403 = pneg %p241
        %p404 = scmp.lt.s32.totalorder %s29, 1
        %s405 = scalar_select %p404, %s29, 1
        %s406 = smul.addr %s405, 8
        %s407 = scalar_lea.vmem %s9, %s406
        %p408 = pneg %p270
        %p409 = pneg %p267
        %s410 = sand.u32 %s257, 1
        %s411 = scalar_lea.sflag [#allocation4], %s410
        %s412 = sand.u32 %s257, 1
        %s413 = smul.addr %s412, 24
        %s414 = scalar_lea.vmem [#allocation8], %s413
        %s415 = smul.u32 8, %s29
        %p416 = scmp.lt.s32.totalorder %s29, 1
        %s417 = scalar_select %p416, %s29, 1
        %s418 = smul.addr %s417, 8
        %s419 = scalar_lea.vmem %s9, %s418
        %v420 = vld [vmem:[%s366] sm:$0xff]
        %v421 = vld [vmem:[%s366 + $0x8] sm:$0xff]
        %v422 = vld [vmem:[%s366 + $0x10] sm:$0xff]
        %v423 = vld [vmem:[%s366 + $0x18] sm:$0xff]
        %v424 = vld [vmem:[%s366 + $0x20] sm:$0xff]
        %v425 = vld [vmem:[%s366 + $0x28] sm:$0xff]
        %v426 = vld [vmem:[%s366 + $0x30] sm:$0xff]
        %v427 = vld [vmem:[%s366 + $0x38] sm:$0xff]
        %v428 = vld [vmem:[%s366 + $0x40] sm:$0xff]
        %v429 = vld [vmem:[%s366 + $0x48] sm:$0xff]
        %v430 = vld [vmem:[%s366 + $0x50] sm:$0xff]
        %v431 = vld [vmem:[%s366 + $0x58] sm:$0xff]
        %v432 = vld [vmem:[%s366 + $0x60] sm:$0xff]
        %v433 = vld [vmem:[%s366 + $0x68] sm:$0xff]
        %v434 = vld [vmem:[%s366 + $0x70] sm:$0xff]
        %v435 = vld [vmem:[%s366 + $0x78] sm:$0xff]
        %v436 = vld [vmem:[%s366 + $0x80] sm:$0xff]
        %v437 = vld [vmem:[%s366 + $0x88] sm:$0xff]
        %v438 = vld [vmem:[%s366 + $0x90] sm:$0xff]
        %v439 = vld [vmem:[%s366 + $0x98] sm:$0xff]
        %v440 = vld [vmem:[%s366 + $0xa0] sm:$0xff]
        %v441 = vld [vmem:[%s366 + $0xa8] sm:$0xff]
        %v442 = vld [vmem:[%s366 + $0xb0] sm:$0xff]
        %v443 = vld [vmem:[%s366 + $0xb8] sm:$0xff]
        %v444 = vld [vmem:[%s366 + $0xc0] sm:$0xff]
        %v445 = vld [vmem:[%s366 + $0xc8] sm:$0xff]
        %v446 = vld [vmem:[%s366 + $0xd0] sm:$0xff]
        %v447 = vld [vmem:[%s366 + $0xd8] sm:$0xff]
        %v448 = vld [vmem:[%s366 + $0xe0] sm:$0xff]
        %v449 = vld [vmem:[%s366 + $0xe8] sm:$0xff]
        %v450 = vld [vmem:[%s366 + $0xf0] sm:$0xff]
        %v451 = vld [vmem:[%s366 + $0xf8] sm:$0xff]
        %v452 = vld [vmem:[%s366 + $0x100] sm:$0xff]
        %v453 = vld [vmem:[%s366 + $0x108] sm:$0xff]
        %v454 = vld [vmem:[%s366 + $0x110] sm:$0xff]
        %v455 = vld [vmem:[%s366 + $0x118] sm:$0xff]
        %v456 = vld [vmem:[%s366 + $0x120] sm:$0xff]
        %v457 = vld [vmem:[%s366 + $0x128] sm:$0xff]
        %v458 = vld [vmem:[%s366 + $0x130] sm:$0xff]
        %v459 = vld [vmem:[%s366 + $0x138] sm:$0xff]
        %v460 = vld [vmem:[%s366 + $0x140] sm:$0xff]
        %v461 = vld [vmem:[%s366 + $0x148] sm:$0xff]
        %v462 = vld [vmem:[%s366 + $0x150] sm:$0xff]
        %v463 = vld [vmem:[%s366 + $0x158] sm:$0xff]
        %v464 = vld [vmem:[%s366 + $0x160] sm:$0xff]
        %v465 = vld [vmem:[%s366 + $0x168] sm:$0xff]
        %v466 = vld [vmem:[%s366 + $0x170] sm:$0xff]
        %v467 = vld [vmem:[%s366 + $0x178] sm:$0xff]
        %v468 = vld [vmem:[%s366 + $0x180] sm:$0xff]
        %v469 = vld [vmem:[%s366 + $0x188] sm:$0xff]
        %v470 = vld [vmem:[%s366 + $0x190] sm:$0xff]
        %v471 = vld [vmem:[%s366 + $0x198] sm:$0xff]
        %v472 = vld [vmem:[%s366 + $0x1a0] sm:$0xff]
        %v473 = vld [vmem:[%s366 + $0x1a8] sm:$0xff]
        %v474 = vld [vmem:[%s366 + $0x1b0] sm:$0xff]
        %v475 = vld [vmem:[%s366 + $0x1b8] sm:$0xff]
        %v476 = vld [vmem:[%s366 + $0x1c0] sm:$0xff]
        %v477 = vld [vmem:[%s366 + $0x1c8] sm:$0xff]
        %v478 = vld [vmem:[%s366 + $0x1d0] sm:$0xff]
        %v479 = vld [vmem:[%s366 + $0x1d8] sm:$0xff]
        %v480 = vld [vmem:[%s366 + $0x1e0] sm:$0xff]
        %v481 = vld [vmem:[%s366 + $0x1e8] sm:$0xff]
        %v482 = vld [vmem:[%s366 + $0x1f0] sm:$0xff]
        %v483 = vld [vmem:[%s366 + $0x1f8] sm:$0xff]
        %v484 = vld [vmem:[%s366 + $0x200] sm:$0xff]
        %v485 = vld [vmem:[%s366 + $0x208] sm:$0xff]
        %v486 = vld [vmem:[%s366 + $0x210] sm:$0xff]
        %v487 = vld [vmem:[%s366 + $0x218] sm:$0xff]
        %v488 = vld [vmem:[%s366 + $0x220] sm:$0xff]
        %v489 = vld [vmem:[%s366 + $0x228] sm:$0xff]
        %v490 = vld [vmem:[%s366 + $0x230] sm:$0xff]
        %v491 = vld [vmem:[%s366 + $0x238] sm:$0xff]
        %v492 = vld [vmem:[%s366 + $0x240] sm:$0xff]
        %v493 = vld [vmem:[%s366 + $0x248] sm:$0xff]
        %v494 = vld [vmem:[%s366 + $0x250] sm:$0xff]
        %v495 = vld [vmem:[%s366 + $0x258] sm:$0xff]
        %v496 = vld [vmem:[%s366 + $0x260] sm:$0xff]
        %v497 = vld [vmem:[%s366 + $0x268] sm:$0xff]
        %v498 = vld [vmem:[%s366 + $0x270] sm:$0xff]
        %v499 = vld [vmem:[%s366 + $0x278] sm:$0xff]
        %v500 = vld [vmem:[%s366 + $0x280] sm:$0xff]
        %v501 = vld [vmem:[%s366 + $0x288] sm:$0xff]
        %v502 = vld [vmem:[%s366 + $0x290] sm:$0xff]
        %v503 = vld [vmem:[%s366 + $0x298] sm:$0xff]
        %v504 = vld [vmem:[%s366 + $0x2a0] sm:$0xff]
        %v505 = vld [vmem:[%s366 + $0x2a8] sm:$0xff]
        %v506 = vld [vmem:[%s366 + $0x2b0] sm:$0xff]
        %v507 = vld [vmem:[%s366 + $0x2b8] sm:$0xff]
        %v508 = vld [vmem:[%s366 + $0x2c0] sm:$0xff]
        %v509 = vld [vmem:[%s366 + $0x2c8] sm:$0xff]
        %v510 = vld [vmem:[%s366 + $0x2d0] sm:$0xff]
        %v511 = vld [vmem:[%s366 + $0x2d8] sm:$0xff]
        %v512 = vld [vmem:[%s366 + $0x2e0] sm:$0xff]
        %v513 = vld [vmem:[%s366 + $0x2e8] sm:$0xff]
        %v514 = vld [vmem:[%s366 + $0x2f0] sm:$0xff]
        %v515 = vld [vmem:[%s366 + $0x2f8] sm:$0xff]
        %v516 = vld [vmem:[#allocation5] sm:$0xff]
        %v517 = vld [vmem:[#allocation5 + $0x8] sm:$0xff]
        %v518 = vld [vmem:[#allocation5 + $0x10] sm:$0xff]
        %v519 = vld [vmem:[#allocation5 + $0x18] sm:$0xff]
        %v520 = vld [vmem:[#allocation5 + $0x20] sm:$0xff]
        %v521 = vld [vmem:[#allocation5 + $0x28] sm:$0xff]
        %v522 = vld [vmem:[#allocation5 + $0x30] sm:$0xff]
        %v523 = vld [vmem:[#allocation5 + $0x38] sm:$0xff]
        %v524 = vld [vmem:[#allocation5 + $0x40] sm:$0xff]
        %v525 = vld [vmem:[#allocation5 + $0x48] sm:$0xff]
        %v526 = vld [vmem:[#allocation5 + $0x50] sm:$0xff]
        %v527 = vld [vmem:[#allocation5 + $0x58] sm:$0xff]
        %v528 = vld [vmem:[#allocation5 + $0x60] sm:$0xff]
        %v529 = vld [vmem:[#allocation5 + $0x68] sm:$0xff]
        %v530 = vld [vmem:[#allocation5 + $0x70] sm:$0xff]
        %v531 = vld [vmem:[#allocation5 + $0x78] sm:$0xff]
        %v532 = vld [vmem:[#allocation5 + $0x80] sm:$0xff]
        %v533 = vld [vmem:[#allocation5 + $0x88] sm:$0xff]
        %v534 = vld [vmem:[#allocation5 + $0x90] sm:$0xff]
        %v535 = vld [vmem:[#allocation5 + $0x98] sm:$0xff]
        %v536 = vld [vmem:[#allocation5 + $0xa0] sm:$0xff]
        %v537 = vld [vmem:[#allocation5 + $0xa8] sm:$0xff]
        %v538 = vld [vmem:[#allocation5 + $0xb0] sm:$0xff]
        %v539 = vld [vmem:[#allocation5 + $0xb8] sm:$0xff]
        %v540 = vld [vmem:[#allocation5 + $0xc0] sm:$0xff]
        %v541 = vld [vmem:[#allocation5 + $0xc8] sm:$0xff]
        %v542 = vld [vmem:[#allocation5 + $0xd0] sm:$0xff]
        %v543 = vld [vmem:[#allocation5 + $0xd8] sm:$0xff]
        %v544 = vld [vmem:[#allocation5 + $0xe0] sm:$0xff]
        %v545 = vld [vmem:[#allocation5 + $0xe8] sm:$0xff]
        %v546 = vld [vmem:[#allocation5 + $0xf0] sm:$0xff]
        %v547 = vld [vmem:[#allocation5 + $0xf8] sm:$0xff]
        %v548 = vld [vmem:[#allocation5 + $0x100] sm:$0xff]
        %v549 = vld [vmem:[#allocation5 + $0x108] sm:$0xff]
        %v550 = vld [vmem:[#allocation5 + $0x110] sm:$0xff]
        %v551 = vld [vmem:[#allocation5 + $0x118] sm:$0xff]
        %v552 = vld [vmem:[#allocation5 + $0x120] sm:$0xff]
        %v553 = vld [vmem:[#allocation5 + $0x128] sm:$0xff]
        %v554 = vld [vmem:[#allocation5 + $0x130] sm:$0xff]
        %v555 = vld [vmem:[#allocation5 + $0x138] sm:$0xff]
        %v556 = vld [vmem:[#allocation5 + $0x140] sm:$0xff]
        %v557 = vld [vmem:[#allocation5 + $0x148] sm:$0xff]
        %v558 = vld [vmem:[#allocation5 + $0x150] sm:$0xff]
        %v559 = vld [vmem:[#allocation5 + $0x158] sm:$0xff]
        %v560 = vld [vmem:[#allocation5 + $0x160] sm:$0xff]
        %v561 = vld [vmem:[#allocation5 + $0x168] sm:$0xff]
        %v562 = vld [vmem:[#allocation5 + $0x170] sm:$0xff]
        %v563 = vld [vmem:[#allocation5 + $0x178] sm:$0xff]
        %v564 = vld [vmem:[#allocation5 + $0x180] sm:$0xff]
        %v565 = vld [vmem:[#allocation5 + $0x188] sm:$0xff]
        %v566 = vld [vmem:[#allocation5 + $0x190] sm:$0xff]
        %v567 = vld [vmem:[#allocation5 + $0x198] sm:$0xff]
        %v568 = vld [vmem:[#allocation5 + $0x1a0] sm:$0xff]
        %v569 = vld [vmem:[#allocation5 + $0x1a8] sm:$0xff]
        %v570 = vld [vmem:[#allocation5 + $0x1b0] sm:$0xff]
        %v571 = vld [vmem:[#allocation5 + $0x1b8] sm:$0xff]
        %v572 = vld [vmem:[#allocation5 + $0x1c0] sm:$0xff]
        %v573 = vld [vmem:[#allocation5 + $0x1c8] sm:$0xff]
        %v574 = vld [vmem:[#allocation5 + $0x1d0] sm:$0xff]
        %v575 = vld [vmem:[#allocation5 + $0x1d8] sm:$0xff]
        %v576 = vld [vmem:[#allocation5 + $0x1e0] sm:$0xff]
        %v577 = vld [vmem:[#allocation5 + $0x1e8] sm:$0xff]
        %v578 = vld [vmem:[#allocation5 + $0x1f0] sm:$0xff]
        %v579 = vld [vmem:[#allocation5 + $0x1f8] sm:$0xff]
        %v580 = vld [vmem:[#allocation5 + $0x200] sm:$0xff]
        %v581 = vld [vmem:[#allocation5 + $0x208] sm:$0xff]
        %v582 = vld [vmem:[#allocation5 + $0x210] sm:$0xff]
        %v583 = vld [vmem:[#allocation5 + $0x218] sm:$0xff]
        %v584 = vld [vmem:[#allocation5 + $0x220] sm:$0xff]
        %v585 = vld [vmem:[#allocation5 + $0x228] sm:$0xff]
        %v586 = vld [vmem:[#allocation5 + $0x230] sm:$0xff]
        %v587 = vld [vmem:[#allocation5 + $0x238] sm:$0xff]
        %v588 = vld [vmem:[#allocation5 + $0x240] sm:$0xff]
        %v589 = vld [vmem:[#allocation5 + $0x248] sm:$0xff]
        %v590 = vld [vmem:[#allocation5 + $0x250] sm:$0xff]
        %v591 = vld [vmem:[#allocation5 + $0x258] sm:$0xff]
        %v592 = vld [vmem:[#allocation5 + $0x260] sm:$0xff]
        %v593 = vld [vmem:[#allocation5 + $0x268] sm:$0xff]
        %v594 = vld [vmem:[#allocation5 + $0x270] sm:$0xff]
        %v595 = vld [vmem:[#allocation5 + $0x278] sm:$0xff]
        %v596 = vld [vmem:[#allocation5 + $0x280] sm:$0xff]
        %v597 = vld [vmem:[#allocation5 + $0x288] sm:$0xff]
        %v598 = vld [vmem:[#allocation5 + $0x290] sm:$0xff]
        %v599 = vld [vmem:[#allocation5 + $0x298] sm:$0xff]
        %v600 = vld [vmem:[#allocation5 + $0x2a0] sm:$0xff]
        %v601 = vld [vmem:[#allocation5 + $0x2a8] sm:$0xff]
        %v602 = vld [vmem:[#allocation5 + $0x2b0] sm:$0xff]
        %v603 = vld [vmem:[#allocation5 + $0x2b8] sm:$0xff]
        %v604 = vld [vmem:[#allocation5 + $0x2c0] sm:$0xff]
        %v605 = vld [vmem:[#allocation5 + $0x2c8] sm:$0xff]
        %v606 = vld [vmem:[#allocation5 + $0x2d0] sm:$0xff]
        %v607 = vld [vmem:[#allocation5 + $0x2d8] sm:$0xff]
        %v608 = vld [vmem:[#allocation5 + $0x2e0] sm:$0xff]
        %v609 = vld [vmem:[#allocation5 + $0x2e8] sm:$0xff]
        %v610 = vld [vmem:[#allocation5 + $0x2f0] sm:$0xff]
        %v611 = vld [vmem:[#allocation5 + $0x2f8] sm:$0xff]
        %v612 = vld [vmem:[#allocation5 + $0x300] sm:$0xff]
        %v613 = vld [vmem:[#allocation5 + $0x308] sm:$0xff]
        %v614 = vld [vmem:[#allocation5 + $0x310] sm:$0xff]
        %v615 = vld [vmem:[#allocation5 + $0x318] sm:$0xff]
        %v616 = vld [vmem:[#allocation5 + $0x320] sm:$0xff]
        %v617 = vld [vmem:[#allocation5 + $0x328] sm:$0xff]
        %v618 = vld [vmem:[#allocation5 + $0x330] sm:$0xff]
        %v619 = vld [vmem:[#allocation5 + $0x338] sm:$0xff]
        %v620 = vld [vmem:[#allocation5 + $0x340] sm:$0xff]
        %v621 = vld [vmem:[#allocation5 + $0x348] sm:$0xff]
        %v622 = vld [vmem:[#allocation5 + $0x350] sm:$0xff]
        %v623 = vld [vmem:[#allocation5 + $0x358] sm:$0xff]
        %v624 = vld [vmem:[#allocation5 + $0x360] sm:$0xff]
        %v625 = vld [vmem:[#allocation5 + $0x368] sm:$0xff]
        %v626 = vld [vmem:[#allocation5 + $0x370] sm:$0xff]
        %v627 = vld [vmem:[#allocation5 + $0x378] sm:$0xff]
        %v628 = vld [vmem:[#allocation5 + $0x380] sm:$0xff]
        %v629 = vld [vmem:[#allocation5 + $0x388] sm:$0xff]
        %v630 = vld [vmem:[#allocation5 + $0x390] sm:$0xff]
        %v631 = vld [vmem:[#allocation5 + $0x398] sm:$0xff]
        %v632 = vld [vmem:[#allocation5 + $0x3a0] sm:$0xff]
        %v633 = vld [vmem:[#allocation5 + $0x3a8] sm:$0xff]
        %v634 = vld [vmem:[#allocation5 + $0x3b0] sm:$0xff]
        %v635 = vld [vmem:[#allocation5 + $0x3b8] sm:$0xff]
        %v636 = vld [vmem:[#allocation5 + $0x3c0] sm:$0xff]
        %v637 = vld [vmem:[#allocation5 + $0x3c8] sm:$0xff]
        %v638 = vld [vmem:[#allocation5 + $0x3d0] sm:$0xff]
        %v639 = vld [vmem:[#allocation5 + $0x3d8] sm:$0xff]
        %v640 = vld [vmem:[#allocation5 + $0x3e0] sm:$0xff]
        %v641 = vld [vmem:[#allocation5 + $0x3e8] sm:$0xff]
        %v642 = vld [vmem:[#allocation5 + $0x3f0] sm:$0xff]
        %v643 = vld [vmem:[#allocation5 + $0x3f8] sm:$0xff]
        %v644 = vld [vmem:[#allocation5 + $0x400] sm:$0xff]
        %v645 = vld [vmem:[#allocation5 + $0x408] sm:$0xff]
        %v646 = vld [vmem:[#allocation5 + $0x410] sm:$0xff]
        %v647 = vld [vmem:[#allocation5 + $0x418] sm:$0xff]
        %v648 = vld [vmem:[#allocation5 + $0x420] sm:$0xff]
        %v649 = vld [vmem:[#allocation5 + $0x428] sm:$0xff]
        %v650 = vld [vmem:[#allocation5 + $0x430] sm:$0xff]
        %v651 = vld [vmem:[#allocation5 + $0x438] sm:$0xff]
        %v652 = vld [vmem:[#allocation5 + $0x440] sm:$0xff]
        %v653 = vld [vmem:[#allocation5 + $0x448] sm:$0xff]
        %v654 = vld [vmem:[#allocation5 + $0x450] sm:$0xff]
        %v655 = vld [vmem:[#allocation5 + $0x458] sm:$0xff]
        %v656 = vld [vmem:[#allocation5 + $0x460] sm:$0xff]
        %v657 = vld [vmem:[#allocation5 + $0x468] sm:$0xff]
        %v658 = vld [vmem:[#allocation5 + $0x470] sm:$0xff]
        %v659 = vld [vmem:[#allocation5 + $0x478] sm:$0xff]
        %v660 = vld [vmem:[#allocation5 + $0x480] sm:$0xff]
        %v661 = vld [vmem:[#allocation5 + $0x488] sm:$0xff]
        %v662 = vld [vmem:[#allocation5 + $0x490] sm:$0xff]
        %v663 = vld [vmem:[#allocation5 + $0x498] sm:$0xff]
        %v664 = vld [vmem:[#allocation5 + $0x4a0] sm:$0xff]
        %v665 = vld [vmem:[#allocation5 + $0x4a8] sm:$0xff]
        %v666 = vld [vmem:[#allocation5 + $0x4b0] sm:$0xff]
        %v667 = vld [vmem:[#allocation5 + $0x4b8] sm:$0xff]
        %v668 = vld [vmem:[#allocation5 + $0x4c0] sm:$0xff]
        %v669 = vld [vmem:[#allocation5 + $0x4c8] sm:$0xff]
        %v670 = vld [vmem:[#allocation5 + $0x4d0] sm:$0xff]
        %v671 = vld [vmem:[#allocation5 + $0x4d8] sm:$0xff]
        %v672 = vld [vmem:[#allocation5 + $0x4e0] sm:$0xff]
        %v673 = vld [vmem:[#allocation5 + $0x4e8] sm:$0xff]
        %v674 = vld [vmem:[#allocation5 + $0x4f0] sm:$0xff]
        %v675 = vld [vmem:[#allocation5 + $0x4f8] sm:$0xff]
        %v676 = vld [vmem:[#allocation5 + $0x500] sm:$0xff]
        %v677 = vld [vmem:[#allocation5 + $0x508] sm:$0xff]
        %v678 = vld [vmem:[#allocation5 + $0x510] sm:$0xff]
        %v679 = vld [vmem:[#allocation5 + $0x518] sm:$0xff]
        %v680 = vld [vmem:[#allocation5 + $0x520] sm:$0xff]
        %v681 = vld [vmem:[#allocation5 + $0x528] sm:$0xff]
        %v682 = vld [vmem:[#allocation5 + $0x530] sm:$0xff]
        %v683 = vld [vmem:[#allocation5 + $0x538] sm:$0xff]
        %v684 = vld [vmem:[#allocation5 + $0x540] sm:$0xff]
        %v685 = vld [vmem:[#allocation5 + $0x548] sm:$0xff]
        %v686 = vld [vmem:[#allocation5 + $0x550] sm:$0xff]
        %v687 = vld [vmem:[#allocation5 + $0x558] sm:$0xff]
        %v688 = vld [vmem:[#allocation5 + $0x560] sm:$0xff]
        %v689 = vld [vmem:[#allocation5 + $0x568] sm:$0xff]
        %v690 = vld [vmem:[#allocation5 + $0x570] sm:$0xff]
        %v691 = vld [vmem:[#allocation5 + $0x578] sm:$0xff]
        %v692 = vld [vmem:[#allocation5 + $0x580] sm:$0xff]
        %v693 = vld [vmem:[#allocation5 + $0x588] sm:$0xff]
        %v694 = vld [vmem:[#allocation5 + $0x590] sm:$0xff]
        %v695 = vld [vmem:[#allocation5 + $0x598] sm:$0xff]
        %v696 = vld [vmem:[#allocation5 + $0x5a0] sm:$0xff]
        %v697 = vld [vmem:[#allocation5 + $0x5a8] sm:$0xff]
        %v698 = vld [vmem:[#allocation5 + $0x5b0] sm:$0xff]
        %v699 = vld [vmem:[#allocation5 + $0x5b8] sm:$0xff]
        %v700 = vld [vmem:[#allocation5 + $0x5c0] sm:$0xff]
        %v701 = vld [vmem:[#allocation5 + $0x5c8] sm:$0xff]
        %v702 = vld [vmem:[#allocation5 + $0x5d0] sm:$0xff]
        %v703 = vld [vmem:[#allocation5 + $0x5d8] sm:$0xff]
        %v704 = vld [vmem:[#allocation5 + $0x5e0] sm:$0xff]
        %v705 = vld [vmem:[#allocation5 + $0x5e8] sm:$0xff]
        %v706 = vld [vmem:[#allocation5 + $0x5f0] sm:$0xff]
        %v707 = vld [vmem:[#allocation5 + $0x5f8] sm:$0xff]
        %v708 = vld [vmem:[%s2] sm:$0x7]
        %v710 = vlaneseq
        %v711 = vshrl.u32 %v710, 7
        %v712 = vsub.s32 0, %v711
        %v713 = vrot.slane %v708, %v712
        %v714 = vlaneseq
        %v715 = vshrl.u32 %v714, 7
        %v716 = vsub.s32 1, %v715
        %v717 = vrot.slane %v708, %v716
        %v718 = vlaneseq
        %v719 = vshrl.u32 %v718, 7
        %v720 = vsub.s32 2, %v719
        %v721 = vrot.slane %v708, %v720
        %725 = vmatprep.subr.mxu0 %v517
        %726 = vmatpush1.msra.mxu0 %v516
        %727 = vmatprep.subr.mxu0 %v520
        %728 = vmatpush1.msra.mxu0 %v519
        %729 = vmatprep.subr.mxu0 %v523
        %730 = vmatpush1.msra.mxu0 %v522
        %731 = vmatprep.subr.mxu0 %v526
        %732 = vmatpush1.msra.mxu0 %v525
        %733 = vmatprep.subr.mxu0 %v529
        %734 = vmatpush1.msra.mxu0 %v528
        %735 = vmatprep.subr.mxu0 %v532
        %736 = vmatpush1.msra.mxu0 %v531
        %737 = vmatprep.subr.mxu0 %v535
        %738 = vmatpush1.msra.mxu0 %v534
        %739 = vmatprep.subr.mxu0 %v538
        %740 = vmatpush1.msra.mxu0 %v537
        %741 = vmatprep.subr.mxu0 %v541
        %742 = vmatpush1.msra.mxu0 %v540
        %743 = vmatprep.subr.mxu0 %v544
        %744 = vmatpush1.msra.mxu0 %v543
        %745 = vmatprep.subr.mxu0 %v547
        %746 = vmatpush1.msra.mxu0 %v546
        %747 = vmatprep.subr.mxu0 %v550
        %748 = vmatpush1.msra.mxu0 %v549
        %749 = vmatprep.subr.mxu0 %v553
        %750 = vmatpush1.msra.mxu0 %v552
        %751 = vmatprep.subr.mxu0 %v556
        %752 = vmatpush1.msra.mxu0 %v555
        %753 = vmatprep.subr.mxu0 %v559
        %754 = vmatpush1.msra.mxu0 %v558
        %755 = vmatprep.subr.mxu0 %v562
        %756 = vmatpush1.msra.mxu0 %v561
        %757 = vmatprep.subr.mxu0 %v565
        %758 = vmatpush1.msra.mxu0 %v564
        %759 = vmatprep.subr.mxu0 %v568
        %760 = vmatpush1.msra.mxu0 %v567
        %761 = vmatprep.subr.mxu0 %v571
        %762 = vmatpush1.msra.mxu0 %v570
        %763 = vmatprep.subr.mxu0 %v574
        %764 = vmatpush1.msra.mxu0 %v573
        %765 = vmatprep.subr.mxu0 %v577
        %766 = vmatpush1.msra.mxu0 %v576
        %767 = vmatprep.subr.mxu0 %v580
        %768 = vmatpush1.msra.mxu0 %v579
        %769 = vmatprep.subr.mxu0 %v583
        %770 = vmatpush1.msra.mxu0 %v582
        %771 = vmatprep.subr.mxu0 %v586
        %772 = vmatpush1.msra.mxu0 %v585
        %773 = vmatprep.subr.mxu0 %v589
        %774 = vmatpush1.msra.mxu0 %v588
        %775 = vmatprep.subr.mxu0 %v592
        %776 = vmatpush1.msra.mxu0 %v591
        %777 = vmatprep.subr.mxu0 %v595
        %778 = vmatpush1.msra.mxu0 %v594
        %779 = vmatprep.subr.mxu0 %v598
        %780 = vmatpush1.msra.mxu0 %v597
        %781 = vmatprep.subr.mxu0 %v601
        %782 = vmatpush1.msra.mxu0 %v600
        %783 = vmatprep.subr.mxu0 %v604
        %784 = vmatpush1.msra.mxu0 %v603
        %785 = vmatprep.subr.mxu0 %v607
        %786 = vmatpush1.msra.mxu0 %v606
        %787 = vmatprep.subr.mxu0 %v610
        %788 = vmatpush1.msra.mxu0 %v609
        %789 = vmatprep.mubr.f32.mxu0 %v421
        %790 = vmatmul.mubr.f32.gmra.mrb[0].mxu0 %v420
        %v791 = vpop.f32.mrb[0].mxu0
        %v792 = vadd.f32 %v713, %v791
        %v793 = vpop.f32.mrb[0].mxu0
        %v794 = vadd.f32 %v717, %v793
        %795 = vmatprep.mubr.f32.mxu0 %v425
        %796 = vmatmul.mubr.f32.gmra.mrb[0].mxu0 %v424
        %v797 = vpop.f32.mrb[0].mxu0
        %v798 = vadd.f32 %v713, %v797
        %v799 = vpop.f32.mrb[0].mxu0
        %v800 = vadd.f32 %v717, %v799
        %801 = vmatprep.mubr.f32.mxu0 %v429
        %802 = vmatmul.mubr.f32.gmra.mrb[0].mxu0 %v428
        %v803 = vpop.f32.mrb[0].mxu0
        %v804 = vadd.f32 %v713, %v803
        %v805 = vpop.f32.mrb[0].mxu0
        %v806 = vadd.f32 %v717, %v805
        %807 = vmatprep.mubr.f32.mxu0 %v433
        %808 = vmatmul.mubr.f32.gmra.mrb[0].mxu0 %v432
        %v809 = vpop.f32.mrb[0].mxu0
        %v810 = vadd.f32 %v713, %v809
        %v811 = vpop.f32.mrb[0].mxu0
        %v812 = vadd.f32 %v717, %v811
        %813 = vmatprep.mubr.f32.mxu0 %v437
        %814 = vmatmul.mubr.f32.gmra.mrb[0].mxu0 %v436
        %v815 = vpop.f32.mrb[0].mxu0
        %v816 = vadd.f32 %v713, %v815
        %v817 = vpop.f32.mrb[0].mxu0
        %v818 = vadd.f32 %v717, %v817
        %819 = vmatprep.mubr.f32.mxu0 %v441
        %820 = vmatmul.mubr.f32.gmra.mrb[0].mxu0 %v440
        %v821 = vpop.f32.mrb[0].mxu0
        %v822 = vadd.f32 %v713, %v821
        %v823 = vpop.f32.mrb[0].mxu0
        %v824 = vadd.f32 %v717, %v823
        %825 = vmatprep.mubr.f32.mxu0 %v445
        %826 = vmatmul.mubr.f32.gmra.mrb[0].mxu0 %v444
        %v827 = vpop.f32.mrb[0].mxu0
        %v828 = vadd.f32 %v713, %v827
        %v829 = vpop.f32.mrb[0].mxu0
        %v830 = vadd.f32 %v717, %v829
        %831 = vmatprep.mubr.f32.mxu0 %v449
        %832 = vmatmul.mubr.f32.gmra.mrb[0].mxu0 %v448
        %v833 = vpop.f32.mrb[0].mxu0
        %v834 = vadd.f32 %v713, %v833
        %v835 = vpop.f32.mrb[0].mxu0
        %v836 = vadd.f32 %v717, %v835
        %837 = vmatprep.mubr.f32.mxu0 %v453
        %838 = vmatmul.mubr.f32.gmra.mrb[0].mxu0 %v452
        %v839 = vpop.f32.mrb[0].mxu0
        %v840 = vadd.f32 %v713, %v839
        %v841 = vpop.f32.mrb[0].mxu0
        %v842 = vadd.f32 %v717, %v841
        %843 = vmatprep.mubr.f32.mxu0 %v457
        %844 = vmatmul.mubr.f32.gmra.mrb[0].mxu0 %v456
        %v845 = vpop.f32.mrb[0].mxu0
        %v846 = vadd.f32 %v713, %v845
        %v847 = vpop.f32.mrb[0].mxu0
        %v848 = vadd.f32 %v717, %v847
        %849 = vmatprep.mubr.f32.mxu0 %v461
        %850 = vmatmul.mubr.f32.gmra.mrb[0].mxu0 %v460
        %v851 = vpop.f32.mrb[0].mxu0
        %v852 = vadd.f32 %v713, %v851
        %v853 = vpop.f32.mrb[0].mxu0
        %v854 = vadd.f32 %v717, %v853
        %855 = vmatprep.mubr.f32.mxu0 %v465
        %856 = vmatmul.mubr.f32.gmra.mrb[0].mxu0 %v464
        %v857 = vpop.f32.mrb[0].mxu0
        %v858 = vadd.f32 %v713, %v857
        %v859 = vpop.f32.mrb[0].mxu0
        %v860 = vadd.f32 %v717, %v859
        %861 = vmatprep.mubr.f32.mxu0 %v469
        %862 = vmatmul.mubr.f32.gmra.mrb[0].mxu0 %v468
        %v863 = vpop.f32.mrb[0].mxu0
        %v864 = vadd.f32 %v713, %v863
        %v865 = vpop.f32.mrb[0].mxu0
        %v866 = vadd.f32 %v717, %v865
        %867 = vmatprep.mubr.f32.mxu0 %v473
        %868 = vmatmul.mubr.f32.gmra.mrb[0].mxu0 %v472
        %v869 = vpop.f32.mrb[0].mxu0
        %v870 = vadd.f32 %v713, %v869
        %v871 = vpop.f32.mrb[0].mxu0
        %v872 = vadd.f32 %v717, %v871
        %873 = vmatprep.mubr.f32.mxu0 %v477
        %874 = vmatmul.mubr.f32.gmra.mrb[0].mxu0 %v476
        %v875 = vpop.f32.mrb[0].mxu0
        %v876 = vadd.f32 %v713, %v875
        %v877 = vpop.f32.mrb[0].mxu0
        %v878 = vadd.f32 %v717, %v877
        %879 = vmatprep.mubr.f32.mxu0 %v481
        %880 = vmatmul.mubr.f32.gmra.mrb[0].mxu0 %v480
        %v881 = vpop.f32.mrb[0].mxu0
        %v882 = vadd.f32 %v713, %v881
        %v883 = vpop.f32.mrb[0].mxu0
        %v884 = vadd.f32 %v717, %v883
        %885 = vmatprep.mubr.f32.mxu0 %v485
        %886 = vmatmul.mubr.f32.gmra.mrb[0].mxu0 %v484
        %v887 = vpop.f32.mrb[0].mxu0
        %v888 = vadd.f32 %v713, %v887
        %v889 = vpop.f32.mrb[0].mxu0
        %v890 = vadd.f32 %v717, %v889
        %891 = vmatprep.mubr.f32.mxu0 %v489
        %892 = vmatmul.mubr.f32.gmra.mrb[0].mxu0 %v488
        %v893 = vpop.f32.mrb[0].mxu0
        %v894 = vadd.f32 %v713, %v893
        %v895 = vpop.f32.mrb[0].mxu0
        %v896 = vadd.f32 %v717, %v895
        %897 = vmatprep.mubr.f32.mxu0 %v493
        %898 = vmatmul.mubr.f32.gmra.mrb[0].mxu0 %v492
        %v899 = vpop.f32.mrb[0].mxu0
        %v900 = vadd.f32 %v713, %v899
        %v901 = vpop.f32.mrb[0].mxu0
        %v902 = vadd.f32 %v717, %v901
        %903 = vmatprep.mubr.f32.mxu0 %v497
        %904 = vmatmul.mubr.f32.gmra.mrb[0].mxu0 %v496
        %v905 = vpop.f32.mrb[0].mxu0
        %v906 = vadd.f32 %v713, %v905
        %v907 = vpop.f32.mrb[0].mxu0
        %v908 = vadd.f32 %v717, %v907
        %909 = vmatprep.mubr.f32.mxu0 %v501
        %910 = vmatmul.mubr.f32.gmra.mrb[0].mxu0 %v500
        %v911 = vpop.f32.mrb[0].mxu0
        %v912 = vadd.f32 %v713, %v911
        %v913 = vpop.f32.mrb[0].mxu0
        %v914 = vadd.f32 %v717, %v913
        %915 = vmatprep.mubr.f32.mxu0 %v505
        %916 = vmatmul.mubr.f32.gmra.mrb[0].mxu0 %v504
        %v917 = vpop.f32.mrb[0].mxu0
        %v918 = vadd.f32 %v713, %v917
        %v919 = vpop.f32.mrb[0].mxu0
        %v920 = vadd.f32 %v717, %v919
        %921 = vmatprep.mubr.f32.mxu0 %v509
        %922 = vmatmul.mubr.f32.gmra.mrb[0].mxu0 %v508
        %v923 = vpop.f32.mrb[0].mxu0
        %v924 = vadd.f32 %v713, %v923
        %v925 = vpop.f32.mrb[0].mxu0
        %v926 = vadd.f32 %v717, %v925
        %927 = vmatprep.mubr.f32.mxu0 %v513
        %928 = vmatmul.mubr.f32.gmra.mrb[0].mxu0 %v512
        %v929 = vpop.f32.mrb[0].mxu0
        %v930 = vadd.f32 %v713, %v929
        %v931 = vpop.f32.mrb[0].mxu0
        %v932 = vadd.f32 %v717, %v931
        %933 = vdwg.mxu0
        %934 = vmatprep.subr.mxu0 %v613
        %935 = vmatpush1.msra.mxu0 %v612
        %936 = vmatprep.subr.mxu0 %v616
        %937 = vmatpush1.msra.mxu0 %v615
        %938 = vmatprep.subr.mxu0 %v619
        %939 = vmatpush1.msra.mxu0 %v618
        %940 = vmatprep.subr.mxu0 %v622
        %941 = vmatpush1.msra.mxu0 %v621
        %942 = vmatprep.subr.mxu0 %v625
        %943 = vmatpush1.msra.mxu0 %v624
        %944 = vmatprep.subr.mxu0 %v628
        %945 = vmatpush1.msra.mxu0 %v627
        %946 = vmatprep.subr.mxu0 %v631
        %947 = vmatpush1.msra.mxu0 %v630
        %948 = vmatprep.subr.mxu0 %v634
        %949 = vmatpush1.msra.mxu0 %v633
        %950 = vmatprep.subr.mxu0 %v637
        %951 = vmatpush1.msra.mxu0 %v636
        %952 = vmatprep.subr.mxu0 %v640
        %953 = vmatpush1.msra.mxu0 %v639
        %954 = vmatprep.subr.mxu0 %v643
        %955 = vmatpush1.msra.mxu0 %v642
        %956 = vmatprep.subr.mxu0 %v646
        %957 = vmatpush1.msra.mxu0 %v645
        %958 = vmatprep.subr.mxu0 %v649
        %959 = vmatpush1.msra.mxu0 %v648
        %960 = vmatprep.subr.mxu0 %v652
        %961 = vmatpush1.msra.mxu0 %v651
        %962 = vmatprep.subr.mxu0 %v655
        %963 = vmatpush1.msra.mxu0 %v654
        %964 = vmatprep.subr.mxu0 %v658
        %965 = vmatpush1.msra.mxu0 %v657
        %966 = vmatprep.subr.mxu0 %v661
        %967 = vmatpush1.msra.mxu0 %v660
        %968 = vmatprep.subr.mxu0 %v664
        %969 = vmatpush1.msra.mxu0 %v663
        %970 = vmatprep.subr.mxu0 %v667
        %971 = vmatpush1.msra.mxu0 %v666
        %972 = vmatprep.subr.mxu0 %v670
        %973 = vmatpush1.msra.mxu0 %v669
        %974 = vmatprep.subr.mxu0 %v673
        %975 = vmatpush1.msra.mxu0 %v672
        %976 = vmatprep.subr.mxu0 %v676
        %977 = vmatpush1.msra.mxu0 %v675
        %978 = vmatprep.subr.mxu0 %v679
        %979 = vmatpush1.msra.mxu0 %v678
        %980 = vmatprep.subr.mxu0 %v682
        %981 = vmatpush1.msra.mxu0 %v681
        %982 = vmatprep.subr.mxu0 %v685
        %983 = vmatpush1.msra.mxu0 %v684
        %984 = vmatprep.subr.mxu0 %v688
        %985 = vmatpush1.msra.mxu0 %v687
        %986 = vmatprep.subr.mxu0 %v691
        %987 = vmatpush1.msra.mxu0 %v690
        %988 = vmatprep.subr.mxu0 %v694
        %989 = vmatpush1.msra.mxu0 %v693
        %990 = vmatprep.subr.mxu0 %v697
        %991 = vmatpush1.msra.mxu0 %v696
        %992 = vmatprep.subr.mxu0 %v700
        %993 = vmatpush1.msra.mxu0 %v699
        %994 = vmatprep.subr.mxu0 %v703
        %995 = vmatpush1.msra.mxu0 %v702
        %996 = vmatprep.subr.mxu0 %v706
        %997 = vmatpush1.msra.mxu0 %v705
        %998 = vmatprep.mubr.f32.mxu0 %v423
        %999 = vmatmul.mubr.f32.gmra.mrb[0].mxu0 %v422
        %v1000 = vpop.f32.mrb[0].mxu0
        %v1001 = vadd.f32 %v792, %v1000
        %v1002 = vpop.f32.mrb[0].mxu0
        %v1003 = vadd.f32 %v794, %v1002
        %1004 = vmatprep.mubr.f32.mxu0 %v427
        %1005 = vmatmul.mubr.f32.gmra.mrb[0].mxu0 %v426
        %v1006 = vpop.f32.mrb[0].mxu0
        %v1007 = vadd.f32 %v798, %v1006
        %v1008 = vpop.f32.mrb[0].mxu0
        %v1009 = vadd.f32 %v800, %v1008
        %1010 = vmatprep.mubr.f32.mxu0 %v431
        %1011 = vmatmul.mubr.f32.gmra.mrb[0].mxu0 %v430
        %v1012 = vpop.f32.mrb[0].mxu0
        %v1013 = vadd.f32 %v804, %v1012
        %v1014 = vpop.f32.mrb[0].mxu0
        %v1015 = vadd.f32 %v806, %v1014
        %1016 = vmatprep.mubr.f32.mxu0 %v435
        %1017 = vmatmul.mubr.f32.gmra.mrb[0].mxu0 %v434
        %v1018 = vpop.f32.mrb[0].mxu0
        %v1019 = vadd.f32 %v810, %v1018
        %v1020 = vpop.f32.mrb[0].mxu0
        %v1021 = vadd.f32 %v812, %v1020
        %1022 = vmatprep.mubr.f32.mxu0 %v439
        %1023 = vmatmul.mubr.f32.gmra.mrb[0].mxu0 %v438
        %v1024 = vpop.f32.mrb[0].mxu0
        %v1025 = vadd.f32 %v816, %v1024
        %v1026 = vpop.f32.mrb[0].mxu0
        %v1027 = vadd.f32 %v818, %v1026
        %1028 = vmatprep.mubr.f32.mxu0 %v443
        %1029 = vmatmul.mubr.f32.gmra.mrb[0].mxu0 %v442
        %v1030 = vpop.f32.mrb[0].mxu0
        %v1031 = vadd.f32 %v822, %v1030
        %v1032 = vpop.f32.mrb[0].mxu0
        %v1033 = vadd.f32 %v824, %v1032
        %1034 = vmatprep.mubr.f32.mxu0 %v447
        %1035 = vmatmul.mubr.f32.gmra.mrb[0].mxu0 %v446
        %v1036 = vpop.f32.mrb[0].mxu0
        %v1037 = vadd.f32 %v828, %v1036
        %v1038 = vpop.f32.mrb[0].mxu0
        %v1039 = vadd.f32 %v830, %v1038
        %1040 = vmatprep.mubr.f32.mxu0 %v451
        %1041 = vmatmul.mubr.f32.gmra.mrb[0].mxu0 %v450
        %v1042 = vpop.f32.mrb[0].mxu0
        %v1043 = vadd.f32 %v834, %v1042
        %v1044 = vpop.f32.mrb[0].mxu0
        %v1045 = vadd.f32 %v836, %v1044
        %1046 = vmatprep.mubr.f32.mxu0 %v455
        %1047 = vmatmul.mubr.f32.gmra.mrb[0].mxu0 %v454
        %v1048 = vpop.f32.mrb[0].mxu0
        %v1049 = vadd.f32 %v840, %v1048
        %v1050 = vpop.f32.mrb[0].mxu0
        %v1051 = vadd.f32 %v842, %v1050
        %1052 = vmatprep.mubr.f32.mxu0 %v459
        %1053 = vmatmul.mubr.f32.gmra.mrb[0].mxu0 %v458
        %v1054 = vpop.f32.mrb[0].mxu0
        %v1055 = vadd.f32 %v846, %v1054
        %v1056 = vpop.f32.mrb[0].mxu0
        %v1057 = vadd.f32 %v848, %v1056
        %1058 = vmatprep.mubr.f32.mxu0 %v463
        %1059 = vmatmul.mubr.f32.gmra.mrb[0].mxu0 %v462
        %v1060 = vpop.f32.mrb[0].mxu0
        %v1061 = vadd.f32 %v852, %v1060
        %v1062 = vpop.f32.mrb[0].mxu0
        %v1063 = vadd.f32 %v854, %v1062
        %1064 = vmatprep.mubr.f32.mxu0 %v467
        %1065 = vmatmul.mubr.f32.gmra.mrb[0].mxu0 %v466
        %v1066 = vpop.f32.mrb[0].mxu0
        %v1067 = vadd.f32 %v858, %v1066
        %v1068 = vpop.f32.mrb[0].mxu0
        %v1069 = vadd.f32 %v860, %v1068
        %1070 = vmatprep.mubr.f32.mxu0 %v471
        %1071 = vmatmul.mubr.f32.gmra.mrb[0].mxu0 %v470
        %v1072 = vpop.f32.mrb[0].mxu0
        %v1073 = vadd.f32 %v864, %v1072
        %v1074 = vpop.f32.mrb[0].mxu0
        %v1075 = vadd.f32 %v866, %v1074
        %1076 = vmatprep.mubr.f32.mxu0 %v475
        %1077 = vmatmul.mubr.f32.gmra.mrb[0].mxu0 %v474
        %v1078 = vpop.f32.mrb[0].mxu0
        %v1079 = vadd.f32 %v870, %v1078
        %v1080 = vpop.f32.mrb[0].mxu0
        %v1081 = vadd.f32 %v872, %v1080
        %1082 = vmatprep.mubr.f32.mxu0 %v479
        %1083 = vmatmul.mubr.f32.gmra.mrb[0].mxu0 %v478
        %v1084 = vpop.f32.mrb[0].mxu0
        %v1085 = vadd.f32 %v876, %v1084
        %v1086 = vpop.f32.mrb[0].mxu0
        %v1087 = vadd.f32 %v878, %v1086
        %1088 = vmatprep.mubr.f32.mxu0 %v483
        %1089 = vmatmul.mubr.f32.gmra.mrb[0].mxu0 %v482
        %v1090 = vpop.f32.mrb[0].mxu0
        %v1091 = vadd.f32 %v882, %v1090
        %v1092 = vpop.f32.mrb[0].mxu0
        %v1093 = vadd.f32 %v884, %v1092
        %1094 = vmatprep.mubr.f32.mxu0 %v487
        %1095 = vmatmul.mubr.f32.gmra.mrb[0].mxu0 %v486
        %v1096 = vpop.f32.mrb[0].mxu0
        %v1097 = vadd.f32 %v888, %v1096
        %v1098 = vpop.f32.mrb[0].mxu0
        %v1099 = vadd.f32 %v890, %v1098
        %1100 = vmatprep.mubr.f32.mxu0 %v491
        %1101 = vmatmul.mubr.f32.gmra.mrb[0].mxu0 %v490
        %v1102 = vpop.f32.mrb[0].mxu0
        %v1103 = vadd.f32 %v894, %v1102
        %v1104 = vpop.f32.mrb[0].mxu0
        %v1105 = vadd.f32 %v896, %v1104
        %1106 = vmatprep.mubr.f32.mxu0 %v495
        %1107 = vmatmul.mubr.f32.gmra.mrb[0].mxu0 %v494
        %v1108 = vpop.f32.mrb[0].mxu0
        %v1109 = vadd.f32 %v900, %v1108
        %v1110 = vpop.f32.mrb[0].mxu0
        %v1111 = vadd.f32 %v902, %v1110
        %1112 = vmatprep.mubr.f32.mxu0 %v499
        %1113 = vmatmul.mubr.f32.gmra.mrb[0].mxu0 %v498
        %v1114 = vpop.f32.mrb[0].mxu0
        %v1115 = vadd.f32 %v906, %v1114
        %v1116 = vpop.f32.mrb[0].mxu0
        %v1117 = vadd.f32 %v908, %v1116
        %1118 = vmatprep.mubr.f32.mxu0 %v503
        %1119 = vmatmul.mubr.f32.gmra.mrb[0].mxu0 %v502
        %v1120 = vpop.f32.mrb[0].mxu0
        %v1121 = vadd.f32 %v912, %v1120
        %v1122 = vpop.f32.mrb[0].mxu0
        %v1123 = vadd.f32 %v914, %v1122
        %1124 = vmatprep.mubr.f32.mxu0 %v507
        %1125 = vmatmul.mubr.f32.gmra.mrb[0].mxu0 %v506
        %v1126 = vpop.f32.mrb[0].mxu0
        %v1127 = vadd.f32 %v918, %v1126
        %v1128 = vpop.f32.mrb[0].mxu0
        %v1129 = vadd.f32 %v920, %v1128
        %1130 = vmatprep.mubr.f32.mxu0 %v511
        %1131 = vmatmul.mubr.f32.gmra.mrb[0].mxu0 %v510
        %v1132 = vpop.f32.mrb[0].mxu0
        %v1133 = vadd.f32 %v924, %v1132
        %v1134 = vpop.f32.mrb[0].mxu0
        %v1135 = vadd.f32 %v926, %v1134
        %1136 = vmatprep.mubr.f32.mxu0 %v515
        %1137 = vmatmul.mubr.f32.gmra.mrb[0].mxu0 %v514
        %v1138 = vpop.f32.mrb[0].mxu0
        %v1139 = vadd.f32 %v930, %v1138
        %v1140 = vpop.f32.mrb[0].mxu0
        %v1141 = vadd.f32 %v932, %v1140
        %1142 = vdwg.mxu0
        %1143 = vmatprep.subr.mxu0 0.0
        %1144 = vmatpush1.msra.mxu0 %v518
        %1145 = vmatprep.subr.mxu0 0.0
        %1146 = vmatpush1.msra.mxu0 %v521
        %1147 = vmatprep.subr.mxu0 0.0
        %1148 = vmatpush1.msra.mxu0 %v524
        %1149 = vmatprep.subr.mxu0 0.0
        %1150 = vmatpush1.msra.mxu0 %v527
        %1151 = vmatprep.subr.mxu0 0.0
        %1152 = vmatpush1.msra.mxu0 %v530
        %1153 = vmatprep.subr.mxu0 0.0
        %1154 = vmatpush1.msra.mxu0 %v533
        %1155 = vmatprep.subr.mxu0 0.0
        %1156 = vmatpush1.msra.mxu0 %v536
        %1157 = vmatprep.subr.mxu0 0.0
        %1158 = vmatpush1.msra.mxu0 %v539
        %1159 = vmatprep.subr.mxu0 0.0
        %1160 = vmatpush1.msra.mxu0 %v542
        %1161 = vmatprep.subr.mxu0 0.0
        %1162 = vmatpush1.msra.mxu0 %v545
        %1163 = vmatprep.subr.mxu0 0.0
        %1164 = vmatpush1.msra.mxu0 %v548
        %1165 = vmatprep.subr.mxu0 0.0
        %1166 = vmatpush1.msra.mxu0 %v551
        %1167 = vmatprep.subr.mxu0 0.0
        %1168 = vmatpush1.msra.mxu0 %v554
        %1169 = vmatprep.subr.mxu0 0.0
        %1170 = vmatpush1.msra.mxu0 %v557
        %1171 = vmatprep.subr.mxu0 0.0
        %1172 = vmatpush1.msra.mxu0 %v560
        %1173 = vmatprep.subr.mxu0 0.0
        %1174 = vmatpush1.msra.mxu0 %v563
        %1175 = vmatprep.subr.mxu0 0.0
        %1176 = vmatpush1.msra.mxu0 %v566
        %1177 = vmatprep.subr.mxu0 0.0
        %1178 = vmatpush1.msra.mxu0 %v569
        %1179 = vmatprep.subr.mxu0 0.0
        %1180 = vmatpush1.msra.mxu0 %v572
        %1181 = vmatprep.subr.mxu0 0.0
        %1182 = vmatpush1.msra.mxu0 %v575
        %1183 = vmatprep.subr.mxu0 0.0
        %1184 = vmatpush1.msra.mxu0 %v578
        %1185 = vmatprep.subr.mxu0 0.0
        %1186 = vmatpush1.msra.mxu0 %v581
        %1187 = vmatprep.subr.mxu0 0.0
        %1188 = vmatpush1.msra.mxu0 %v584
        %1189 = vmatprep.subr.mxu0 0.0
        %1190 = vmatpush1.msra.mxu0 %v587
        %1191 = vmatprep.subr.mxu0 0.0
        %1192 = vmatpush1.msra.mxu0 %v590
        %1193 = vmatprep.subr.mxu0 0.0
        %1194 = vmatpush1.msra.mxu0 %v593
        %1195 = vmatprep.subr.mxu0 0.0
        %1196 = vmatpush1.msra.mxu0 %v596
        %1197 = vmatprep.subr.mxu0 0.0
        %1198 = vmatpush1.msra.mxu0 %v599
        %1199 = vmatprep.subr.mxu0 0.0
        %1200 = vmatpush1.msra.mxu0 %v602
        %1201 = vmatprep.subr.mxu0 0.0
        %1202 = vmatpush1.msra.mxu0 %v605
        %1203 = vmatprep.subr.mxu0 0.0
        %1204 = vmatpush1.msra.mxu0 %v608
        %1205 = vmatprep.subr.mxu0 0.0
        %1206 = vmatpush1.msra.mxu0 %v611
        %1207 = vmatprep.mubr.f32.mxu0 %v421
        %1208 = vmatmul.mubr.f32.gmra.mrb[0].mxu0 %v420
        %v1209 = vpop.f32.mrb[0].mxu0
        %v1210 = vadd.f32 %v721, %v1209
        %v1211 = vpop.f32.mrb[0].mxu0
        %1212 = vmatprep.mubr.f32.mxu0 %v425
        %1213 = vmatmul.mubr.f32.gmra.mrb[0].mxu0 %v424
        %v1214 = vpop.f32.mrb[0].mxu0
        %v1215 = vadd.f32 %v721, %v1214
        %v1216 = vpop.f32.mrb[0].mxu0
        %1217 = vmatprep.mubr.f32.mxu0 %v429
        %1218 = vmatmul.mubr.f32.gmra.mrb[0].mxu0 %v428
        %v1219 = vpop.f32.mrb[0].mxu0
        %v1220 = vadd.f32 %v721, %v1219
        %v1221 = vpop.f32.mrb[0].mxu0
        %1222 = vmatprep.mubr.f32.mxu0 %v433
        %1223 = vmatmul.mubr.f32.gmra.mrb[0].mxu0 %v432
        %v1224 = vpop.f32.mrb[0].mxu0
        %v1225 = vadd.f32 %v721, %v1224
        %v1226 = vpop.f32.mrb[0].mxu0
        %1227 = vmatprep.mubr.f32.mxu0 %v437
        %1228 = vmatmul.mubr.f32.gmra.mrb[0].mxu0 %v436
        %v1229 = vpop.f32.mrb[0].mxu0
        %v1230 = vadd.f32 %v721, %v1229
        %v1231 = vpop.f32.mrb[0].mxu0
        %1232 = vmatprep.mubr.f32.mxu0 %v441
        %1233 = vmatmul.mubr.f32.gmra.mrb[0].mxu0 %v440
        %v1234 = vpop.f32.mrb[0].mxu0
        %v1235 = vadd.f32 %v721, %v1234
        %v1236 = vpop.f32.mrb[0].mxu0
        %1237 = vmatprep.mubr.f32.mxu0 %v445
        %1238 = vmatmul.mubr.f32.gmra.mrb[0].mxu0 %v444
        %v1239 = vpop.f32.mrb[0].mxu0
        %v1240 = vadd.f32 %v721, %v1239
        %v1241 = vpop.f32.mrb[0].mxu0
        %1242 = vmatprep.mubr.f32.mxu0 %v449
        %1243 = vmatmul.mubr.f32.gmra.mrb[0].mxu0 %v448
        %v1244 = vpop.f32.mrb[0].mxu0
        %v1245 = vadd.f32 %v721, %v1244
        %v1246 = vpop.f32.mrb[0].mxu0
        %1247 = vmatprep.mubr.f32.mxu0 %v453
        %1248 = vmatmul.mubr.f32.gmra.mrb[0].mxu0 %v452
        %v1249 = vpop.f32.mrb[0].mxu0
        %v1250 = vadd.f32 %v721, %v1249
        %v1251 = vpop.f32.mrb[0].mxu0
        %1252 = vmatprep.mubr.f32.mxu0 %v457
        %1253 = vmatmul.mubr.f32.gmra.mrb[0].mxu0 %v456
        %v1254 = vpop.f32.mrb[0].mxu0
        %v1255 = vadd.f32 %v721, %v1254
        %v1256 = vpop.f32.mrb[0].mxu0
        %1257 = vmatprep.mubr.f32.mxu0 %v461
        %1258 = vmatmul.mubr.f32.gmra.mrb[0].mxu0 %v460
        %v1259 = vpop.f32.mrb[0].mxu0
        %v1260 = vadd.f32 %v721, %v1259
        %v1261 = vpop.f32.mrb[0].mxu0
        %1262 = vmatprep.mubr.f32.mxu0 %v465
        %1263 = vmatmul.mubr.f32.gmra.mrb[0].mxu0 %v464
        %v1264 = vpop.f32.mrb[0].mxu0
        %v1265 = vadd.f32 %v721, %v1264
        %v1266 = vpop.f32.mrb[0].mxu0
        %1267 = vmatprep.mubr.f32.mxu0 %v469
        %1268 = vmatmul.mubr.f32.gmra.mrb[0].mxu0 %v468
        %v1269 = vpop.f32.mrb[0].mxu0
        %v1270 = vadd.f32 %v721, %v1269
        %v1271 = vpop.f32.mrb[0].mxu0
        %1272 = vmatprep.mubr.f32.mxu0 %v473
        %1273 = vmatmul.mubr.f32.gmra.mrb[0].mxu0 %v472
        %v1274 = vpop.f32.mrb[0].mxu0
        %v1275 = vadd.f32 %v721, %v1274
        %v1276 = vpop.f32.mrb[0].mxu0
        %1277 = vmatprep.mubr.f32.mxu0 %v477
        %1278 = vmatmul.mubr.f32.gmra.mrb[0].mxu0 %v476
        %v1279 = vpop.f32.mrb[0].mxu0
        %v1280 = vadd.f32 %v721, %v1279
        %v1281 = vpop.f32.mrb[0].mxu0
        %1282 = vmatprep.mubr.f32.mxu0 %v481
        %1283 = vmatmul.mubr.f32.gmra.mrb[0].mxu0 %v480
        %v1284 = vpop.f32.mrb[0].mxu0
        %v1285 = vadd.f32 %v721, %v1284
        %v1286 = vpop.f32.mrb[0].mxu0
        %1287 = vmatprep.mubr.f32.mxu0 %v485
        %1288 = vmatmul.mubr.f32.gmra.mrb[0].mxu0 %v484
        %v1289 = vpop.f32.mrb[0].mxu0
        %v1290 = vadd.f32 %v721, %v1289
        %v1291 = vpop.f32.mrb[0].mxu0
        %1292 = vmatprep.mubr.f32.mxu0 %v489
        %1293 = vmatmul.mubr.f32.gmra.mrb[0].mxu0 %v488
        %v1294 = vpop.f32.mrb[0].mxu0
        %v1295 = vadd.f32 %v721, %v1294
        %v1296 = vpop.f32.mrb[0].mxu0
        %1297 = vmatprep.mubr.f32.mxu0 %v493
        %1298 = vmatmul.mubr.f32.gmra.mrb[0].mxu0 %v492
        %v1299 = vpop.f32.mrb[0].mxu0
        %v1300 = vadd.f32 %v721, %v1299
        %v1301 = vpop.f32.mrb[0].mxu0
        %1302 = vmatprep.mubr.f32.mxu0 %v497
        %1303 = vmatmul.mubr.f32.gmra.mrb[0].mxu0 %v496
        %v1304 = vpop.f32.mrb[0].mxu0
        %v1305 = vadd.f32 %v721, %v1304
        %v1306 = vpop.f32.mrb[0].mxu0
        %1307 = vmatprep.mubr.f32.mxu0 %v501
        %1308 = vmatmul.mubr.f32.gmra.mrb[0].mxu0 %v500
        %v1309 = vpop.f32.mrb[0].mxu0
        %v1310 = vadd.f32 %v721, %v1309
        %v1311 = vpop.f32.mrb[0].mxu0
        %1312 = vmatprep.mubr.f32.mxu0 %v505
        %1313 = vmatmul.mubr.f32.gmra.mrb[0].mxu0 %v504
        %v1314 = vpop.f32.mrb[0].mxu0
        %v1315 = vadd.f32 %v721, %v1314
        %v1316 = vpop.f32.mrb[0].mxu0
        %1317 = vmatprep.mubr.f32.mxu0 %v509
        %1318 = vmatmul.mubr.f32.gmra.mrb[0].mxu0 %v508
        %v1319 = vpop.f32.mrb[0].mxu0
        %v1320 = vadd.f32 %v721, %v1319
        %v1321 = vpop.f32.mrb[0].mxu0
        %1322 = vmatprep.mubr.f32.mxu0 %v513
        %1323 = vmatmul.mubr.f32.gmra.mrb[0].mxu0 %v512
        %v1324 = vpop.f32.mrb[0].mxu0
        %v1325 = vadd.f32 %v721, %v1324
        %v1326 = vpop.f32.mrb[0].mxu0
        %1327 = vdwg.mxu0
        %1328 = vmatprep.subr.mxu0 0.0
        %1329 = vmatpush1.msra.mxu0 %v614
        %1330 = vmatprep.subr.mxu0 0.0
        %1331 = vmatpush1.msra.mxu0 %v617
        %1332 = vmatprep.subr.mxu0 0.0
        %1333 = vmatpush1.msra.mxu0 %v620
        %1334 = vmatprep.subr.mxu0 0.0
        %1335 = vmatpush1.msra.mxu0 %v623
        %1336 = vmatprep.subr.mxu0 0.0
        %1337 = vmatpush1.msra.mxu0 %v626
        %1338 = vmatprep.subr.mxu0 0.0
        %1339 = vmatpush1.msra.mxu0 %v629
        %1340 = vmatprep.subr.mxu0 0.0
        %1341 = vmatpush1.msra.mxu0 %v632
        %1342 = vmatprep.subr.mxu0 0.0
        %1343 = vmatpush1.msra.mxu0 %v635
        %1344 = vmatprep.subr.mxu0 0.0
        %1345 = vmatpush1.msra.mxu0 %v638
        %1346 = vmatprep.subr.mxu0 0.0
        %1347 = vmatpush1.msra.mxu0 %v641
        %1348 = vmatprep.subr.mxu0 0.0
        %1349 = vmatpush1.msra.mxu0 %v644
        %1350 = vmatprep.subr.mxu0 0.0
        %1351 = vmatpush1.msra.mxu0 %v647
        %1352 = vmatprep.subr.mxu0 0.0
        %1353 = vmatpush1.msra.mxu0 %v650
        %1354 = vmatprep.subr.mxu0 0.0
        %1355 = vmatpush1.msra.mxu0 %v653
        %1356 = vmatprep.subr.mxu0 0.0
        %1357 = vmatpush1.msra.mxu0 %v656
        %1358 = vmatprep.subr.mxu0 0.0
        %1359 = vmatpush1.msra.mxu0 %v659
        %1360 = vmatprep.subr.mxu0 0.0
        %1361 = vmatpush1.msra.mxu0 %v662
        %1362 = vmatprep.subr.mxu0 0.0
        %1363 = vmatpush1.msra.mxu0 %v665
        %1364 = vmatprep.subr.mxu0 0.0
        %1365 = vmatpush1.msra.mxu0 %v668
        %1366 = vmatprep.subr.mxu0 0.0
        %1367 = vmatpush1.msra.mxu0 %v671
        %1368 = vmatprep.subr.mxu0 0.0
        %1369 = vmatpush1.msra.mxu0 %v674
        %1370 = vmatprep.subr.mxu0 0.0
        %1371 = vmatpush1.msra.mxu0 %v677
        %1372 = vmatprep.subr.mxu0 0.0
        %1373 = vmatpush1.msra.mxu0 %v680
        %1374 = vmatprep.subr.mxu0 0.0
        %1375 = vmatpush1.msra.mxu0 %v683
        %1376 = vmatprep.subr.mxu0 0.0
        %1377 = vmatpush1.msra.mxu0 %v686
        %1378 = vmatprep.subr.mxu0 0.0
        %1379 = vmatpush1.msra.mxu0 %v689
        %1380 = vmatprep.subr.mxu0 0.0
        %1381 = vmatpush1.msra.mxu0 %v692
        %1382 = vmatprep.subr.mxu0 0.0
        %1383 = vmatpush1.msra.mxu0 %v695
        %1384 = vmatprep.subr.mxu0 0.0
        %1385 = vmatpush1.msra.mxu0 %v698
        %1386 = vmatprep.subr.mxu0 0.0
        %1387 = vmatpush1.msra.mxu0 %v701
        %1388 = vmatprep.subr.mxu0 0.0
        %1389 = vmatpush1.msra.mxu0 %v704
        %1390 = vmatprep.subr.mxu0 0.0
        %1391 = vmatpush1.msra.mxu0 %v707
        %1392 = vmatprep.mubr.f32.mxu0 %v423
        %1393 = vmatmul.mubr.f32.gmra.mrb[0].mxu0 %v422
        %v1394 = vpop.f32.mrb[0].mxu0
        %v1395 = vadd.f32 %v1210, %v1394
        %v1396 = vpop.f32.mrb[0].mxu0
        %1397 = vmatprep.mubr.f32.mxu0 %v427
        %1398 = vmatmul.mubr.f32.gmra.mrb[0].mxu0 %v426
        %v1399 = vpop.f32.mrb[0].mxu0
        %v1400 = vadd.f32 %v1215, %v1399
        %v1401 = vpop.f32.mrb[0].mxu0
        %1402 = vmatprep.mubr.f32.mxu0 %v431
        %1403 = vmatmul.mubr.f32.gmra.mrb[0].mxu0 %v430
        %v1404 = vpop.f32.mrb[0].mxu0
        %v1405 = vadd.f32 %v1220, %v1404
        %v1406 = vpop.f32.mrb[0].mxu0
        %1407 = vmatprep.mubr.f32.mxu0 %v435
        %1408 = vmatmul.mubr.f32.gmra.mrb[0].mxu0 %v434
        %v1409 = vpop.f32.mrb[0].mxu0
        %v1410 = vadd.f32 %v1225, %v1409
        %v1411 = vpop.f32.mrb[0].mxu0
        %1412 = vmatprep.mubr.f32.mxu0 %v439
        %1413 = vmatmul.mubr.f32.gmra.mrb[0].mxu0 %v438
        %v1414 = vpop.f32.mrb[0].mxu0
        %v1415 = vadd.f32 %v1230, %v1414
        %v1416 = vpop.f32.mrb[0].mxu0
        %1417 = vmatprep.mubr.f32.mxu0 %v443
        %1418 = vmatmul.mubr.f32.gmra.mrb[0].mxu0 %v442
        %v1419 = vpop.f32.mrb[0].mxu0
        %v1420 = vadd.f32 %v1235, %v1419
        %v1421 = vpop.f32.mrb[0].mxu0
        %1422 = vmatprep.mubr.f32.mxu0 %v447
        %1423 = vmatmul.mubr.f32.gmra.mrb[0].mxu0 %v446
        %v1424 = vpop.f32.mrb[0].mxu0
        %v1425 = vadd.f32 %v1240, %v1424
        %v1426 = vpop.f32.mrb[0].mxu0
        %1427 = vmatprep.mubr.f32.mxu0 %v451
        %1428 = vmatmul.mubr.f32.gmra.mrb[0].mxu0 %v450
        %v1429 = vpop.f32.mrb[0].mxu0
        %v1430 = vadd.f32 %v1245, %v1429
        %v1431 = vpop.f32.mrb[0].mxu0
        %1432 = vmatprep.mubr.f32.mxu0 %v455
        %1433 = vmatmul.mubr.f32.gmra.mrb[0].mxu0 %v454
        %v1434 = vpop.f32.mrb[0].mxu0
        %v1435 = vadd.f32 %v1250, %v1434
        %v1436 = vpop.f32.mrb[0].mxu0
        %1437 = vmatprep.mubr.f32.mxu0 %v459
        %1438 = vmatmul.mubr.f32.gmra.mrb[0].mxu0 %v458
        %v1439 = vpop.f32.mrb[0].mxu0
        %v1440 = vadd.f32 %v1255, %v1439
        %v1441 = vpop.f32.mrb[0].mxu0
        %1442 = vmatprep.mubr.f32.mxu0 %v463
        %1443 = vmatmul.mubr.f32.gmra.mrb[0].mxu0 %v462
        %v1444 = vpop.f32.mrb[0].mxu0
        %v1445 = vadd.f32 %v1260, %v1444
        %v1446 = vpop.f32.mrb[0].mxu0
        %1447 = vmatprep.mubr.f32.mxu0 %v467
        %1448 = vmatmul.mubr.f32.gmra.mrb[0].mxu0 %v466
        %v1449 = vpop.f32.mrb[0].mxu0
        %v1450 = vadd.f32 %v1265, %v1449
        %v1451 = vpop.f32.mrb[0].mxu0
        %1452 = vmatprep.mubr.f32.mxu0 %v471
        %1453 = vmatmul.mubr.f32.gmra.mrb[0].mxu0 %v470
        %v1454 = vpop.f32.mrb[0].mxu0
        %v1455 = vadd.f32 %v1270, %v1454
        %v1456 = vpop.f32.mrb[0].mxu0
        %1457 = vmatprep.mubr.f32.mxu0 %v475
        %1458 = vmatmul.mubr.f32.gmra.mrb[0].mxu0 %v474
        %v1459 = vpop.f32.mrb[0].mxu0
        %v1460 = vadd.f32 %v1275, %v1459
        %v1461 = vpop.f32.mrb[0].mxu0
        %1462 = vmatprep.mubr.f32.mxu0 %v479
        %1463 = vmatmul.mubr.f32.gmra.mrb[0].mxu0 %v478
        %v1464 = vpop.f32.mrb[0].mxu0
        %v1465 = vadd.f32 %v1280, %v1464
        %v1466 = vpop.f32.mrb[0].mxu0
        %1467 = vmatprep.mubr.f32.mxu0 %v483
        %1468 = vmatmul.mubr.f32.gmra.mrb[0].mxu0 %v482
        %v1469 = vpop.f32.mrb[0].mxu0
        %v1470 = vadd.f32 %v1285, %v1469
        %v1471 = vpop.f32.mrb[0].mxu0
        %1472 = vmatprep.mubr.f32.mxu0 %v487
        %1473 = vmatmul.mubr.f32.gmra.mrb[0].mxu0 %v486
        %v1474 = vpop.f32.mrb[0].mxu0
        %v1475 = vadd.f32 %v1290, %v1474
        %v1476 = vpop.f32.mrb[0].mxu0
        %1477 = vmatprep.mubr.f32.mxu0 %v491
        %1478 = vmatmul.mubr.f32.gmra.mrb[0].mxu0 %v490
        %v1479 = vpop.f32.mrb[0].mxu0
        %v1480 = vadd.f32 %v1295, %v1479
        %v1481 = vpop.f32.mrb[0].mxu0
        %1482 = vmatprep.mubr.f32.mxu0 %v495
        %1483 = vmatmul.mubr.f32.gmra.mrb[0].mxu0 %v494
        %v1484 = vpop.f32.mrb[0].mxu0
        %v1485 = vadd.f32 %v1300, %v1484
        %v1486 = vpop.f32.mrb[0].mxu0
        %1487 = vmatprep.mubr.f32.mxu0 %v499
        %1488 = vmatmul.mubr.f32.gmra.mrb[0].mxu0 %v498
        %v1489 = vpop.f32.mrb[0].mxu0
        %v1490 = vadd.f32 %v1305, %v1489
        %v1491 = vpop.f32.mrb[0].mxu0
        %1492 = vmatprep.mubr.f32.mxu0 %v503
        %1493 = vmatmul.mubr.f32.gmra.mrb[0].mxu0 %v502
        %v1494 = vpop.f32.mrb[0].mxu0
        %v1495 = vadd.f32 %v1310, %v1494
        %v1496 = vpop.f32.mrb[0].mxu0
        %1497 = vmatprep.mubr.f32.mxu0 %v507
        %1498 = vmatmul.mubr.f32.gmra.mrb[0].mxu0 %v506
        %v1499 = vpop.f32.mrb[0].mxu0
        %v1500 = vadd.f32 %v1315, %v1499
        %v1501 = vpop.f32.mrb[0].mxu0
        %1502 = vmatprep.mubr.f32.mxu0 %v511
        %1503 = vmatmul.mubr.f32.gmra.mrb[0].mxu0 %v510
        %v1504 = vpop.f32.mrb[0].mxu0
        %v1505 = vadd.f32 %v1320, %v1504
        %v1506 = vpop.f32.mrb[0].mxu0
        %1507 = vmatprep.mubr.f32.mxu0 %v515
        %1508 = vmatmul.mubr.f32.gmra.mrb[0].mxu0 %v514
        %v1509 = vpop.f32.mrb[0].mxu0
        %v1510 = vadd.f32 %v1325, %v1509
        %v1511 = vpop.f32.mrb[0].mxu0
        %1512 = vdwg.mxu0
        %v1513 = vmax.f32 %v1001, 0.0
        %v1514 = vmax.f32 %v1003, 0.0
        %v1515 = vmax.f32 %v1395, 0.0
        %v1516 = vmax.f32 %v1007, 0.0
        %v1517 = vmax.f32 %v1009, 0.0
        %v1518 = vmax.f32 %v1400, 0.0
        %v1519 = vmax.f32 %v1013, 0.0
        %v1520 = vmax.f32 %v1015, 0.0
        %v1521 = vmax.f32 %v1405, 0.0
        %v1522 = vmax.f32 %v1019, 0.0
        %v1523 = vmax.f32 %v1021, 0.0
        %v1524 = vmax.f32 %v1410, 0.0
        %v1525 = vmax.f32 %v1025, 0.0
        %v1526 = vmax.f32 %v1027, 0.0
        %v1527 = vmax.f32 %v1415, 0.0
        %v1528 = vmax.f32 %v1031, 0.0
        %v1529 = vmax.f32 %v1033, 0.0
        %v1530 = vmax.f32 %v1420, 0.0
        %v1531 = vmax.f32 %v1037, 0.0
        %v1532 = vmax.f32 %v1039, 0.0
        %v1533 = vmax.f32 %v1425, 0.0
        %v1534 = vmax.f32 %v1043, 0.0
        %v1535 = vmax.f32 %v1045, 0.0
        %v1536 = vmax.f32 %v1430, 0.0
        %v1537 = vmax.f32 %v1049, 0.0
        %v1538 = vmax.f32 %v1051, 0.0
        %v1539 = vmax.f32 %v1435, 0.0
        %v1540 = vmax.f32 %v1055, 0.0
        %v1541 = vmax.f32 %v1057, 0.0
        %v1542 = vmax.f32 %v1440, 0.0
        %v1543 = vmax.f32 %v1061, 0.0
        %v1544 = vmax.f32 %v1063, 0.0
        %v1545 = vmax.f32 %v1445, 0.0
        %v1546 = vmax.f32 %v1067, 0.0
        %v1547 = vmax.f32 %v1069, 0.0
        %v1548 = vmax.f32 %v1450, 0.0
        %v1549 = vmax.f32 %v1073, 0.0
        %v1550 = vmax.f32 %v1075, 0.0
        %v1551 = vmax.f32 %v1455, 0.0
        %v1552 = vmax.f32 %v1079, 0.0
        %v1553 = vmax.f32 %v1081, 0.0
        %v1554 = vmax.f32 %v1460, 0.0
        %v1555 = vmax.f32 %v1085, 0.0
        %v1556 = vmax.f32 %v1087, 0.0
        %v1557 = vmax.f32 %v1465, 0.0
        %v1558 = vmax.f32 %v1091, 0.0
        %v1559 = vmax.f32 %v1093, 0.0
        %v1560 = vmax.f32 %v1470, 0.0
        %v1561 = vmax.f32 %v1097, 0.0
        %v1562 = vmax.f32 %v1099, 0.0
        %v1563 = vmax.f32 %v1475, 0.0
        %v1564 = vmax.f32 %v1103, 0.0
        %v1565 = vmax.f32 %v1105, 0.0
        %v1566 = vmax.f32 %v1480, 0.0
        %v1567 = vmax.f32 %v1109, 0.0
        %v1568 = vmax.f32 %v1111, 0.0
        %v1569 = vmax.f32 %v1485, 0.0
        %v1570 = vmax.f32 %v1115, 0.0
        %v1571 = vmax.f32 %v1117, 0.0
        %v1572 = vmax.f32 %v1490, 0.0
        %v1573 = vmax.f32 %v1121, 0.0
        %v1574 = vmax.f32 %v1123, 0.0
        %v1575 = vmax.f32 %v1495, 0.0
        %v1576 = vmax.f32 %v1127, 0.0
        %v1577 = vmax.f32 %v1129, 0.0
        %v1578 = vmax.f32 %v1500, 0.0
        %v1579 = vmax.f32 %v1133, 0.0
        %v1580 = vmax.f32 %v1135, 0.0
        %v1581 = vmax.f32 %v1505, 0.0
        %v1582 = vmax.f32 %v1139, 0.0
        %v1583 = vmax.f32 %v1141, 0.0
        %v1584 = vmax.f32 %v1510, 0.0
        %v1585 = vld [vmem:[%s3] sm:$0xff]
        %v1586 = vld [vmem:[%s3 + $0x8] sm:$0xff]
        %v1587 = vld [vmem:[%s3 + $0x10] sm:$0xff]
        %v1588 = vld [vmem:[%s3 + $0x18] sm:$0xff]
        %v1589 = vld [vmem:[%s3 + $0x20] sm:$0xff]
        %v1590 = vld [vmem:[%s3 + $0x28] sm:$0xff]
        %v1591 = vld [vmem:[%s3 + $0x30] sm:$0xff]
        %v1592 = vld [vmem:[%s3 + $0x38] sm:$0xff]
        %v1593 = vld [vmem:[%s3 + $0x40] sm:$0xff]
        %v1594 = vmul.f32 %v1513, %v1585
        %v1595 = vmul.f32 %v1514, %v1586
        %v1596 = vmul.f32 %v1515, %v1587
        %v1597 = vmul.f32 %v1516, %v1588
        %v1598 = vmul.f32 %v1517, %v1589
        %v1599 = vmul.f32 %v1518, %v1590
        %v1600 = vmul.f32 %v1519, %v1591
        %v1601 = vmul.f32 %v1520, %v1592
        %v1602 = vmul.f32 %v1521, %v1593
        %v1603 = vmul.f32 %v1522, %v1585
        %v1604 = vmul.f32 %v1523, %v1586
        %v1605 = vmul.f32 %v1524, %v1587
        %v1606 = vmul.f32 %v1525, %v1588
        %v1607 = vmul.f32 %v1526, %v1589
        %v1608 = vmul.f32 %v1527, %v1590
        %v1609 = vmul.f32 %v1528, %v1591
        %v1610 = vmul.f32 %v1529, %v1592
        %v1611 = vmul.f32 %v1530, %v1593
        %v1612 = vmul.f32 %v1531, %v1585
        %v1613 = vmul.f32 %v1532, %v1586
        %v1614 = vmul.f32 %v1533, %v1587
        %v1615 = vmul.f32 %v1534, %v1588
        %v1616 = vmul.f32 %v1535, %v1589
        %v1617 = vmul.f32 %v1536, %v1590
        %v1618 = vmul.f32 %v1537, %v1591
        %v1619 = vmul.f32 %v1538, %v1592
        %v1620 = vmul.f32 %v1539, %v1593
        %v1621 = vmul.f32 %v1540, %v1585
        %v1622 = vmul.f32 %v1541, %v1586
        %v1623 = vmul.f32 %v1542, %v1587
        %v1624 = vmul.f32 %v1543, %v1588
        %v1625 = vmul.f32 %v1544, %v1589
        %v1626 = vmul.f32 %v1545, %v1590
        %v1627 = vmul.f32 %v1546, %v1591
        %v1628 = vmul.f32 %v1547, %v1592
        %v1629 = vmul.f32 %v1548, %v1593
        %v1630 = vmul.f32 %v1549, %v1585
        %v1631 = vmul.f32 %v1550, %v1586
        %v1632 = vmul.f32 %v1551, %v1587
        %v1633 = vmul.f32 %v1552, %v1588
        %v1634 = vmul.f32 %v1553, %v1589
        %v1635 = vmul.f32 %v1554, %v1590
        %v1636 = vmul.f32 %v1555, %v1591
        %v1637 = vmul.f32 %v1556, %v1592
        %v1638 = vmul.f32 %v1557, %v1593
        %v1639 = vmul.f32 %v1558, %v1585
        %v1640 = vmul.f32 %v1559, %v1586
        %v1641 = vmul.f32 %v1560, %v1587
        %v1642 = vmul.f32 %v1561, %v1588
        %v1643 = vmul.f32 %v1562, %v1589
        %v1644 = vmul.f32 %v1563, %v1590
        %v1645 = vmul.f32 %v1564, %v1591
        %v1646 = vmul.f32 %v1565, %v1592
        %v1647 = vmul.f32 %v1566, %v1593
        %v1648 = vmul.f32 %v1567, %v1585
        %v1649 = vmul.f32 %v1568, %v1586
        %v1650 = vmul.f32 %v1569, %v1587
        %v1651 = vmul.f32 %v1570, %v1588
        %v1652 = vmul.f32 %v1571, %v1589
        %v1653 = vmul.f32 %v1572, %v1590
        %v1654 = vmul.f32 %v1573, %v1591
        %v1655 = vmul.f32 %v1574, %v1592
        %v1656 = vmul.f32 %v1575, %v1593
        %v1657 = vmul.f32 %v1576, %v1585
        %v1658 = vmul.f32 %v1577, %v1586
        %v1659 = vmul.f32 %v1578, %v1587
        %v1660 = vmul.f32 %v1579, %v1588
        %v1661 = vmul.f32 %v1580, %v1589
        %v1662 = vmul.f32 %v1581, %v1590
        %v1663 = vmul.f32 %v1582, %v1591
        %v1664 = vmul.f32 %v1583, %v1592
        %v1665 = vmul.f32 %v1584, %v1593
        %v1666 = vmax.f32 %v1594, %v1597
        %v1667 = vmax.f32 %v1666, %v1600
        %v1668 = vrot.slane %v1667, 4
        %v1669 = vmax.f32 %v1667, %v1668
        %v1670 = vrot.slane %v1669, 2
        %v1671 = vmax.f32 %v1669, %v1670
        %v1672 = vrot.slane %v1671, 1
        %v1673 = vmax.f32 %v1671, %v1672
        %v1674 = vmax.f32 %v1595, %v1598
        %v1675 = vmax.f32 %v1674, %v1601
        %v1676 = vrot.slane %v1675, 4
        %v1677 = vmax.f32 %v1675, %v1676
        %v1678 = vrot.slane %v1677, 2
        %v1679 = vmax.f32 %v1677, %v1678
        %v1680 = vrot.slane %v1679, 1
        %v1681 = vmax.f32 %v1679, %v1680
        %v1682 = vmax.f32 %v1596, %v1599
        %v1683 = vmax.f32 %v1682, %v1602
        %v1684 = vrot.slane %v1683, 4
        %v1685 = vmax.f32 %v1683, %v1684
        %v1686 = vrot.slane %v1685, 2
        %v1687 = vmax.f32 %v1685, %v1686
        %v1688 = vrot.slane %v1687, 1
        %v1689 = vmax.f32 %v1687, %v1688
        %v1690 = vmax.f32 %v1603, %v1606
        %v1691 = vmax.f32 %v1690, %v1609
        %v1692 = vrot.slane %v1691, 4
        %v1693 = vmax.f32 %v1691, %v1692
        %v1694 = vrot.slane %v1693, 2
        %v1695 = vmax.f32 %v1693, %v1694
        %v1696 = vrot.slane %v1695, 1
        %v1697 = vmax.f32 %v1695, %v1696
        %v1698 = vmax.f32 %v1604, %v1607
        %v1699 = vmax.f32 %v1698, %v1610
        %v1700 = vrot.slane %v1699, 4
        %v1701 = vmax.f32 %v1699, %v1700
        %v1702 = vrot.slane %v1701, 2
        %v1703 = vmax.f32 %v1701, %v1702
        %v1704 = vrot.slane %v1703, 1
        %v1705 = vmax.f32 %v1703, %v1704
        %v1706 = vmax.f32 %v1605, %v1608
        %v1707 = vmax.f32 %v1706, %v1611
        %v1708 = vrot.slane %v1707, 4
        %v1709 = vmax.f32 %v1707, %v1708
        %v1710 = vrot.slane %v1709, 2
        %v1711 = vmax.f32 %v1709, %v1710
        %v1712 = vrot.slane %v1711, 1
        %v1713 = vmax.f32 %v1711, %v1712
        %v1714 = vmax.f32 %v1612, %v1615
        %v1715 = vmax.f32 %v1714, %v1618
        %v1716 = vrot.slane %v1715, 4
        %v1717 = vmax.f32 %v1715, %v1716
        %v1718 = vrot.slane %v1717, 2
        %v1719 = vmax.f32 %v1717, %v1718
        %v1720 = vrot.slane %v1719, 1
        %v1721 = vmax.f32 %v1719, %v1720
        %v1722 = vmax.f32 %v1613, %v1616
        %v1723 = vmax.f32 %v1722, %v1619
        %v1724 = vrot.slane %v1723, 4
        %v1725 = vmax.f32 %v1723, %v1724
        %v1726 = vrot.slane %v1725, 2
        %v1727 = vmax.f32 %v1725, %v1726
        %v1728 = vrot.slane %v1727, 1
        %v1729 = vmax.f32 %v1727, %v1728
        %v1730 = vmax.f32 %v1614, %v1617
        %v1731 = vmax.f32 %v1730, %v1620
        %v1732 = vrot.slane %v1731, 4
        %v1733 = vmax.f32 %v1731, %v1732
        %v1734 = vrot.slane %v1733, 2
        %v1735 = vmax.f32 %v1733, %v1734
        %v1736 = vrot.slane %v1735, 1
        %v1737 = vmax.f32 %v1735, %v1736
        %v1738 = vmax.f32 %v1621, %v1624
        %v1739 = vmax.f32 %v1738, %v1627
        %v1740 = vrot.slane %v1739, 4
        %v1741 = vmax.f32 %v1739, %v1740
        %v1742 = vrot.slane %v1741, 2
        %v1743 = vmax.f32 %v1741, %v1742
        %v1744 = vrot.slane %v1743, 1
        %v1745 = vmax.f32 %v1743, %v1744
        %v1746 = vmax.f32 %v1622, %v1625
        %v1747 = vmax.f32 %v1746, %v1628
        %v1748 = vrot.slane %v1747, 4
        %v1749 = vmax.f32 %v1747, %v1748
        %v1750 = vrot.slane %v1749, 2
        %v1751 = vmax.f32 %v1749, %v1750
        %v1752 = vrot.slane %v1751, 1
        %v1753 = vmax.f32 %v1751, %v1752
        %v1754 = vmax.f32 %v1623, %v1626
        %v1755 = vmax.f32 %v1754, %v1629
        %v1756 = vrot.slane %v1755, 4
        %v1757 = vmax.f32 %v1755, %v1756
        %v1758 = vrot.slane %v1757, 2
        %v1759 = vmax.f32 %v1757, %v1758
        %v1760 = vrot.slane %v1759, 1
        %v1761 = vmax.f32 %v1759, %v1760
        %v1762 = vmax.f32 %v1630, %v1633
        %v1763 = vmax.f32 %v1762, %v1636
        %v1764 = vrot.slane %v1763, 4
        %v1765 = vmax.f32 %v1763, %v1764
        %v1766 = vrot.slane %v1765, 2
        %v1767 = vmax.f32 %v1765, %v1766
        %v1768 = vrot.slane %v1767, 1
        %v1769 = vmax.f32 %v1767, %v1768
        %v1770 = vmax.f32 %v1631, %v1634
        %v1771 = vmax.f32 %v1770, %v1637
        %v1772 = vrot.slane %v1771, 4
        %v1773 = vmax.f32 %v1771, %v1772
        %v1774 = vrot.slane %v1773, 2
        %v1775 = vmax.f32 %v1773, %v1774
        %v1776 = vrot.slane %v1775, 1
        %v1777 = vmax.f32 %v1775, %v1776
        %v1778 = vmax.f32 %v1632, %v1635
        %v1779 = vmax.f32 %v1778, %v1638
        %v1780 = vrot.slane %v1779, 4
        %v1781 = vmax.f32 %v1779, %v1780
        %v1782 = vrot.slane %v1781, 2
        %v1783 = vmax.f32 %v1781, %v1782
        %v1784 = vrot.slane %v1783, 1
        %v1785 = vmax.f32 %v1783, %v1784
        %v1786 = vmax.f32 %v1639, %v1642
        %v1787 = vmax.f32 %v1786, %v1645
        %v1788 = vrot.slane %v1787, 4
        %v1789 = vmax.f32 %v1787, %v1788
        %v1790 = vrot.slane %v1789, 2
        %v1791 = vmax.f32 %v1789, %v1790
        %v1792 = vrot.slane %v1791, 1
        %v1793 = vmax.f32 %v1791, %v1792
        %v1794 = vmax.f32 %v1640, %v1643
        %v1795 = vmax.f32 %v1794, %v1646
        %v1796 = vrot.slane %v1795, 4
        %v1797 = vmax.f32 %v1795, %v1796
        %v1798 = vrot.slane %v1797, 2
        %v1799 = vmax.f32 %v1797, %v1798
        %v1800 = vrot.slane %v1799, 1
        %v1801 = vmax.f32 %v1799, %v1800
        %v1802 = vmax.f32 %v1641, %v1644
        %v1803 = vmax.f32 %v1802, %v1647
        %v1804 = vrot.slane %v1803, 4
        %v1805 = vmax.f32 %v1803, %v1804
        %v1806 = vrot.slane %v1805, 2
        %v1807 = vmax.f32 %v1805, %v1806
        %v1808 = vrot.slane %v1807, 1
        %v1809 = vmax.f32 %v1807, %v1808
        %v1810 = vmax.f32 %v1648, %v1651
        %v1811 = vmax.f32 %v1810, %v1654
        %v1812 = vrot.slane %v1811, 4
        %v1813 = vmax.f32 %v1811, %v1812
        %v1814 = vrot.slane %v1813, 2
        %v1815 = vmax.f32 %v1813, %v1814
        %v1816 = vrot.slane %v1815, 1
        %v1817 = vmax.f32 %v1815, %v1816
        %v1818 = vmax.f32 %v1649, %v1652
        %v1819 = vmax.f32 %v1818, %v1655
        %v1820 = vrot.slane %v1819, 4
        %v1821 = vmax.f32 %v1819, %v1820
        %v1822 = vrot.slane %v1821, 2
        %v1823 = vmax.f32 %v1821, %v1822
        %v1824 = vrot.slane %v1823, 1
        %v1825 = vmax.f32 %v1823, %v1824
        %v1826 = vmax.f32 %v1650, %v1653
        %v1827 = vmax.f32 %v1826, %v1656
        %v1828 = vrot.slane %v1827, 4
        %v1829 = vmax.f32 %v1827, %v1828
        %v1830 = vrot.slane %v1829, 2
        %v1831 = vmax.f32 %v1829, %v1830
        %v1832 = vrot.slane %v1831, 1
        %v1833 = vmax.f32 %v1831, %v1832
        %v1834 = vmax.f32 %v1657, %v1660
        %v1835 = vmax.f32 %v1834, %v1663
        %v1836 = vrot.slane %v1835, 4
        %v1837 = vmax.f32 %v1835, %v1836
        %v1838 = vrot.slane %v1837, 2
        %v1839 = vmax.f32 %v1837, %v1838
        %v1840 = vrot.slane %v1839, 1
        %v1841 = vmax.f32 %v1839, %v1840
        %v1842 = vmax.f32 %v1658, %v1661
        %v1843 = vmax.f32 %v1842, %v1664
        %v1844 = vrot.slane %v1843, 4
        %v1845 = vmax.f32 %v1843, %v1844
        %v1846 = vrot.slane %v1845, 2
        %v1847 = vmax.f32 %v1845, %v1846
        %v1848 = vrot.slane %v1847, 1
        %v1849 = vmax.f32 %v1847, %v1848
        %v1850 = vmax.f32 %v1659, %v1662
        %v1851 = vmax.f32 %v1850, %v1665
        %v1852 = vrot.slane %v1851, 4
        %v1853 = vmax.f32 %v1851, %v1852
        %v1854 = vrot.slane %v1853, 2
        %v1855 = vmax.f32 %v1853, %v1854
        %v1856 = vrot.slane %v1855, 1
        %v1857 = vmax.f32 %v1855, %v1856
        %v1858 = vld [vmem:[#allocation7] sm:$0xff]
        %v1859 = vld [vmem:[#allocation7 + $0x8] sm:$0xff]
        %v1860 = vld [vmem:[#allocation7 + $0x10] sm:$0xff]
        %v1861 = vld [vmem:[#allocation7 + $0x18] sm:$0xff]
        %v1862 = vld [vmem:[#allocation7 + $0x20] sm:$0xff]
        %v1863 = vld [vmem:[#allocation7 + $0x28] sm:$0xff]
        %v1864 = vld [vmem:[#allocation7 + $0x30] sm:$0xff]
        %v1865 = vld [vmem:[#allocation7 + $0x38] sm:$0xff]
        %v1866 = vld [vmem:[#allocation7 + $0x40] sm:$0xff]
        %v1867 = vld [vmem:[#allocation7 + $0x48] sm:$0xff]
        %v1868 = vld [vmem:[#allocation7 + $0x50] sm:$0xff]
        %v1869 = vld [vmem:[#allocation7 + $0x58] sm:$0xff]
        %v1870 = vld [vmem:[#allocation7 + $0x60] sm:$0xff]
        %v1871 = vld [vmem:[#allocation7 + $0x68] sm:$0xff]
        %v1872 = vld [vmem:[#allocation7 + $0x70] sm:$0xff]
        %v1873 = vld [vmem:[#allocation7 + $0x78] sm:$0xff]
        %v1874 = vld [vmem:[#allocation7 + $0x80] sm:$0xff]
        %v1875 = vld [vmem:[#allocation7 + $0x88] sm:$0xff]
        %v1876 = vld [vmem:[#allocation7 + $0x90] sm:$0xff]
        %v1877 = vld [vmem:[#allocation7 + $0x98] sm:$0xff]
        %v1878 = vld [vmem:[#allocation7 + $0xa0] sm:$0xff]
        %v1879 = vld [vmem:[#allocation7 + $0xa8] sm:$0xff]
        %v1880 = vld [vmem:[#allocation7 + $0xb0] sm:$0xff]
        %v1881 = vld [vmem:[#allocation7 + $0xb8] sm:$0xff]
        %v1882 = vld [vmem:[#allocation7 + $0xc0] sm:$0xff]
        %v1883 = vld [vmem:[#allocation7 + $0xc8] sm:$0xff]
        %v1884 = vld [vmem:[#allocation7 + $0xd0] sm:$0xff]
        %v1885 = vld [vmem:[#allocation7 + $0xd8] sm:$0xff]
        %v1886 = vld [vmem:[#allocation7 + $0xe0] sm:$0xff]
        %v1887 = vld [vmem:[#allocation7 + $0xe8] sm:$0xff]
        %v1888 = vld [vmem:[#allocation7 + $0xf0] sm:$0xff]
        %v1889 = vld [vmem:[#allocation7 + $0xf8] sm:$0xff]
        %v1890 = vld [vmem:[#allocation7 + $0x100] sm:$0xff]
        %v1891 = vld [vmem:[#allocation7 + $0x108] sm:$0xff]
        %v1892 = vld [vmem:[#allocation7 + $0x110] sm:$0xff]
        %v1893 = vld [vmem:[#allocation7 + $0x118] sm:$0xff]
        %v1894 = vld [vmem:[#allocation7 + $0x120] sm:$0xff]
        %v1895 = vld [vmem:[#allocation7 + $0x128] sm:$0xff]
        %v1896 = vld [vmem:[#allocation7 + $0x130] sm:$0xff]
        %v1897 = vld [vmem:[#allocation7 + $0x138] sm:$0xff]
        %v1898 = vld [vmem:[#allocation7 + $0x140] sm:$0xff]
        %v1899 = vld [vmem:[#allocation7 + $0x148] sm:$0xff]
        %v1900 = vld [vmem:[#allocation7 + $0x150] sm:$0xff]
        %v1901 = vld [vmem:[#allocation7 + $0x158] sm:$0xff]
        %v1902 = vld [vmem:[#allocation7 + $0x160] sm:$0xff]
        %v1903 = vld [vmem:[#allocation7 + $0x168] sm:$0xff]
        %v1904 = vld [vmem:[#allocation7 + $0x170] sm:$0xff]
        %v1905 = vld [vmem:[#allocation7 + $0x178] sm:$0xff]
        %v1906 = vld [vmem:[#allocation7 + $0x180] sm:$0xff]
        %v1907 = vld [vmem:[#allocation7 + $0x188] sm:$0xff]
        %v1908 = vld [vmem:[#allocation7 + $0x190] sm:$0xff]
        %v1909 = vld [vmem:[#allocation7 + $0x198] sm:$0xff]
        %v1910 = vld [vmem:[#allocation7 + $0x1a0] sm:$0xff]
        %v1911 = vld [vmem:[#allocation7 + $0x1a8] sm:$0xff]
        %v1912 = vld [vmem:[#allocation7 + $0x1b0] sm:$0xff]
        %v1913 = vld [vmem:[#allocation7 + $0x1b8] sm:$0xff]
        %v1914 = vld [vmem:[#allocation7 + $0x1c0] sm:$0xff]
        %v1915 = vld [vmem:[#allocation7 + $0x1c8] sm:$0xff]
        %v1916 = vld [vmem:[#allocation7 + $0x1d0] sm:$0xff]
        %v1917 = vld [vmem:[#allocation7 + $0x1d8] sm:$0xff]
        %v1918 = vld [vmem:[#allocation7 + $0x1e0] sm:$0xff]
        %v1919 = vld [vmem:[#allocation7 + $0x1e8] sm:$0xff]
        %v1920 = vld [vmem:[#allocation7 + $0x1f0] sm:$0xff]
        %v1921 = vld [vmem:[#allocation7 + $0x1f8] sm:$0xff]
        %v1922 = vld [vmem:[#allocation7 + $0x200] sm:$0xff]
        %v1923 = vld [vmem:[#allocation7 + $0x208] sm:$0xff]
        %v1924 = vld [vmem:[#allocation7 + $0x210] sm:$0xff]
        %v1925 = vld [vmem:[#allocation7 + $0x218] sm:$0xff]
        %v1926 = vld [vmem:[#allocation7 + $0x220] sm:$0xff]
        %v1927 = vld [vmem:[#allocation7 + $0x228] sm:$0xff]
        %v1928 = vld [vmem:[#allocation7 + $0x230] sm:$0xff]
        %v1929 = vld [vmem:[#allocation7 + $0x238] sm:$0xff]
        %v1930 = vld [vmem:[#allocation7 + $0x240] sm:$0xff]
        %v1931 = vld [vmem:[#allocation7 + $0x248] sm:$0xff]
        %v1932 = vld [vmem:[#allocation7 + $0x250] sm:$0xff]
        %v1933 = vld [vmem:[#allocation7 + $0x258] sm:$0xff]
        %v1934 = vld [vmem:[#allocation7 + $0x260] sm:$0xff]
        %v1935 = vld [vmem:[#allocation7 + $0x268] sm:$0xff]
        %v1936 = vld [vmem:[#allocation7 + $0x270] sm:$0xff]
        %v1937 = vld [vmem:[#allocation7 + $0x278] sm:$0xff]
        %v1938 = vld [vmem:[#allocation7 + $0x280] sm:$0xff]
        %v1939 = vld [vmem:[#allocation7 + $0x288] sm:$0xff]
        %v1940 = vld [vmem:[#allocation7 + $0x290] sm:$0xff]
        %v1941 = vld [vmem:[#allocation7 + $0x298] sm:$0xff]
        %v1942 = vld [vmem:[#allocation7 + $0x2a0] sm:$0xff]
        %v1943 = vld [vmem:[#allocation7 + $0x2a8] sm:$0xff]
        %v1944 = vld [vmem:[#allocation7 + $0x2b0] sm:$0xff]
        %v1945 = vld [vmem:[#allocation7 + $0x2b8] sm:$0xff]
        %v1946 = vld [vmem:[#allocation7 + $0x2c0] sm:$0xff]
        %v1947 = vld [vmem:[#allocation7 + $0x2c8] sm:$0xff]
        %v1948 = vld [vmem:[#allocation7 + $0x2d0] sm:$0xff]
        %v1949 = vld [vmem:[#allocation7 + $0x2d8] sm:$0xff]
        %v1950 = vld [vmem:[#allocation7 + $0x2e0] sm:$0xff]
        %v1951 = vld [vmem:[#allocation7 + $0x2e8] sm:$0xff]
        %v1952 = vld [vmem:[#allocation7 + $0x2f0] sm:$0xff]
        %v1953 = vld [vmem:[#allocation7 + $0x2f8] sm:$0xff]
        %v1954 = vld [vmem:[#allocation7 + $0x300] sm:$0xff]
        %v1955 = vld [vmem:[#allocation7 + $0x308] sm:$0xff]
        %v1956 = vld [vmem:[#allocation7 + $0x310] sm:$0xff]
        %v1957 = vld [vmem:[#allocation7 + $0x318] sm:$0xff]
        %v1958 = vld [vmem:[#allocation7 + $0x320] sm:$0xff]
        %v1959 = vld [vmem:[#allocation7 + $0x328] sm:$0xff]
        %v1960 = vld [vmem:[#allocation7 + $0x330] sm:$0xff]
        %v1961 = vld [vmem:[#allocation7 + $0x338] sm:$0xff]
        %v1962 = vld [vmem:[#allocation7 + $0x340] sm:$0xff]
        %v1963 = vld [vmem:[#allocation7 + $0x348] sm:$0xff]
        %v1964 = vld [vmem:[#allocation7 + $0x350] sm:$0xff]
        %v1965 = vld [vmem:[#allocation7 + $0x358] sm:$0xff]
        %v1966 = vld [vmem:[#allocation7 + $0x360] sm:$0xff]
        %v1967 = vld [vmem:[#allocation7 + $0x368] sm:$0xff]
        %v1968 = vld [vmem:[#allocation7 + $0x370] sm:$0xff]
        %v1969 = vld [vmem:[#allocation7 + $0x378] sm:$0xff]
        %v1970 = vld [vmem:[#allocation7 + $0x380] sm:$0xff]
        %v1971 = vld [vmem:[#allocation7 + $0x388] sm:$0xff]
        %v1972 = vld [vmem:[#allocation7 + $0x390] sm:$0xff]
        %v1973 = vld [vmem:[#allocation7 + $0x398] sm:$0xff]
        %v1974 = vld [vmem:[#allocation7 + $0x3a0] sm:$0xff]
        %v1975 = vld [vmem:[#allocation7 + $0x3a8] sm:$0xff]
        %v1976 = vld [vmem:[#allocation7 + $0x3b0] sm:$0xff]
        %v1977 = vld [vmem:[#allocation7 + $0x3b8] sm:$0xff]
        %v1978 = vld [vmem:[#allocation7 + $0x3c0] sm:$0xff]
        %v1979 = vld [vmem:[#allocation7 + $0x3c8] sm:$0xff]
        %v1980 = vld [vmem:[#allocation7 + $0x3d0] sm:$0xff]
        %v1981 = vld [vmem:[#allocation7 + $0x3d8] sm:$0xff]
        %v1982 = vld [vmem:[#allocation7 + $0x3e0] sm:$0xff]
        %v1983 = vld [vmem:[#allocation7 + $0x3e8] sm:$0xff]
        %v1984 = vld [vmem:[#allocation7 + $0x3f0] sm:$0xff]
        %v1985 = vld [vmem:[#allocation7 + $0x3f8] sm:$0xff]
        %v1986 = vld [vmem:[#allocation7 + $0x400] sm:$0xff]
        %v1987 = vld [vmem:[#allocation7 + $0x408] sm:$0xff]
        %v1988 = vld [vmem:[#allocation7 + $0x410] sm:$0xff]
        %v1989 = vld [vmem:[#allocation7 + $0x418] sm:$0xff]
        %v1990 = vld [vmem:[#allocation7 + $0x420] sm:$0xff]
        %v1991 = vld [vmem:[#allocation7 + $0x428] sm:$0xff]
        %v1992 = vld [vmem:[#allocation7 + $0x430] sm:$0xff]
        %v1993 = vld [vmem:[#allocation7 + $0x438] sm:$0xff]
        %v1994 = vld [vmem:[#allocation7 + $0x440] sm:$0xff]
        %v1995 = vld [vmem:[#allocation7 + $0x448] sm:$0xff]
        %v1996 = vld [vmem:[#allocation7 + $0x450] sm:$0xff]
        %v1997 = vld [vmem:[#allocation7 + $0x458] sm:$0xff]
        %v1998 = vld [vmem:[#allocation7 + $0x460] sm:$0xff]
        %v1999 = vld [vmem:[#allocation7 + $0x468] sm:$0xff]
        %v2000 = vld [vmem:[#allocation7 + $0x470] sm:$0xff]
        %v2001 = vld [vmem:[#allocation7 + $0x478] sm:$0xff]
        %vm2026 = vcmask 1041409
        %v2027 = vsel %vm2026, %v1697, %v1673
        %vm2028 = vcmask 1042434
        %v2029 = vsel %vm2028, %v1721, %v2027
        %vm2030 = vcmask 1043459
        %v2031 = vsel %vm2030, %v1745, %v2029
        %vm2032 = vcmask 1044484
        %v2033 = vsel %vm2032, %v1769, %v2031
        %vm2034 = vcmask 1045509
        %v2035 = vsel %vm2034, %v1793, %v2033
        %vm2036 = vcmask 1046534
        %v2037 = vsel %vm2036, %v1817, %v2035
        %vm2038 = vcmask 1047559
        %v2039 = vsel %vm2038, %v1841, %v2037
        %v2040 = vsel %vm2026, %v1705, %v1681
        %v2041 = vsel %vm2028, %v1729, %v2040
        %v2042 = vsel %vm2030, %v1753, %v2041
        %v2043 = vsel %vm2032, %v1777, %v2042
        %v2044 = vsel %vm2034, %v1801, %v2043
        %v2045 = vsel %vm2036, %v1825, %v2044
        %v2046 = vsel %vm2038, %v1849, %v2045
        %v2047 = vsel %vm2026, %v1713, %v1689
        %v2048 = vsel %vm2028, %v1737, %v2047
        %v2049 = vsel %vm2030, %v1761, %v2048
        %v2050 = vsel %vm2032, %v1785, %v2049
        %v2051 = vsel %vm2034, %v1809, %v2050
        %v2052 = vsel %vm2036, %v1833, %v2051
        %v2053 = vsel %vm2038, %v1857, %v2052
        %2057 = vmatprep.subr.mxu0 %v1859
        %2058 = vmatpush1.msra.mxu0 %v1858
        %2059 = vmatprep.subr.mxu0 %v1862
        %2060 = vmatpush1.msra.mxu0 %v1861
        %2061 = vmatprep.subr.mxu0 %v1865
        %2062 = vmatpush1.msra.mxu0 %v1864
        %2063 = vmatprep.subr.mxu0 %v1868
        %2064 = vmatpush1.msra.mxu0 %v1867
        %2065 = vmatprep.subr.mxu0 %v1871
        %2066 = vmatpush1.msra.mxu0 %v1870
        %2067 = vmatprep.subr.mxu0 %v1874
        %2068 = vmatpush1.msra.mxu0 %v1873
        %2069 = vmatprep.subr.mxu0 %v1877
        %2070 = vmatpush1.msra.mxu0 %v1876
        %2071 = vmatprep.subr.mxu0 %v1880
        %2072 = vmatpush1.msra.mxu0 %v1879
        %2073 = vmatprep.subr.mxu0 %v1883
        %2074 = vmatpush1.msra.mxu0 %v1882
        %2075 = vmatprep.subr.mxu0 %v1886
        %2076 = vmatpush1.msra.mxu0 %v1885
        %2077 = vmatprep.subr.mxu0 %v1889
        %2078 = vmatpush1.msra.mxu0 %v1888
        %2079 = vmatprep.subr.mxu0 %v1892
        %2080 = vmatpush1.msra.mxu0 %v1891
        %2081 = vmatprep.subr.mxu0 %v1895
        %2082 = vmatpush1.msra.mxu0 %v1894
        %2083 = vmatprep.subr.mxu0 %v1898
        %2084 = vmatpush1.msra.mxu0 %v1897
        %2085 = vmatprep.subr.mxu0 %v1901
        %2086 = vmatpush1.msra.mxu0 %v1900
        %2087 = vmatprep.subr.mxu0 %v1904
        %2088 = vmatpush1.msra.mxu0 %v1903
        %2089 = vmatprep.subr.mxu0 %v1907
        %2090 = vmatpush1.msra.mxu0 %v1906
        %2091 = vmatprep.subr.mxu0 %v1910
        %2092 = vmatpush1.msra.mxu0 %v1909
        %2093 = vmatprep.subr.mxu0 %v1913
        %2094 = vmatpush1.msra.mxu0 %v1912
        %2095 = vmatprep.subr.mxu0 %v1916
        %2096 = vmatpush1.msra.mxu0 %v1915
        %2097 = vmatprep.subr.mxu0 %v1919
        %2098 = vmatpush1.msra.mxu0 %v1918
        %2099 = vmatprep.subr.mxu0 %v1922
        %2100 = vmatpush1.msra.mxu0 %v1921
        %2101 = vmatprep.subr.mxu0 %v1925
        %2102 = vmatpush1.msra.mxu0 %v1924
        %2103 = vmatprep.subr.mxu0 %v1928
        %2104 = vmatpush1.msra.mxu0 %v1927
        %2105 = vmatprep.subr.mxu0 %v1931
        %2106 = vmatpush1.msra.mxu0 %v1930
        %2107 = vmatprep.subr.mxu0 %v1934
        %2108 = vmatpush1.msra.mxu0 %v1933
        %2109 = vmatprep.subr.mxu0 %v1937
        %2110 = vmatpush1.msra.mxu0 %v1936
        %2111 = vmatprep.subr.mxu0 %v1940
        %2112 = vmatpush1.msra.mxu0 %v1939
        %2113 = vmatprep.subr.mxu0 %v1943
        %2114 = vmatpush1.msra.mxu0 %v1942
        %2115 = vmatprep.subr.mxu0 %v1946
        %2116 = vmatpush1.msra.mxu0 %v1945
        %2117 = vmatprep.subr.mxu0 %v1949
        %2118 = vmatpush1.msra.mxu0 %v1948
        %2119 = vmatprep.subr.mxu0 %v1952
        %2120 = vmatpush1.msra.mxu0 %v1951
        %2121 = vmatprep.mubr.f32.mxu0 %v2046
        %2122 = vmatmul.mubr.f32.gmra.mrb[0].mxu0 %v2039
        %v2123 = vpop.f32.mrb[0].mxu0
        %v2124 = vadd.f32 0.0, %v2123
        %v2125 = vpop.f32.mrb[0].mxu0
        %v2126 = vadd.f32 0.0, %v2125
        %2127 = vdwg.mxu0
        %2128 = vmatprep.subr.mxu0 %v1955
        %2129 = vmatpush1.msra.mxu0 %v1954
        %2130 = vmatprep.subr.mxu0 %v1958
        %2131 = vmatpush1.msra.mxu0 %v1957
        %2132 = vmatprep.subr.mxu0 %v1961
        %2133 = vmatpush1.msra.mxu0 %v1960
        %2134 = vmatprep.subr.mxu0 %v1964
        %2135 = vmatpush1.msra.mxu0 %v1963
        %2136 = vmatprep.subr.mxu0 %v1967
        %2137 = vmatpush1.msra.mxu0 %v1966
        %2138 = vmatprep.subr.mxu0 %v1970
        %2139 = vmatpush1.msra.mxu0 %v1969
        %2140 = vmatprep.subr.mxu0 %v1973
        %2141 = vmatpush1.msra.mxu0 %v1972
        %2142 = vmatprep.subr.mxu0 %v1976
        %2143 = vmatpush1.msra.mxu0 %v1975
        %2144 = vmatprep.subr.mxu0 %v1979
        %2145 = vmatpush1.msra.mxu0 %v1978
        %2146 = vmatprep.subr.mxu0 %v1982
        %2147 = vmatpush1.msra.mxu0 %v1981
        %2148 = vmatprep.subr.mxu0 %v1985
        %2149 = vmatpush1.msra.mxu0 %v1984
        %2150 = vmatprep.subr.mxu0 %v1988
        %2151 = vmatpush1.msra.mxu0 %v1987
        %2152 = vmatprep.subr.mxu0 %v1991
        %2153 = vmatpush1.msra.mxu0 %v1990
        %2154 = vmatprep.subr.mxu0 %v1994
        %2155 = vmatpush1.msra.mxu0 %v1993
        %2156 = vmatprep.subr.mxu0 %v1997
        %2157 = vmatpush1.msra.mxu0 %v1996
        %2158 = vmatprep.subr.mxu0 %v2000
        %2159 = vmatpush1.msra.mxu0 %v1999
        %2160 = vmatprep.subr.mxu0 0.0
        %2161 = vmatpush1.msra.mxu0 0.0
        %2162 = vmatprep.subr.mxu0 0.0
        %2163 = vmatpush1.msra.mxu0 0.0
        %2164 = vmatprep.subr.mxu0 0.0
        %2165 = vmatpush1.msra.mxu0 0.0
        %2166 = vmatprep.subr.mxu0 0.0
        %2167 = vmatpush1.msra.mxu0 0.0
        %2168 = vmatprep.subr.mxu0 0.0
        %2169 = vmatpush1.msra.mxu0 0.0
        %2170 = vmatprep.subr.mxu0 0.0
        %2171 = vmatpush1.msra.mxu0 0.0
        %2172 = vmatprep.subr.mxu0 0.0
        %2173 = vmatpush1.msra.mxu0 0.0
        %2174 = vmatprep.subr.mxu0 0.0
        %2175 = vmatpush1.msra.mxu0 0.0
        %2176 = vmatprep.subr.mxu0 0.0
        %2177 = vmatpush1.msra.mxu0 0.0
        %2178 = vmatprep.subr.mxu0 0.0
        %2179 = vmatpush1.msra.mxu0 0.0
        %2180 = vmatprep.subr.mxu0 0.0
        %2181 = vmatpush1.msra.mxu0 0.0
        %2182 = vmatprep.subr.mxu0 0.0
        %2183 = vmatpush1.msra.mxu0 0.0
        %2184 = vmatprep.subr.mxu0 0.0
        %2185 = vmatpush1.msra.mxu0 0.0
        %2186 = vmatprep.subr.mxu0 0.0
        %2187 = vmatpush1.msra.mxu0 0.0
        %2188 = vmatprep.subr.mxu0 0.0
        %2189 = vmatpush1.msra.mxu0 0.0
        %2190 = vmatprep.subr.mxu0 0.0
        %2191 = vmatpush1.msra.mxu0 0.0
        %2192 = vmatprep.mubr.f32.mxu0 0.0
        %2193 = vmatmul.mubr.f32.gmra.mrb[0].mxu0 %v2053
        %v2194 = vpop.f32.mrb[0].mxu0
        %v2195 = vadd.f32 %v2124, %v2194
        %v2196 = vpop.f32.mrb[0].mxu0
        %v2197 = vadd.f32 %v2126, %v2196
        %2198 = vdwg.mxu0
        %2199 = vmatprep.subr.mxu0 0.0
        %2200 = vmatpush1.msra.mxu0 %v1860
        %2201 = vmatprep.subr.mxu0 0.0
        %2202 = vmatpush1.msra.mxu0 %v1863
        %2203 = vmatprep.subr.mxu0 0.0
        %2204 = vmatpush1.msra.mxu0 %v1866
        %2205 = vmatprep.subr.mxu0 0.0
        %2206 = vmatpush1.msra.mxu0 %v1869
        %2207 = vmatprep.subr.mxu0 0.0
        %2208 = vmatpush1.msra.mxu0 %v1872
        %2209 = vmatprep.subr.mxu0 0.0
        %2210 = vmatpush1.msra.mxu0 %v1875
        %2211 = vmatprep.subr.mxu0 0.0
        %2212 = vmatpush1.msra.mxu0 %v1878
        %2213 = vmatprep.subr.mxu0 0.0
        %2214 = vmatpush1.msra.mxu0 %v1881
        %2215 = vmatprep.subr.mxu0 0.0
        %2216 = vmatpush1.msra.mxu0 %v1884
        %2217 = vmatprep.subr.mxu0 0.0
        %2218 = vmatpush1.msra.mxu0 %v1887
        %2219 = vmatprep.subr.mxu0 0.0
        %2220 = vmatpush1.msra.mxu0 %v1890
        %2221 = vmatprep.subr.mxu0 0.0
        %2222 = vmatpush1.msra.mxu0 %v1893
        %2223 = vmatprep.subr.mxu0 0.0
        %2224 = vmatpush1.msra.mxu0 %v1896
        %2225 = vmatprep.subr.mxu0 0.0
        %2226 = vmatpush1.msra.mxu0 %v1899
        %2227 = vmatprep.subr.mxu0 0.0
        %2228 = vmatpush1.msra.mxu0 %v1902
        %2229 = vmatprep.subr.mxu0 0.0
        %2230 = vmatpush1.msra.mxu0 %v1905
        %2231 = vmatprep.subr.mxu0 0.0
        %2232 = vmatpush1.msra.mxu0 %v1908
        %2233 = vmatprep.subr.mxu0 0.0
        %2234 = vmatpush1.msra.mxu0 %v1911
        %2235 = vmatprep.subr.mxu0 0.0
        %2236 = vmatpush1.msra.mxu0 %v1914
        %2237 = vmatprep.subr.mxu0 0.0
        %2238 = vmatpush1.msra.mxu0 %v1917
        %2239 = vmatprep.subr.mxu0 0.0
        %2240 = vmatpush1.msra.mxu0 %v1920
        %2241 = vmatprep.subr.mxu0 0.0
        %2242 = vmatpush1.msra.mxu0 %v1923
        %2243 = vmatprep.subr.mxu0 0.0
        %2244 = vmatpush1.msra.mxu0 %v1926
        %2245 = vmatprep.subr.mxu0 0.0
        %2246 = vmatpush1.msra.mxu0 %v1929
        %2247 = vmatprep.subr.mxu0 0.0
        %2248 = vmatpush1.msra.mxu0 %v1932
        %2249 = vmatprep.subr.mxu0 0.0
        %2250 = vmatpush1.msra.mxu0 %v1935
        %2251 = vmatprep.subr.mxu0 0.0
        %2252 = vmatpush1.msra.mxu0 %v1938
        %2253 = vmatprep.subr.mxu0 0.0
        %2254 = vmatpush1.msra.mxu0 %v1941
        %2255 = vmatprep.subr.mxu0 0.0
        %2256 = vmatpush1.msra.mxu0 %v1944
        %2257 = vmatprep.subr.mxu0 0.0
        %2258 = vmatpush1.msra.mxu0 %v1947
        %2259 = vmatprep.subr.mxu0 0.0
        %2260 = vmatpush1.msra.mxu0 %v1950
        %2261 = vmatprep.subr.mxu0 0.0
        %2262 = vmatpush1.msra.mxu0 %v1953
        %2263 = vmatprep.mubr.f32.mxu0 %v2046
        %2264 = vmatmul.mubr.f32.gmra.mrb[0].mxu0 %v2039
        %v2265 = vpop.f32.mrb[0].mxu0
        %v2266 = vadd.f32 0.0, %v2265
        %v2267 = vpop.f32.mrb[0].mxu0
        %2268 = vdwg.mxu0
        %2269 = vmatprep.subr.mxu0 0.0
        %2270 = vmatpush1.msra.mxu0 %v1956
        %2271 = vmatprep.subr.mxu0 0.0
        %2272 = vmatpush1.msra.mxu0 %v1959
        %2273 = vmatprep.subr.mxu0 0.0
        %2274 = vmatpush1.msra.mxu0 %v1962
        %2275 = vmatprep.subr.mxu0 0.0
        %2276 = vmatpush1.msra.mxu0 %v1965
        %2277 = vmatprep.subr.mxu0 0.0
        %2278 = vmatpush1.msra.mxu0 %v1968
        %2279 = vmatprep.subr.mxu0 0.0
        %2280 = vmatpush1.msra.mxu0 %v1971
        %2281 = vmatprep.subr.mxu0 0.0
        %2282 = vmatpush1.msra.mxu0 %v1974
        %2283 = vmatprep.subr.mxu0 0.0
        %2284 = vmatpush1.msra.mxu0 %v1977
        %2285 = vmatprep.subr.mxu0 0.0
        %2286 = vmatpush1.msra.mxu0 %v1980
        %2287 = vmatprep.subr.mxu0 0.0
        %2288 = vmatpush1.msra.mxu0 %v1983
        %2289 = vmatprep.subr.mxu0 0.0
        %2290 = vmatpush1.msra.mxu0 %v1986
        %2291 = vmatprep.subr.mxu0 0.0
        %2292 = vmatpush1.msra.mxu0 %v1989
        %2293 = vmatprep.subr.mxu0 0.0
        %2294 = vmatpush1.msra.mxu0 %v1992
        %2295 = vmatprep.subr.mxu0 0.0
        %2296 = vmatpush1.msra.mxu0 %v1995
        %2297 = vmatprep.subr.mxu0 0.0
        %2298 = vmatpush1.msra.mxu0 %v1998
        %2299 = vmatprep.subr.mxu0 0.0
        %2300 = vmatpush1.msra.mxu0 %v2001
        %2301 = vmatprep.subr.mxu0 0.0
        %2302 = vmatpush1.msra.mxu0 0.0
        %2303 = vmatprep.subr.mxu0 0.0
        %2304 = vmatpush1.msra.mxu0 0.0
        %2305 = vmatprep.subr.mxu0 0.0
        %2306 = vmatpush1.msra.mxu0 0.0
        %2307 = vmatprep.subr.mxu0 0.0
        %2308 = vmatpush1.msra.mxu0 0.0
        %2309 = vmatprep.subr.mxu0 0.0
        %2310 = vmatpush1.msra.mxu0 0.0
        %2311 = vmatprep.subr.mxu0 0.0
        %2312 = vmatpush1.msra.mxu0 0.0
        %2313 = vmatprep.subr.mxu0 0.0
        %2314 = vmatpush1.msra.mxu0 0.0
        %2315 = vmatprep.subr.mxu0 0.0
        %2316 = vmatpush1.msra.mxu0 0.0
        %2317 = vmatprep.subr.mxu0 0.0
        %2318 = vmatpush1.msra.mxu0 0.0
        %2319 = vmatprep.subr.mxu0 0.0
        %2320 = vmatpush1.msra.mxu0 0.0
        %2321 = vmatprep.subr.mxu0 0.0
        %2322 = vmatpush1.msra.mxu0 0.0
        %2323 = vmatprep.subr.mxu0 0.0
        %2324 = vmatpush1.msra.mxu0 0.0
        %2325 = vmatprep.subr.mxu0 0.0
        %2326 = vmatpush1.msra.mxu0 0.0
        %2327 = vmatprep.subr.mxu0 0.0
        %2328 = vmatpush1.msra.mxu0 0.0
        %2329 = vmatprep.subr.mxu0 0.0
        %2330 = vmatpush1.msra.mxu0 0.0
        %2331 = vmatprep.subr.mxu0 0.0
        %2332 = vmatpush1.msra.mxu0 0.0
        %2333 = vmatprep.mubr.f32.mxu0 0.0
        %2334 = vmatmul.mubr.f32.gmra.mrb[0].mxu0 %v2053
        %v2335 = vpop.f32.mrb[0].mxu0
        %v2336 = vadd.f32 %v2266, %v2335
        %v2337 = vpop.f32.mrb[0].mxu0
        %2338 = vdwg.mxu0
        %v2342 = vrot.slane %v2195, 1
        %v2343 = vrot.slane %v2197, 1
        %v2344 = vrot.slane %v2336, 1
        %v2345 = vrot.slane %v2195, 2
        %v2346 = vrot.slane %v2197, 2
        %v2347 = vrot.slane %v2336, 2
        %v2348 = vrot.slane %v2195, 3
        %v2349 = vrot.slane %v2197, 3
        %v2350 = vrot.slane %v2336, 3
        %v2351 = vrot.slane %v2195, 4
        %v2352 = vrot.slane %v2197, 4
        %v2353 = vrot.slane %v2336, 4
        %v2354 = vrot.slane %v2195, 5
        %v2355 = vrot.slane %v2197, 5
        %v2356 = vrot.slane %v2336, 5
        %v2357 = vrot.slane %v2195, 6
        %v2358 = vrot.slane %v2197, 6
        %v2359 = vrot.slane %v2336, 6
        %v2360 = vrot.slane %v2195, 7
        %v2361 = vrot.slane %v2197, 7
        %v2362 = vrot.slane %v2336, 7
        %v2387 = vsub.f32 %v1673, %v2195
        %v2388 = vsub.f32 %v1681, %v2197
        %v2389 = vsub.f32 %v1689, %v2336
        %v2390 = vsub.f32 %v1697, %v2342
        %v2391 = vsub.f32 %v1705, %v2343
        %v2392 = vsub.f32 %v1713, %v2344
        %v2393 = vsub.f32 %v1721, %v2345
        %v2394 = vsub.f32 %v1729, %v2346
        %v2395 = vsub.f32 %v1737, %v2347
        %v2396 = vsub.f32 %v1745, %v2348
        %v2397 = vsub.f32 %v1753, %v2349
        %v2398 = vsub.f32 %v1761, %v2350
        %v2399 = vsub.f32 %v1769, %v2351
        %v2400 = vsub.f32 %v1777, %v2352
        %v2401 = vsub.f32 %v1785, %v2353
        %v2402 = vsub.f32 %v1793, %v2354
        %v2403 = vsub.f32 %v1801, %v2355
        %v2404 = vsub.f32 %v1809, %v2356
        %v2405 = vsub.f32 %v1817, %v2357
        %v2406 = vsub.f32 %v1825, %v2358
        %v2407 = vsub.f32 %v1833, %v2359
        %v2408 = vsub.f32 %v1841, %v2360
        %v2409 = vsub.f32 %v1849, %v2361
        %v2410 = vsub.f32 %v1857, %v2362
        %v2411 = vmul.f32 %v2387, %v2387
        %v2412 = vmul.f32 %v2388, %v2388
        %v2413 = vmul.f32 %v2389, %v2389
        %v2414 = vmul.f32 %v2390, %v2390
        %v2415 = vmul.f32 %v2391, %v2391
        %v2416 = vmul.f32 %v2392, %v2392
        %v2417 = vmul.f32 %v2393, %v2393
        %v2418 = vmul.f32 %v2394, %v2394
        %v2419 = vmul.f32 %v2395, %v2395
        %v2420 = vmul.f32 %v2396, %v2396
        %v2421 = vmul.f32 %v2397, %v2397
        %v2422 = vmul.f32 %v2398, %v2398
        %v2423 = vmul.f32 %v2399, %v2399
        %v2424 = vmul.f32 %v2400, %v2400
        %v2425 = vmul.f32 %v2401, %v2401
        %v2426 = vmul.f32 %v2402, %v2402
        %v2427 = vmul.f32 %v2403, %v2403
        %v2428 = vmul.f32 %v2404, %v2404
        %v2429 = vmul.f32 %v2405, %v2405
        %v2430 = vmul.f32 %v2406, %v2406
        %v2431 = vmul.f32 %v2407, %v2407
        %v2432 = vmul.f32 %v2408, %v2408
        %v2433 = vmul.f32 %v2409, %v2409
        %v2434 = vmul.f32 %v2410, %v2410
        %v2459 = vrot.slane %v2414, 7
        %v2460 = vsel %vm2026, %v2459, %v2411
        %v2461 = vrot.slane %v2417, 6
        %v2462 = vsel %vm2028, %v2461, %v2460
        %v2463 = vrot.slane %v2420, 5
        %v2464 = vsel %vm2030, %v2463, %v2462
        %v2465 = vrot.slane %v2423, 4
        %v2466 = vsel %vm2032, %v2465, %v2464
        %v2467 = vrot.slane %v2426, 3
        %v2468 = vsel %vm2034, %v2467, %v2466
        %v2469 = vrot.slane %v2429, 2
        %v2470 = vsel %vm2036, %v2469, %v2468
        %v2471 = vrot.slane %v2432, 1
        %v2472 = vsel %vm2038, %v2471, %v2470
        %v2473 = vrot.slane %v2415, 7
        %v2474 = vsel %vm2026, %v2473, %v2412
        %v2475 = vrot.slane %v2418, 6
        %v2476 = vsel %vm2028, %v2475, %v2474
        %v2477 = vrot.slane %v2421, 5
        %v2478 = vsel %vm2030, %v2477, %v2476
        %v2479 = vrot.slane %v2424, 4
        %v2480 = vsel %vm2032, %v2479, %v2478
        %v2481 = vrot.slane %v2427, 3
        %v2482 = vsel %vm2034, %v2481, %v2480
        %v2483 = vrot.slane %v2430, 2
        %v2484 = vsel %vm2036, %v2483, %v2482
        %v2485 = vrot.slane %v2433, 1
        %v2486 = vsel %vm2038, %v2485, %v2484
        %v2487 = vrot.slane %v2416, 7
        %v2488 = vsel %vm2026, %v2487, %v2413
        %v2489 = vrot.slane %v2419, 6
        %v2490 = vsel %vm2028, %v2489, %v2488
        %v2491 = vrot.slane %v2422, 5
        %v2492 = vsel %vm2030, %v2491, %v2490
        %v2493 = vrot.slane %v2425, 4
        %v2494 = vsel %vm2032, %v2493, %v2492
        %v2495 = vrot.slane %v2428, 3
        %v2496 = vsel %vm2034, %v2495, %v2494
        %v2497 = vrot.slane %v2431, 2
        %v2498 = vsel %vm2036, %v2497, %v2496
        %v2499 = vrot.slane %v2434, 1
        %v2500 = vsel %vm2038, %v2499, %v2498
        %2504 = vmatprep.subr.mxu0 %v1859
        %2505 = vmatpush1.msra.mxu0 %v1858
        %2506 = vmatprep.subr.mxu0 %v1862
        %2507 = vmatpush1.msra.mxu0 %v1861
        %2508 = vmatprep.subr.mxu0 %v1865
        %2509 = vmatpush1.msra.mxu0 %v1864
        %2510 = vmatprep.subr.mxu0 %v1868
        %2511 = vmatpush1.msra.mxu0 %v1867
        %2512 = vmatprep.subr.mxu0 %v1871
        %2513 = vmatpush1.msra.mxu0 %v1870
        %2514 = vmatprep.subr.mxu0 %v1874
        %2515 = vmatpush1.msra.mxu0 %v1873
        %2516 = vmatprep.subr.mxu0 %v1877
        %2517 = vmatpush1.msra.mxu0 %v1876
        %2518 = vmatprep.subr.mxu0 %v1880
        %2519 = vmatpush1.msra.mxu0 %v1879
        %2520 = vmatprep.subr.mxu0 %v1883
        %2521 = vmatpush1.msra.mxu0 %v1882
        %2522 = vmatprep.subr.mxu0 %v1886
        %2523 = vmatpush1.msra.mxu0 %v1885
        %2524 = vmatprep.subr.mxu0 %v1889
        %2525 = vmatpush1.msra.mxu0 %v1888
        %2526 = vmatprep.subr.mxu0 %v1892
        %2527 = vmatpush1.msra.mxu0 %v1891
        %2528 = vmatprep.subr.mxu0 %v1895
        %2529 = vmatpush1.msra.mxu0 %v1894
        %2530 = vmatprep.subr.mxu0 %v1898
        %2531 = vmatpush1.msra.mxu0 %v1897
        %2532 = vmatprep.subr.mxu0 %v1901
        %2533 = vmatpush1.msra.mxu0 %v1900
        %2534 = vmatprep.subr.mxu0 %v1904
        %2535 = vmatpush1.msra.mxu0 %v1903
        %2536 = vmatprep.subr.mxu0 %v1907
        %2537 = vmatpush1.msra.mxu0 %v1906
        %2538 = vmatprep.subr.mxu0 %v1910
        %2539 = vmatpush1.msra.mxu0 %v1909
        %2540 = vmatprep.subr.mxu0 %v1913
        %2541 = vmatpush1.msra.mxu0 %v1912
        %2542 = vmatprep.subr.mxu0 %v1916
        %2543 = vmatpush1.msra.mxu0 %v1915
        %2544 = vmatprep.subr.mxu0 %v1919
        %2545 = vmatpush1.msra.mxu0 %v1918
        %2546 = vmatprep.subr.mxu0 %v1922
        %2547 = vmatpush1.msra.mxu0 %v1921
        %2548 = vmatprep.subr.mxu0 %v1925
        %2549 = vmatpush1.msra.mxu0 %v1924
        %2550 = vmatprep.subr.mxu0 %v1928
        %2551 = vmatpush1.msra.mxu0 %v1927
        %2552 = vmatprep.subr.mxu0 %v1931
        %2553 = vmatpush1.msra.mxu0 %v1930
        %2554 = vmatprep.subr.mxu0 %v1934
        %2555 = vmatpush1.msra.mxu0 %v1933
        %2556 = vmatprep.subr.mxu0 %v1937
        %2557 = vmatpush1.msra.mxu0 %v1936
        %2558 = vmatprep.subr.mxu0 %v1940
        %2559 = vmatpush1.msra.mxu0 %v1939
        %2560 = vmatprep.subr.mxu0 %v1943
        %2561 = vmatpush1.msra.mxu0 %v1942
        %2562 = vmatprep.subr.mxu0 %v1946
        %2563 = vmatpush1.msra.mxu0 %v1945
        %2564 = vmatprep.subr.mxu0 %v1949
        %2565 = vmatpush1.msra.mxu0 %v1948
        %2566 = vmatprep.subr.mxu0 %v1952
        %2567 = vmatpush1.msra.mxu0 %v1951
        %2568 = vmatprep.mubr.f32.mxu0 %v2486
        %2569 = vmatmul.mubr.f32.gmra.mrb[0].mxu0 %v2472
        %v2570 = vpop.f32.mrb[0].mxu0
        %v2571 = vadd.f32 1e-05, %v2570
        %v2572 = vpop.f32.mrb[0].mxu0
        %v2573 = vadd.f32 1e-05, %v2572
        %2574 = vdwg.mxu0
        %2575 = vmatprep.subr.mxu0 %v1955
        %2576 = vmatpush1.msra.mxu0 %v1954
        %2577 = vmatprep.subr.mxu0 %v1958
        %2578 = vmatpush1.msra.mxu0 %v1957
        %2579 = vmatprep.subr.mxu0 %v1961
        %2580 = vmatpush1.msra.mxu0 %v1960
        %2581 = vmatprep.subr.mxu0 %v1964
        %2582 = vmatpush1.msra.mxu0 %v1963
        %2583 = vmatprep.subr.mxu0 %v1967
        %2584 = vmatpush1.msra.mxu0 %v1966
        %2585 = vmatprep.subr.mxu0 %v1970
        %2586 = vmatpush1.msra.mxu0 %v1969
        %2587 = vmatprep.subr.mxu0 %v1973
        %2588 = vmatpush1.msra.mxu0 %v1972
        %2589 = vmatprep.subr.mxu0 %v1976
        %2590 = vmatpush1.msra.mxu0 %v1975
        %2591 = vmatprep.subr.mxu0 %v1979
        %2592 = vmatpush1.msra.mxu0 %v1978
        %2593 = vmatprep.subr.mxu0 %v1982
        %2594 = vmatpush1.msra.mxu0 %v1981
        %2595 = vmatprep.subr.mxu0 %v1985
        %2596 = vmatpush1.msra.mxu0 %v1984
        %2597 = vmatprep.subr.mxu0 %v1988
        %2598 = vmatpush1.msra.mxu0 %v1987
        %2599 = vmatprep.subr.mxu0 %v1991
        %2600 = vmatpush1.msra.mxu0 %v1990
        %2601 = vmatprep.subr.mxu0 %v1994
        %2602 = vmatpush1.msra.mxu0 %v1993
        %2603 = vmatprep.subr.mxu0 %v1997
        %2604 = vmatpush1.msra.mxu0 %v1996
        %2605 = vmatprep.subr.mxu0 %v2000
        %2606 = vmatpush1.msra.mxu0 %v1999
        %2607 = vmatprep.subr.mxu0 0.0
        %2608 = vmatpush1.msra.mxu0 0.0
        %2609 = vmatprep.subr.mxu0 0.0
        %2610 = vmatpush1.msra.mxu0 0.0
        %2611 = vmatprep.subr.mxu0 0.0
        %2612 = vmatpush1.msra.mxu0 0.0
        %2613 = vmatprep.subr.mxu0 0.0
        %2614 = vmatpush1.msra.mxu0 0.0
        %2615 = vmatprep.subr.mxu0 0.0
        %2616 = vmatpush1.msra.mxu0 0.0
        %2617 = vmatprep.subr.mxu0 0.0
        %2618 = vmatpush1.msra.mxu0 0.0
        %2619 = vmatprep.subr.mxu0 0.0
        %2620 = vmatpush1.msra.mxu0 0.0
        %2621 = vmatprep.subr.mxu0 0.0
        %2622 = vmatpush1.msra.mxu0 0.0
        %2623 = vmatprep.subr.mxu0 0.0
        %2624 = vmatpush1.msra.mxu0 0.0
        %2625 = vmatprep.subr.mxu0 0.0
        %2626 = vmatpush1.msra.mxu0 0.0
        %2627 = vmatprep.subr.mxu0 0.0
        %2628 = vmatpush1.msra.mxu0 0.0
        %2629 = vmatprep.subr.mxu0 0.0
        %2630 = vmatpush1.msra.mxu0 0.0
        %2631 = vmatprep.subr.mxu0 0.0
        %2632 = vmatpush1.msra.mxu0 0.0
        %2633 = vmatprep.subr.mxu0 0.0
        %2634 = vmatpush1.msra.mxu0 0.0
        %2635 = vmatprep.subr.mxu0 0.0
        %2636 = vmatpush1.msra.mxu0 0.0
        %2637 = vmatprep.subr.mxu0 0.0
        %2638 = vmatpush1.msra.mxu0 0.0
        %2639 = vmatprep.mubr.f32.mxu0 0.0
        %2640 = vmatmul.mubr.f32.gmra.mrb[0].mxu0 %v2500
        %v2641 = vpop.f32.mrb[0].mxu0
        %v2642 = vadd.f32 %v2571, %v2641
        %v2643 = vpop.f32.mrb[0].mxu0
        %v2644 = vadd.f32 %v2573, %v2643
        %2645 = vdwg.mxu0
        %2646 = vmatprep.subr.mxu0 0.0
        %2647 = vmatpush1.msra.mxu0 %v1860
        %2648 = vmatprep.subr.mxu0 0.0
        %2649 = vmatpush1.msra.mxu0 %v1863
        %2650 = vmatprep.subr.mxu0 0.0
        %2651 = vmatpush1.msra.mxu0 %v1866
        %2652 = vmatprep.subr.mxu0 0.0
        %2653 = vmatpush1.msra.mxu0 %v1869
        %2654 = vmatprep.subr.mxu0 0.0
        %2655 = vmatpush1.msra.mxu0 %v1872
        %2656 = vmatprep.subr.mxu0 0.0
        %2657 = vmatpush1.msra.mxu0 %v1875
        %2658 = vmatprep.subr.mxu0 0.0
        %2659 = vmatpush1.msra.mxu0 %v1878
        %2660 = vmatprep.subr.mxu0 0.0
        %2661 = vmatpush1.msra.mxu0 %v1881
        %2662 = vmatprep.subr.mxu0 0.0
        %2663 = vmatpush1.msra.mxu0 %v1884
        %2664 = vmatprep.subr.mxu0 0.0
        %2665 = vmatpush1.msra.mxu0 %v1887
        %2666 = vmatprep.subr.mxu0 0.0
        %2667 = vmatpush1.msra.mxu0 %v1890
        %2668 = vmatprep.subr.mxu0 0.0
        %2669 = vmatpush1.msra.mxu0 %v1893
        %2670 = vmatprep.subr.mxu0 0.0
        %2671 = vmatpush1.msra.mxu0 %v1896
        %2672 = vmatprep.subr.mxu0 0.0
        %2673 = vmatpush1.msra.mxu0 %v1899
        %2674 = vmatprep.subr.mxu0 0.0
        %2675 = vmatpush1.msra.mxu0 %v1902
        %2676 = vmatprep.subr.mxu0 0.0
        %2677 = vmatpush1.msra.mxu0 %v1905
        %2678 = vmatprep.subr.mxu0 0.0
        %2679 = vmatpush1.msra.mxu0 %v1908
        %2680 = vmatprep.subr.mxu0 0.0
        %2681 = vmatpush1.msra.mxu0 %v1911
        %2682 = vmatprep.subr.mxu0 0.0
        %2683 = vmatpush1.msra.mxu0 %v1914
        %2684 = vmatprep.subr.mxu0 0.0
        %2685 = vmatpush1.msra.mxu0 %v1917
        %2686 = vmatprep.subr.mxu0 0.0
        %2687 = vmatpush1.msra.mxu0 %v1920
        %2688 = vmatprep.subr.mxu0 0.0
        %2689 = vmatpush1.msra.mxu0 %v1923
        %2690 = vmatprep.subr.mxu0 0.0
        %2691 = vmatpush1.msra.mxu0 %v1926
        %2692 = vmatprep.subr.mxu0 0.0
        %2693 = vmatpush1.msra.mxu0 %v1929
        %2694 = vmatprep.subr.mxu0 0.0
        %2695 = vmatpush1.msra.mxu0 %v1932
        %2696 = vmatprep.subr.mxu0 0.0
        %2697 = vmatpush1.msra.mxu0 %v1935
        %2698 = vmatprep.subr.mxu0 0.0
        %2699 = vmatpush1.msra.mxu0 %v1938
        %2700 = vmatprep.subr.mxu0 0.0
        %2701 = vmatpush1.msra.mxu0 %v1941
        %2702 = vmatprep.subr.mxu0 0.0
        %2703 = vmatpush1.msra.mxu0 %v1944
        %2704 = vmatprep.subr.mxu0 0.0
        %2705 = vmatpush1.msra.mxu0 %v1947
        %2706 = vmatprep.subr.mxu0 0.0
        %2707 = vmatpush1.msra.mxu0 %v1950
        %2708 = vmatprep.subr.mxu0 0.0
        %2709 = vmatpush1.msra.mxu0 %v1953
        %2710 = vmatprep.mubr.f32.mxu0 %v2486
        %2711 = vmatmul.mubr.f32.gmra.mrb[0].mxu0 %v2472
        %v2712 = vpop.f32.mrb[0].mxu0
        %v2713 = vadd.f32 1e-05, %v2712
        %v2714 = vpop.f32.mrb[0].mxu0
        %2715 = vdwg.mxu0
        %2716 = vmatprep.subr.mxu0 0.0
        %2717 = vmatpush1.msra.mxu0 %v1956
        %2718 = vmatprep.subr.mxu0 0.0
        %2719 = vmatpush1.msra.mxu0 %v1959
        %2720 = vmatprep.subr.mxu0 0.0
        %2721 = vmatpush1.msra.mxu0 %v1962
        %2722 = vmatprep.subr.mxu0 0.0
        %2723 = vmatpush1.msra.mxu0 %v1965
        %2724 = vmatprep.subr.mxu0 0.0
        %2725 = vmatpush1.msra.mxu0 %v1968
        %2726 = vmatprep.subr.mxu0 0.0
        %2727 = vmatpush1.msra.mxu0 %v1971
        %2728 = vmatprep.subr.mxu0 0.0
        %2729 = vmatpush1.msra.mxu0 %v1974
        %2730 = vmatprep.subr.mxu0 0.0
        %2731 = vmatpush1.msra.mxu0 %v1977
        %2732 = vmatprep.subr.mxu0 0.0
        %2733 = vmatpush1.msra.mxu0 %v1980
        %2734 = vmatprep.subr.mxu0 0.0
        %2735 = vmatpush1.msra.mxu0 %v1983
        %2736 = vmatprep.subr.mxu0 0.0
        %2737 = vmatpush1.msra.mxu0 %v1986
        %2738 = vmatprep.subr.mxu0 0.0
        %2739 = vmatpush1.msra.mxu0 %v1989
        %2740 = vmatprep.subr.mxu0 0.0
        %2741 = vmatpush1.msra.mxu0 %v1992
        %2742 = vmatprep.subr.mxu0 0.0
        %2743 = vmatpush1.msra.mxu0 %v1995
        %2744 = vmatprep.subr.mxu0 0.0
        %2745 = vmatpush1.msra.mxu0 %v1998
        %2746 = vmatprep.subr.mxu0 0.0
        %2747 = vmatpush1.msra.mxu0 %v2001
        %2748 = vmatprep.subr.mxu0 0.0
        %2749 = vmatpush1.msra.mxu0 0.0
        %2750 = vmatprep.subr.mxu0 0.0
        %2751 = vmatpush1.msra.mxu0 0.0
        %2752 = vmatprep.subr.mxu0 0.0
        %2753 = vmatpush1.msra.mxu0 0.0
        %2754 = vmatprep.subr.mxu0 0.0
        %2755 = vmatpush1.msra.mxu0 0.0
        %2756 = vmatprep.subr.mxu0 0.0
        %2757 = vmatpush1.msra.mxu0 0.0
        %2758 = vmatprep.subr.mxu0 0.0
        %2759 = vmatpush1.msra.mxu0 0.0
        %2760 = vmatprep.subr.mxu0 0.0
        %2761 = vmatpush1.msra.mxu0 0.0
        %2762 = vmatprep.subr.mxu0 0.0
        %2763 = vmatpush1.msra.mxu0 0.0
        %2764 = vmatprep.subr.mxu0 0.0
        %2765 = vmatpush1.msra.mxu0 0.0
        %2766 = vmatprep.subr.mxu0 0.0
        %2767 = vmatpush1.msra.mxu0 0.0
        %2768 = vmatprep.subr.mxu0 0.0
        %2769 = vmatpush1.msra.mxu0 0.0
        %2770 = vmatprep.subr.mxu0 0.0
        %2771 = vmatpush1.msra.mxu0 0.0
        %2772 = vmatprep.subr.mxu0 0.0
        %2773 = vmatpush1.msra.mxu0 0.0
        %2774 = vmatprep.subr.mxu0 0.0
        %2775 = vmatpush1.msra.mxu0 0.0
        %2776 = vmatprep.subr.mxu0 0.0
        %2777 = vmatpush1.msra.mxu0 0.0
        %2778 = vmatprep.subr.mxu0 0.0
        %2779 = vmatpush1.msra.mxu0 0.0
        %2780 = vmatprep.mubr.f32.mxu0 0.0
        %2781 = vmatmul.mubr.f32.gmra.mrb[0].mxu0 %v2500
        %v2782 = vpop.f32.mrb[0].mxu0
        %v2783 = vadd.f32 %v2713, %v2782
        %v2784 = vpop.f32.mrb[0].mxu0
        %2785 = vdwg.mxu0
        %v2786 = vrsqrt.pop %v2642
        %v2787 = vrsqrt.pop %v2644
        %v2788 = vrsqrt.pop %v2783
        %v2792 = vrot.slane %v2786, 1
        %v2793 = vrot.slane %v2787, 1
        %v2794 = vrot.slane %v2788, 1
        %v2795 = vrot.slane %v2786, 2
        %v2796 = vrot.slane %v2787, 2
        %v2797 = vrot.slane %v2788, 2
        %v2798 = vrot.slane %v2786, 3
        %v2799 = vrot.slane %v2787, 3
        %v2800 = vrot.slane %v2788, 3
        %v2801 = vrot.slane %v2786, 4
        %v2802 = vrot.slane %v2787, 4
        %v2803 = vrot.slane %v2788, 4
        %v2804 = vrot.slane %v2786, 5
        %v2805 = vrot.slane %v2787, 5
        %v2806 = vrot.slane %v2788, 5
        %v2807 = vrot.slane %v2786, 6
        %v2808 = vrot.slane %v2787, 6
        %v2809 = vrot.slane %v2788, 6
        %v2810 = vrot.slane %v2786, 7
        %v2811 = vrot.slane %v2787, 7
        %v2812 = vrot.slane %v2788, 7
        %v2837 = vmul.f32 %v2387, %v2786
        %v2838 = vmul.f32 %v2388, %v2787
        %v2839 = vmul.f32 %v2389, %v2788
        %v2840 = vmul.f32 %v2390, %v2792
        %v2841 = vmul.f32 %v2391, %v2793
        %v2842 = vmul.f32 %v2392, %v2794
        %v2843 = vmul.f32 %v2393, %v2795
        %v2844 = vmul.f32 %v2394, %v2796
        %v2845 = vmul.f32 %v2395, %v2797
        %v2846 = vmul.f32 %v2396, %v2798
        %v2847 = vmul.f32 %v2397, %v2799
        %v2848 = vmul.f32 %v2398, %v2800
        %v2849 = vmul.f32 %v2399, %v2801
        %v2850 = vmul.f32 %v2400, %v2802
        %v2851 = vmul.f32 %v2401, %v2803
        %v2852 = vmul.f32 %v2402, %v2804
        %v2853 = vmul.f32 %v2403, %v2805
        %v2854 = vmul.f32 %v2404, %v2806
        %v2855 = vmul.f32 %v2405, %v2807
        %v2856 = vmul.f32 %v2406, %v2808
        %v2857 = vmul.f32 %v2407, %v2809
        %v2858 = vmul.f32 %v2408, %v2810
        %v2859 = vmul.f32 %v2409, %v2811
        %v2860 = vmul.f32 %v2410, %v2812
        %v2861 = vld [vmem:[%s4] sm:$0x7]
        %v2863 = vlaneseq
        %v2864 = vshrl.u32 %v2863, 7
        %v2865 = vsub.s32 0, %v2864
        %v2866 = vrot.slane %v2861, %v2865
        %v2867 = vlaneseq
        %v2868 = vshrl.u32 %v2867, 7
        %v2869 = vsub.s32 1, %v2868
        %v2870 = vrot.slane %v2861, %v2869
        %v2871 = vlaneseq
        %v2872 = vshrl.u32 %v2871, 7
        %v2873 = vsub.s32 2, %v2872
        %v2874 = vrot.slane %v2861, %v2873
        %v2878 = vmul.f32 %v2837, %v2866
        %v2879 = vmul.f32 %v2838, %v2870
        %v2880 = vmul.f32 %v2839, %v2874
        %v2881 = vmul.f32 %v2840, %v2866
        %v2882 = vmul.f32 %v2841, %v2870
        %v2883 = vmul.f32 %v2842, %v2874
        %v2884 = vmul.f32 %v2843, %v2866
        %v2885 = vmul.f32 %v2844, %v2870
        %v2886 = vmul.f32 %v2845, %v2874
        %v2887 = vmul.f32 %v2846, %v2866
        %v2888 = vmul.f32 %v2847, %v2870
        %v2889 = vmul.f32 %v2848, %v2874
        %v2890 = vmul.f32 %v2849, %v2866
        %v2891 = vmul.f32 %v2850, %v2870
        %v2892 = vmul.f32 %v2851, %v2874
        %v2893 = vmul.f32 %v2852, %v2866
        %v2894 = vmul.f32 %v2853, %v2870
        %v2895 = vmul.f32 %v2854, %v2874
        %v2896 = vmul.f32 %v2855, %v2866
        %v2897 = vmul.f32 %v2856, %v2870
        %v2898 = vmul.f32 %v2857, %v2874
        %v2899 = vmul.f32 %v2858, %v2866
        %v2900 = vmul.f32 %v2859, %v2870
        %v2901 = vmul.f32 %v2860, %v2874
        %v2902 = vld [vmem:[%s5] sm:$0x7]
        %v2904 = vlaneseq
        %v2905 = vshrl.u32 %v2904, 7
        %v2906 = vsub.s32 0, %v2905
        %v2907 = vrot.slane %v2902, %v2906
        %v2908 = vlaneseq
        %v2909 = vshrl.u32 %v2908, 7
        %v2910 = vsub.s32 1, %v2909
        %v2911 = vrot.slane %v2902, %v2910
        %v2912 = vlaneseq
        %v2913 = vshrl.u32 %v2912, 7
        %v2914 = vsub.s32 2, %v2913
        %v2915 = vrot.slane %v2902, %v2914
        %v2919 = vadd.f32 %v2878, %v2907
        %v2920 = vadd.f32 %v2879, %v2911
        %v2921 = vadd.f32 %v2880, %v2915
        %v2922 = vadd.f32 %v2881, %v2907
        %v2923 = vadd.f32 %v2882, %v2911
        %v2924 = vadd.f32 %v2883, %v2915
        %v2925 = vadd.f32 %v2884, %v2907
        %v2926 = vadd.f32 %v2885, %v2911
        %v2927 = vadd.f32 %v2886, %v2915
        %v2928 = vadd.f32 %v2887, %v2907
        %v2929 = vadd.f32 %v2888, %v2911
        %v2930 = vadd.f32 %v2889, %v2915
        %v2931 = vadd.f32 %v2890, %v2907
        %v2932 = vadd.f32 %v2891, %v2911
        %v2933 = vadd.f32 %v2892, %v2915
        %v2934 = vadd.f32 %v2893, %v2907
        %v2935 = vadd.f32 %v2894, %v2911
        %v2936 = vadd.f32 %v2895, %v2915
        %v2937 = vadd.f32 %v2896, %v2907
        %v2938 = vadd.f32 %v2897, %v2911
        %v2939 = vadd.f32 %v2898, %v2915
        %v2940 = vadd.f32 %v2899, %v2907
        %v2941 = vadd.f32 %v2900, %v2911
        %v2942 = vadd.f32 %v2901, %v2915
        %v2967 = vrot.slane %v2922, 7
        %v2968 = vsel %vm2026, %v2967, %v2919
        %v2969 = vrot.slane %v2925, 6
        %v2970 = vsel %vm2028, %v2969, %v2968
        %v2971 = vrot.slane %v2928, 5
        %v2972 = vsel %vm2030, %v2971, %v2970
        %v2973 = vrot.slane %v2931, 4
        %v2974 = vsel %vm2032, %v2973, %v2972
        %v2975 = vrot.slane %v2934, 3
        %v2976 = vsel %vm2034, %v2975, %v2974
        %v2977 = vrot.slane %v2937, 2
        %v2978 = vsel %vm2036, %v2977, %v2976
        %v2979 = vrot.slane %v2940, 1
        %v2980 = vsel %vm2038, %v2979, %v2978
        %v2981 = vrot.slane %v2923, 7
        %v2982 = vsel %vm2026, %v2981, %v2920
        %v2983 = vrot.slane %v2926, 6
        %v2984 = vsel %vm2028, %v2983, %v2982
        %v2985 = vrot.slane %v2929, 5
        %v2986 = vsel %vm2030, %v2985, %v2984
        %v2987 = vrot.slane %v2932, 4
        %v2988 = vsel %vm2032, %v2987, %v2986
        %v2989 = vrot.slane %v2935, 3
        %v2990 = vsel %vm2034, %v2989, %v2988
        %v2991 = vrot.slane %v2938, 2
        %v2992 = vsel %vm2036, %v2991, %v2990
        %v2993 = vrot.slane %v2941, 1
        %v2994 = vsel %vm2038, %v2993, %v2992
        %v2995 = vrot.slane %v2924, 7
        %v2996 = vsel %vm2026, %v2995, %v2921
        %v2997 = vrot.slane %v2927, 6
        %v2998 = vsel %vm2028, %v2997, %v2996
        %v2999 = vrot.slane %v2930, 5
        %v3000 = vsel %vm2030, %v2999, %v2998
        %v3001 = vrot.slane %v2933, 4
        %v3002 = vsel %vm2032, %v3001, %v3000
        %v3003 = vrot.slane %v2936, 3
        %v3004 = vsel %vm2034, %v3003, %v3002
        %v3005 = vrot.slane %v2939, 2
        %v3006 = vsel %vm2036, %v3005, %v3004
        %v3007 = vrot.slane %v2942, 1
        %v3008 = vsel %vm2038, %v3007, %v3006
        %3012 = vst [vmem:[%s414] sm:$0xff] %v2980
        %3013 = vst [vmem:[%s414 + $0x8] sm:$0xff] %v2994
        %3014 = vst [vmem:[%s414 + $0x10] sm:$0xff] %v3008
        %v3015 = vld [vmem:[%s7] sm:$0xff]
        %v3016 = vld [vmem:[%s7 + $0x8] sm:$0xff]
        %v3017 = vld [vmem:[%s7 + $0x10] sm:$0xff]
        %v3018 = vld [vmem:[%s7 + $0x18] sm:$0xff]
        %v3019 = vld [vmem:[%s7 + $0x20] sm:$0xff]
        %v3020 = vld [vmem:[%s7 + $0x28] sm:$0xff]
        %v3021 = vld [vmem:[%s7 + $0x30] sm:$0xff]
        %v3022 = vld [vmem:[%s7 + $0x38] sm:$0xff]
        %v3023 = vld [vmem:[%s7 + $0x40] sm:$0xff]
        %v3024 = vld [vmem:[%s7 + $0x48] sm:$0xff]
        %v3025 = vld [vmem:[%s7 + $0x50] sm:$0xff]
        %v3026 = vld [vmem:[%s7 + $0x58] sm:$0xff]
        %v3027 = vld [vmem:[%s7 + $0x60] sm:$0xff]
        %v3028 = vld [vmem:[%s7 + $0x68] sm:$0xff]
        %v3029 = vld [vmem:[%s7 + $0x70] sm:$0xff]
        %v3030 = vld [vmem:[%s7 + $0x78] sm:$0xff]
        %v3031 = vld [vmem:[%s7 + $0x80] sm:$0xff]
        %v3032 = vld [vmem:[%s7 + $0x88] sm:$0xff]
        %v3033 = vld [vmem:[%s7 + $0x90] sm:$0xff]
        %v3034 = vld [vmem:[%s7 + $0x98] sm:$0xff]
        %v3035 = vld [vmem:[%s7 + $0xa0] sm:$0xff]
        %v3036 = vld [vmem:[%s7 + $0xa8] sm:$0xff]
        %v3037 = vld [vmem:[%s7 + $0xb0] sm:$0xff]
        %v3038 = vld [vmem:[%s7 + $0xb8] sm:$0xff]
        %v3039 = vld [vmem:[%s7 + $0xc0] sm:$0xff]
        %v3040 = vld [vmem:[%s7 + $0xc8] sm:$0xff]
        %v3041 = vld [vmem:[%s7 + $0xd0] sm:$0xff]
        %v3042 = vld [vmem:[%s7 + $0xd8] sm:$0xff]
        %v3043 = vld [vmem:[%s7 + $0xe0] sm:$0xff]
        %v3044 = vld [vmem:[%s7 + $0xe8] sm:$0xff]
        %v3045 = vld [vmem:[%s7 + $0xf0] sm:$0xff]
        %v3046 = vld [vmem:[%s7 + $0xf8] sm:$0xff]
        %v3047 = vld [vmem:[%s7 + $0x100] sm:$0xff]
        %v3048 = vld [vmem:[%s7 + $0x108] sm:$0xff]
        %v3049 = vld [vmem:[%s7 + $0x110] sm:$0xff]
        %v3050 = vld [vmem:[%s7 + $0x118] sm:$0xff]
        %v3051 = vld [vmem:[%s7 + $0x120] sm:$0xff]
        %v3052 = vld [vmem:[%s7 + $0x128] sm:$0xff]
        %v3053 = vld [vmem:[%s7 + $0x130] sm:$0xff]
        %v3054 = vld [vmem:[%s7 + $0x138] sm:$0xff]
        %v3055 = vld [vmem:[%s7 + $0x140] sm:$0xff]
        %v3056 = vld [vmem:[%s7 + $0x148] sm:$0xff]
        %v3057 = vld [vmem:[%s7 + $0x150] sm:$0xff]
        %v3058 = vld [vmem:[%s7 + $0x158] sm:$0xff]
        %v3059 = vld [vmem:[%s7 + $0x160] sm:$0xff]
        %v3060 = vld [vmem:[%s7 + $0x168] sm:$0xff]
        %v3061 = vld [vmem:[%s7 + $0x170] sm:$0xff]
        %v3062 = vld [vmem:[%s7 + $0x178] sm:$0xff]
        %v3063 = vld [vmem:[%s8] sm:$0x1]
        %v3065 = vlaneseq
        %v3066 = vshrl.u32 %v3065, 7
        %v3067 = vsub.s32 0, %v3066
        %v3068 = vrot.slane %v3063, %v3067
        %3070 = vmatprep.subr.mxu0 0.0
        %3071 = vmatpush1.msra.mxu0 %v3015
        %3072 = vmatprep.subr.mxu0 0.0
        %3073 = vmatpush1.msra.mxu0 %v3016
        %3074 = vmatprep.subr.mxu0 0.0
        %3075 = vmatpush1.msra.mxu0 %v3017
        %3076 = vmatprep.subr.mxu0 0.0
        %3077 = vmatpush1.msra.mxu0 %v3018
        %3078 = vmatprep.subr.mxu0 0.0
        %3079 = vmatpush1.msra.mxu0 %v3019
        %3080 = vmatprep.subr.mxu0 0.0
        %3081 = vmatpush1.msra.mxu0 %v3020
        %3082 = vmatprep.subr.mxu0 0.0
        %3083 = vmatpush1.msra.mxu0 %v3021
        %3084 = vmatprep.subr.mxu0 0.0
        %3085 = vmatpush1.msra.mxu0 %v3022
        %3086 = vmatprep.subr.mxu0 0.0
        %3087 = vmatpush1.msra.mxu0 %v3023
        %3088 = vmatprep.subr.mxu0 0.0
        %3089 = vmatpush1.msra.mxu0 %v3024
        %3090 = vmatprep.subr.mxu0 0.0
        %3091 = vmatpush1.msra.mxu0 %v3025
        %3092 = vmatprep.subr.mxu0 0.0
        %3093 = vmatpush1.msra.mxu0 %v3026
        %3094 = vmatprep.subr.mxu0 0.0
        %3095 = vmatpush1.msra.mxu0 %v3027
        %3096 = vmatprep.subr.mxu0 0.0
        %3097 = vmatpush1.msra.mxu0 %v3028
        %3098 = vmatprep.subr.mxu0 0.0
        %3099 = vmatpush1.msra.mxu0 %v3029
        %3100 = vmatprep.subr.mxu0 0.0
        %3101 = vmatpush1.msra.mxu0 %v3030
        %3102 = vmatprep.subr.mxu0 0.0
        %3103 = vmatpush1.msra.mxu0 %v3031
        %3104 = vmatprep.subr.mxu0 0.0
        %3105 = vmatpush1.msra.mxu0 %v3032
        %3106 = vmatprep.subr.mxu0 0.0
        %3107 = vmatpush1.msra.mxu0 %v3033
        %3108 = vmatprep.subr.mxu0 0.0
        %3109 = vmatpush1.msra.mxu0 %v3034
        %3110 = vmatprep.subr.mxu0 0.0
        %3111 = vmatpush1.msra.mxu0 %v3035
        %3112 = vmatprep.subr.mxu0 0.0
        %3113 = vmatpush1.msra.mxu0 %v3036
        %3114 = vmatprep.subr.mxu0 0.0
        %3115 = vmatpush1.msra.mxu0 %v3037
        %3116 = vmatprep.subr.mxu0 0.0
        %3117 = vmatpush1.msra.mxu0 %v3038
        %3118 = vmatprep.subr.mxu0 0.0
        %3119 = vmatpush1.msra.mxu0 %v3039
        %3120 = vmatprep.subr.mxu0 0.0
        %3121 = vmatpush1.msra.mxu0 %v3040
        %3122 = vmatprep.subr.mxu0 0.0
        %3123 = vmatpush1.msra.mxu0 %v3041
        %3124 = vmatprep.subr.mxu0 0.0
        %3125 = vmatpush1.msra.mxu0 %v3042
        %3126 = vmatprep.subr.mxu0 0.0
        %3127 = vmatpush1.msra.mxu0 %v3043
        %3128 = vmatprep.subr.mxu0 0.0
        %3129 = vmatpush1.msra.mxu0 %v3044
        %3130 = vmatprep.subr.mxu0 0.0
        %3131 = vmatpush1.msra.mxu0 %v3045
        %3132 = vmatprep.subr.mxu0 0.0
        %3133 = vmatpush1.msra.mxu0 %v3046
        %3134 = vmatprep.mubr.f32.mxu0 %v2994
        %3135 = vmatmul.mubr.f32.gmra.mrb[0].mxu0 %v2980
        %v3136 = vpop.f32.mrb[0].mxu0
        %v3137 = vadd.f32 %v3068, %v3136
        %v3138 = vpop.f32.mrb[0].mxu0
        %3139 = vdwg.mxu0
        %3140 = vmatprep.subr.mxu0 0.0
        %3141 = vmatpush1.msra.mxu0 %v3047
        %3142 = vmatprep.subr.mxu0 0.0
        %3143 = vmatpush1.msra.mxu0 %v3048
        %3144 = vmatprep.subr.mxu0 0.0
        %3145 = vmatpush1.msra.mxu0 %v3049
        %3146 = vmatprep.subr.mxu0 0.0
        %3147 = vmatpush1.msra.mxu0 %v3050
        %3148 = vmatprep.subr.mxu0 0.0
        %3149 = vmatpush1.msra.mxu0 %v3051
        %3150 = vmatprep.subr.mxu0 0.0
        %3151 = vmatpush1.msra.mxu0 %v3052
        %3152 = vmatprep.subr.mxu0 0.0
        %3153 = vmatpush1.msra.mxu0 %v3053
        %3154 = vmatprep.subr.mxu0 0.0
        %3155 = vmatpush1.msra.mxu0 %v3054
        %3156 = vmatprep.subr.mxu0 0.0
        %3157 = vmatpush1.msra.mxu0 %v3055
        %3158 = vmatprep.subr.mxu0 0.0
        %3159 = vmatpush1.msra.mxu0 %v3056
        %3160 = vmatprep.subr.mxu0 0.0
        %3161 = vmatpush1.msra.mxu0 %v3057
        %3162 = vmatprep.subr.mxu0 0.0
        %3163 = vmatpush1.msra.mxu0 %v3058
        %3164 = vmatprep.subr.mxu0 0.0
        %3165 = vmatpush1.msra.mxu0 %v3059
        %3166 = vmatprep.subr.mxu0 0.0
        %3167 = vmatpush1.msra.mxu0 %v3060
        %3168 = vmatprep.subr.mxu0 0.0
        %3169 = vmatpush1.msra.mxu0 %v3061
        %3170 = vmatprep.subr.mxu0 0.0
        %3171 = vmatpush1.msra.mxu0 %v3062
        %3172 = vmatprep.subr.mxu0 0.0
        %3173 = vmatpush1.msra.mxu0 0.0
        %3174 = vmatprep.subr.mxu0 0.0
        %3175 = vmatpush1.msra.mxu0 0.0
        %3176 = vmatprep.subr.mxu0 0.0
        %3177 = vmatpush1.msra.mxu0 0.0
        %3178 = vmatprep.subr.mxu0 0.0
        %3179 = vmatpush1.msra.mxu0 0.0
        %3180 = vmatprep.subr.mxu0 0.0
        %3181 = vmatpush1.msra.mxu0 0.0
        %3182 = vmatprep.subr.mxu0 0.0
        %3183 = vmatpush1.msra.mxu0 0.0
        %3184 = vmatprep.subr.mxu0 0.0
        %3185 = vmatpush1.msra.mxu0 0.0
        %3186 = vmatprep.subr.mxu0 0.0
        %3187 = vmatpush1.msra.mxu0 0.0
        %3188 = vmatprep.subr.mxu0 0.0
        %3189 = vmatpush1.msra.mxu0 0.0
        %3190 = vmatprep.subr.mxu0 0.0
        %3191 = vmatpush1.msra.mxu0 0.0
        %3192 = vmatprep.subr.mxu0 0.0
        %3193 = vmatpush1.msra.mxu0 0.0
        %3194 = vmatprep.subr.mxu0 0.0
        %3195 = vmatpush1.msra.mxu0 0.0
        %3196 = vmatprep.subr.mxu0 0.0
        %3197 = vmatpush1.msra.mxu0 0.0
        %3198 = vmatprep.subr.mxu0 0.0
        %3199 = vmatpush1.msra.mxu0 0.0
        %3200 = vmatprep.subr.mxu0 0.0
        %3201 = vmatpush1.msra.mxu0 0.0
        %3202 = vmatprep.subr.mxu0 0.0
        %3203 = vmatpush1.msra.mxu0 0.0
        %3204 = vmatprep.mubr.f32.mxu0 0.0
        %3205 = vmatmul.mubr.f32.gmra.mrb[0].mxu0 %v3008
        %v3206 = vpop.f32.mrb[0].mxu0
        %v3207 = vadd.f32 %v3137, %v3206
        %v3208 = vpop.f32.mrb[0].mxu0
        %3209 = vdwg.mxu0
        %vm3210 = vcmask 64512
        %3211 = vst.msk [vmem:[%s419] sm:$0xff] %vm3210, %v3207
        %p3212 = scmp.lt.s32.totalorder %s29, 1
        %s3213 = scalar_select %p3212, %s29, 1
        %s3214 = smul.addr %s3213, 8
        %s3215 = scalar_lea.vmem %s9, %s3214
        %s3216 = sand.u32 %s257, 1
        %s3217 = scalar_lea.sflag [#allocation4], %s3216
        %s3218 = sand.u32 %s257, 1
        %s3219 = smul.addr %s3218, 24
        %s3220 = scalar_lea.vmem [#allocation8], %s3219
        // Predicated region
        $region69: #{tpu_custom_call.1} parent=55 // pred_check
          %p3221 = pneg %p241
        $region70: #{tpu_custom_call.1} parent=55 // pred_check_branch
          %3223 = sbr.rel (%p3221) target = $region72
        $region71: #{tpu_custom_call.1} parent=55 // pred_region
          _
        $region72: #{tpu_custom_call.1} parent=55 // pred_fallthru
          _
        // Predicated region
        $region73: #{tpu_custom_call.1} parent=55 // pred_check
          %p3224 = pneg %p267
        $region74: #{tpu_custom_call.1} parent=55 // pred_check_branch
          %3226 = sbr.rel (%p3224) target = $region76
        $region75: #{tpu_custom_call.1} parent=55 // pred_region
          %s3228 = ssub.s32 384, 384
          %3229 = vsyncadd %s3217, %s3228
          %s3230 = smul.addr %s29, 3
          %s3231 = smul.addr %s3230, 128
          %s3232 = scalar_lea.hbm %s10, %s3231
          %s3234 = sshll.u32 %s3220, 4
          %s3235 = int_to_ptr.vmem [resolvable:$true] %s3234
          %3237 = dma.vmem_to_hbm [thread:$0]  %s3235, 384, %s3232, %s3217
        $region76: #{tpu_custom_call.1} parent=55 // pred_fallthru
          _
      $region56: #{tpu_custom_call.1} parent=5 // pred_fallthru
        _
      %p3238 = scmp.le.s32.totalorder 2, %s24
      // Predicated region
      $region77: #{tpu_custom_call.1} parent=5 // pred_check
        %p3239 = pneg %p3238
      $region78: #{tpu_custom_call.1} parent=5 // pred_check_branch
        %3241 = sbr.rel (%p3239) target = $region80
      $region79: #{tpu_custom_call.1} parent=5 // pred_region
        %s3242 = ssub.s32 %s24, 2
        // Predicated region
        $region81: #{tpu_custom_call.1} parent=79 // pred_check
          %p3243 = pneg %p247
        $region82: #{tpu_custom_call.1} parent=79 // pred_check_branch
          %3245 = sbr.rel (%p3243) target = $region84
        $region83: #{tpu_custom_call.1} parent=79 // pred_region
          %p3246 = scmp.lt.s32.totalorder %s30, 1
          %s3247 = scalar_select %p3246, %s30, 1
          %s3248 = smul.addr %s3247, 8
          %s3249 = scalar_lea.vmem %s9, %s3248
        $region84: #{tpu_custom_call.1} parent=79 // pred_fallthru
          _
        // Predicated region
        $region85: #{tpu_custom_call.1} parent=79 // pred_check
          %p3250 = pneg %p273
        $region86: #{tpu_custom_call.1} parent=79 // pred_check_branch
          %3252 = sbr.rel (%p3250) target = $region88
        $region87: #{tpu_custom_call.1} parent=79 // pred_region
          %s3253 = sand.u32 %s258, 1
          %s3254 = scalar_lea.sflag [#allocation4], %s3253
          %s3255 = sand.u32 %s258, 1
          %s3256 = smul.addr %s3255, 24
          %s3257 = scalar_lea.vmem [#allocation8], %s3256
          %3258 = dma.done %s3254, 384
        $region88: #{tpu_custom_call.1} parent=79 // pred_fallthru
          _
      $region80: #{tpu_custom_call.1} parent=5 // pred_fallthru
        _
    $region6: #{tpu_custom_call.1} parent=1 // loop_footer
      %s28 = sadd.s32 1, %s24
    $region7: #{tpu_custom_call.1} parent=1 // loop_footer_branch
      %23 = sbr.rel target = $region3
    $region8: #{tpu_custom_call.1} parent=1 // loop_exit
      _
    %3259 = vsyncpa [#allocation3], 1
    %s3260 = scalar_lea.sflag [#allocation3], 1
    %3261 = vsyncpa %s3260, 1
    %3262 = vsyncpa [#allocation6], 1
    %3263 = vsyncpa [#allocation4], 1
    %s3264 = scalar_lea.sflag [#allocation4], 1
    %3265 = vsyncpa %s3264, 1

</llo_original>
